<compile_context>
chip_gen: v6e
topology: v6e:2x2x1
jax: 0.10.0
libtpu: 0.0.40
codegen_flags: <defaults>
</compile_context>

<pallas_src>
import functools

import numpy as np
import jax
import jax.numpy as jnp
from jax.experimental import pallas as pl
from jax.experimental.pallas import tpu as pltpu

# ----------------------------- config -----------------------------
KSIZE = 3
PAD = KSIZE // 2              # padding1 == padding2 for odd ksize
VIEWS = 3
CHS = 8
IN_BLOCKS = 1
OUT_BLOCKS = 1

CP = 16                       # uniform (padded) channel count on sublanes
NTAPS = KSIZE * KSIZE
KSTACK = NTAPS * CP           # contraction depth of the tap-stacked dot


def _round_up(x, m):
    return (x + m - 1) // m * m


# --------------------------- fused Pallas kernel ---------------------------
def _fused_kernel(x_ref, mask_ref, w_ref, b_ref, out_ref, taps_ref, *,
                  Wp, GL, n_in_blocks, n_out_blocks, chs):
    """x_ref   : (1, CP, 2*GL)  lane-folded activations: [h images | v images]
       mask_ref: (1, 2*GL)      1.0 at interior output lanes, 0 elsewhere
       w_ref   : (n_convs, CP, KSTACK) tap-stacked weights (tap-major K)
       b_ref   : (n_convs, CP, 1) biases
       out_ref : (1, CP, GL)    channel 0 = mean
       taps_ref: (KSTACK, 2*GL) VMEM staging buffer for the 9 rolled taps
    """
    W2 = 2 * GL
    mask2 = mask_ref[...]                      # (1, 2*GL)
    mask1 = mask2[:, :GL]                      # (1, GL)

    def stage_dual(x):
        # x: (CP, 2*GL), h half on lanes [0, GL), v half on [GL, 2*GL).
        # One full-width roll per tap offset serves BOTH branches: offset
        # o = a*Wp + b is the v-branch offset of tap (a+PAD, b+PAD) and the
        # (transpose-folded) h-branch offset of tap (b+PAD, a+PAD).
        for a in range(-PAD, PAD + 1):
            for b in range(-PAD, PAD + 1):
                off = a * Wp + b
                r = x if off == 0 else pltpu.roll(x, (-off) % W2, 1)
                tv = (a + PAD) * KSIZE + (b + PAD)
                th = (b + PAD) * KSIZE + (a + PAD)
                if tv == th:
                    taps_ref[tv * CP:(tv + 1) * CP, :] = r
                else:
                    taps_ref[th * CP:(th + 1) * CP, :GL] = r[:, :GL]
                    taps_ref[tv * CP:(tv + 1) * CP, GL:] = r[:, GL:]

    def stage_single(x):
        # x: (CP, GL) -- out_net activations (single spatial orientation).
        for a in range(-PAD, PAD + 1):
            for b in range(-PAD, PAD + 1):
                off = a * Wp + b
                r = x if off == 0 else pltpu.roll(x, (-off) % GL, 1)
                t = (a + PAD) * KSIZE + (b + PAD)
                taps_ref[t * CP:(t + 1) * CP, :GL] = r

    def conv(idx, width, relu, mask):
        # ONE tap-stacked MXU dot per conv: (CP, KSTACK) x (KSTACK, width).
        acc = jnp.dot(w_ref[idx], taps_ref[:, :width],
                      preferred_element_type=jnp.float32)
        acc = acc + b_ref[idx]                 # (CP, 1) lane-broadcast bias
        if relu:
            acc = jnp.maximum(acc, 0.0)
        if mask is not None:
            acc = acc * mask                   # re-zero halo / tail lanes
        return acc

    ci = 0
    # ---- in_net_hv, applied to the lane-fused [h | v] stack ----
    x = x_ref[0]                               # (CP, 2*GL)
    for _ in range(n_in_blocks):
        stage_dual(x); x = conv(ci, W2, True, mask2); ci += 1   # Conv + ReLU
        stage_dual(x); x = conv(ci, W2, True, mask2); ci += 1   # Conv + ReLU
    # ---- channel concat (torch: cat([h_features, v_features], dim=1)) ----
    x = jnp.concatenate([x[:chs, :GL], x[:chs, GL:]], axis=0)   # (2*chs, GL)
    if 2 * chs < CP:
        x = jnp.concatenate(
            [x, jnp.zeros((CP - 2 * chs, GL), jnp.float32)], axis=0)
    # ---- out_net ----
    for blk in range(n_out_blocks):
        last = blk == n_out_blocks - 1
        stage_single(x); x = conv(ci, GL, True, mask1); ci += 1
        stage_single(x)
        x = conv(ci, GL, not last, None if last else mask1); ci += 1
    # Final conv is unmasked: halo/tail lanes hold bias-propagated garbage;
    # the wrapper only consumes the interior lanes of channel 0.
    out_ref[0] = x                             # (CP, GL) lane-dense store


# ------------------------------ wrapper ------------------------------
def _stack_conv(w_hwio, b):
    """HWIO (KH,KW,Cin,Cout) conv weight -> (CP, KSTACK) tap-stacked weight
    (contraction index = (kh*KSIZE+kw)*CP + cin) and (CP,1) bias, both
    zero-padded to the uniform CP channels."""
    kh, kw, cin, cout = w_hwio.shape
    w = jnp.transpose(w_hwio, (3, 0, 1, 2))                 # (Cout,KH,KW,Cin)
    w = jnp.pad(w, ((0, CP - cout), (0, 0), (0, 0), (0, CP - cin)))
    w = w.reshape(CP, kh * kw * CP)
    bp = jnp.pad(b, (0, CP - cout)).reshape(CP, 1)
    return w, bp


def _pack_params(blocks_list):
    ws, bs = [], []
    for blocks in blocks_list:
        for (w1, b1), (w2, b2) in blocks:
            for w, b in ((w1, b1), (w2, b2)):
                sw, sb = _stack_conv(w, b)
                ws.append(sw)
                bs.append(sb)
    return jnp.stack(ws), jnp.stack(bs)   # (n_convs,CP,KSTACK), (n_convs,CP,1)


def _pad_flat(x_nchw, L, Bp):
    """(B, C, H, W) -> (Bp, CP, L): zero halo of PAD, channels padded to CP,
    padded spatial grid flattened onto the last (lane) axis, zero tail."""
    B, C, H, W = x_nchw.shape
    xp = jnp.pad(x_nchw, ((0, Bp - B), (0, CP - C), (PAD, PAD), (PAD, PAD)))
    S = (H + 2 * PAD) * (W + 2 * PAD)
    return jnp.pad(xp.reshape(Bp, CP, S), ((0, 0), (0, 0), (0, L - S)))


def _default_grid_steps():
    # v7x has 2 TensorCores per chip -> keep both busy with a parallel grid;
    # single-TC chips (v5e/v6e) do everything in one lane-folded grid step.
    try:
        kind = jax.devices()[0].device_kind.lower()
    except Exception:
        return 1
    return 2 if "v7" in kind else 1


def feed_forward_pallas(params, h_views, v_views, *, grid_steps=None):
    """h_views, v_views: (b, n, 3, h, w) -- same axis convention as PyTorch."""
    B, N, C, H, W = h_views.shape
    NC = N * C
    assert NC <= CP, "views*3 must fit the padded channel count"
    Hp, Wp = H + 2 * PAD, W + 2 * PAD
    S = Hp * Wp
    L = _round_up(S, 128)                     # per-image lane block
    # Tap reads for interior output lanes always stay inside the image's own
    # L-lane block (max |tap offset| = PAD*(Wp+1) = lane index of the first
    # interior output), so cross-image / h-v-boundary / roll-wrap leakage only
    # ever lands in halo or tail lanes, which every masked conv re-zeroes.
    assert L >= S

    in_blocks = params["in_net_hv"]
    out_blocks = params["out_net"]
    chs = in_blocks[-1][1][0].shape[-1]       # in_net output channels
    assert 2 * chs <= CP
    w_pk, b_pk = _pack_params([in_blocks, out_blocks])

    if grid_steps is None:
        grid_steps = _default_grid_steps()
    grid_steps = max(1, min(int(grid_steps), B))
    Bp = _round_up(B, grid_steps)
    G = Bp // grid_steps                      # images lane-folded per step
    GL = G * L

    def fold(x):                              # (Bp,CP,L) -> (steps,CP,G*L)
        return (x.reshape(grid_steps, G, CP, L)
                 .transpose(0, 2, 1, 3).reshape(grid_steps, CP, GL))

    h_flat = fold(_pad_flat(h_views.reshape(B, NC, H, W), L, Bp))
    v_flat = fold(_pad_flat(v_views.reshape(B, NC, H, W), L, Bp))
    x_in = jnp.concatenate([h_flat, v_flat], axis=-1)     # (steps, CP, 2*GL)

    # interior-output mask in the folded layout (compile-time constant)
    m = np.zeros((Hp, Wp), np.float32)
    m[PAD:PAD + H, PAD:PAD + W] = 1.0
    m = np.pad(m.reshape(1, S), ((0, 0), (0, L - S)))
    mask = jnp.asarray(np.tile(m, (1, 2 * G)))            # (1, 2*GL)

    kernel = functools.partial(
        _fused_kernel, Wp=Wp, GL=GL, n_in_blocks=len(in_blocks),
        n_out_blocks=len(out_blocks), chs=chs)

    out = pl.pallas_call(
        kernel,
        out_shape=jax.ShapeDtypeStruct((grid_steps, CP, GL), jnp.float32),
        grid=(grid_steps,),
        in_specs=[
            pl.BlockSpec((1, CP, 2 * GL), lambda i: (i, 0, 0)),
            pl.BlockSpec((1, 2 * GL), lambda i: (0, 0)),
            pl.BlockSpec(w_pk.shape, lambda i: (0, 0, 0)),
            pl.BlockSpec(b_pk.shape, lambda i: (0, 0, 0)),
        ],
        out_specs=pl.BlockSpec((1, CP, GL), lambda i: (i, 0, 0)),
        scratch_shapes=[pltpu.VMEM((KSTACK, 2 * GL), jnp.float32)],
        compiler_params=pltpu.CompilerParams(
            dimension_semantics=("parallel",)),
    )(x_in, mask, w_pk, b_pk)

    # tiny interior extraction; mean == output[:, 0] of the PyTorch module
    mean = (out[:, 0, :].reshape(Bp, L)[:, :S].reshape(Bp, Hp, Wp)
            [:B, PAD:PAD + H, PAD:PAD + W])
    # TODO(synk): discrete / uncert (laplacian posterior) / UNet / BatchNorm /
    # non-cross (i_views, d_views) branches of the PyTorch module are not
    # exercised in this configuration and are not implemented.
    return {"mean": mean, "logvar": None, "scores": None,
            "one_hot": None, "posterior": None}


# --------------------- plain-JAX reference (lax.conv) ---------------------
def conv2d_ref(x, w, b, *, pad, relu, precision):
    y = jax.lax.conv_general_dilated(
        x, w, window_strides=(1, 1), padding=((pad, pad), (pad, pad)),
        dimension_numbers=("NHWC", "HWIO", "NHWC"), precision=precision)
    y = y + b[None, None, None, :]
    if relu:
        y = jnp.maximum(y, 0.0)
    return y


def _apply_block_ref(x, block_params, out_relu, precision):
    (w1, b1), (w2, b2) = block_params
    x = conv2d_ref(x, w1, b1, pad=PAD, relu=True, precision=precision)
    x = conv2d_ref(x, w2, b2, pad=PAD, relu=out_relu, precision=precision)
    return x


def _apply_in_net_ref(blocks, x, precision):
    for blk in blocks:
        x = _apply_block_ref(x, blk, True, precision)
    return x


def _apply_out_net_ref(blocks, x, precision):
    for blk in blocks[:-1]:
        x = _apply_block_ref(x, blk, True, precision)
    return _apply_block_ref(x, blocks[-1], False, precision)


def feed_forward_ref(params, h_views, v_views, *, precision=None):
    b, n, c, h, w = h_views.shape
    h_nchw = h_views.reshape(b, n * c, h, w)
    v_nchw = v_views.reshape(b, n * c, h, w)
    # torch: h_views.permute(0,1,3,2) (spatial transpose), then NCHW -> NHWC
    h_x = jnp.transpose(h_nchw, (0, 3, 2, 1))               # (b, w, h, n*c)
    v_x = jnp.transpose(v_nchw, (0, 2, 3, 1))               # (b, h, w, n*c)
    h_feat = _apply_in_net_ref(params["in_net_hv"], h_x, precision)
    h_feat = jnp.transpose(h_feat, (0, 2, 1, 3))            # (b, h, w, chs)
    v_feat = _apply_in_net_ref(params["in_net_hv"], v_x, precision)
    features = jnp.concatenate([h_feat, v_feat], axis=-1)   # cross=True
    output = _apply_out_net_ref(params["out_net"], features, precision)
    mean = output[..., 0]
    return {"mean": mean, "logvar": None, "scores": None,
            "one_hot": None, "posterior": None}


# ------------------------- parameter init -------------------------
def make_block_params(key, ch_in, ch_out, ksize):
    k1, k2, k3, k4 = jax.random.split(key, 4)
    w1 = 0.1 * jax.random.normal(k1, (ksize, ksize, ch_in, ch_out), jnp.float32)
    b1 = 0.1 * jax.random.normal(k2, (ch_out,), jnp.float32)
    w2 = 0.1 * jax.random.normal(k3, (ksize, ksize, ch_out, ch_out), jnp.float32)
    b2 = 0.1 * jax.random.normal(k4, (ch_out,), jnp.float32)
    return [(w1, b1), (w2, b2)]


def make_params(key):
    keys = jax.random.split(key, IN_BLOCKS + OUT_BLOCKS)
    in_blocks = []
    ch_in = VIEWS * 3
    for i in range(IN_BLOCKS):
        in_blocks.append(make_block_params(keys[i], ch_in, CHS, KSIZE))
        ch_in = CHS
    out_blocks = []
    chs = 2 * CHS            # cross=True
    for i in range(OUT_BLOCKS - 1):
        out_blocks.append(make_block_params(keys[IN_BLOCKS + i], chs, chs, KSIZE))
    # final block: block(chs, out_chs=1, out_bn_relu=False)
    out_blocks.append(make_block_params(keys[-1], chs, 1, KSIZE))
    return {"in_net_hv": in_blocks, "out_net": out_blocks}


# ------------------------------ main ------------------------------
if __name__ == "__main__":
    key = jax.random.PRNGKey(0)
    k_h, k_v, k_p = jax.random.split(key, 3)

    B, N, C, H, W = 2, VIEWS, 3, 16, 16
    h_views = jax.random.normal(k_h, (B, N, C, H, W), jnp.float32)
    v_views = jax.random.normal(k_v, (B, N, C, H, W), jnp.float32)
    params = make_params(k_p)

    fwd = jax.jit(feed_forward_pallas)
    out = fwd(params, h_views, v_views)
    mean = jax.block_until_ready(out["mean"])
    assert mean.shape == (B, H, W), mean.shape

    # Cross-check against a plain-JAX (lax.conv) reference of the same math,
    # with the PyTorch h-branch transposes done literally.  The tolerance is
    # derived from the reference's own MXU (reduced-precision pass) spread so
    # the check is tight on exact-arithmetic backends and robust on real MXUs.
    ref_hi = feed_forward_ref(params, h_views, v_views,
                              precision=jax.lax.Precision.HIGHEST)["mean"]
    ref_lo = feed_forward_ref(params, h_views, v_views,
                              precision=None)["mean"]
    ref_hi = jax.block_until_ready(ref_hi)
    ref_lo = jax.block_until_ready(ref_lo)
    tol = max(2e-3, 8.0 * float(jnp.max(jnp.abs(ref_hi - ref_lo))))
    err = float(jnp.max(jnp.abs(mean - ref_hi)))
    assert err <= tol, (err, tol)

    print("KERNEL_OK")
</pallas_src>

<mosaic_0001>
module attributes {stable_mosaic.version = 11 : i64} {
  func.func @_fused_kernel(%arg0: i32, %arg1: memref<1x16x1536xf32, #tpu.memory_space<vmem>>, %arg2: memref<1x1536xf32, #tpu.memory_space<vmem>>, %arg3: memref<4x16x144xf32, #tpu.memory_space<vmem>>, %arg4: memref<4x16x1xf32, #tpu.memory_space<vmem>>, %arg5: memref<1x16x768xf32, #tpu.memory_space<vmem>>, %arg6: memref<144x1536xf32, #tpu.memory_space<vmem>>) attributes {dimension_semantics = [#tpu.dimension_semantics<parallel>], iteration_bounds = array<i64: 1>, scalar_prefetch = 0 : i64, scratch_operands = 1 : i64, tpu.core_type = #tpu.core_type<tc>, window_params = [{transform_indices = @transform_0, window_bounds = array<i64: 1, 16, 1536>}, {pipeline_mode = #tpu.pipeline_mode<synchronous>, transform_indices = @transform_1, window_bounds = array<i64: 1, 1536>}, {pipeline_mode = #tpu.pipeline_mode<synchronous>, transform_indices = @transform_2, window_bounds = array<i64: 4, 16, 144>}, {pipeline_mode = #tpu.pipeline_mode<synchronous>, transform_indices = @transform_3, window_bounds = array<i64: 4, 16, 1>}, {transform_indices = @transform_4, window_bounds = array<i64: 1, 16, 768>}]} {
    %c0 = arith.constant 0 : index
    %c0_0 = arith.constant 0 : index
    %0 = vector.load %arg2[%c0, %c0_0] : memref<1x1536xf32, #tpu.memory_space<vmem>>, vector<1x1536xf32>
    %1 = vector.extract_strided_slice %0 {offsets = [0, 0], sizes = [1, 768], strides = [1, 1]} : vector<1x1536xf32> to vector<1x768xf32>
    %c0_1 = arith.constant 0 : index
    %c0_2 = arith.constant 0 : index
    %c0_3 = arith.constant 0 : index
    %2 = vector.load %arg1[%c0_1, %c0_2, %c0_3] : memref<1x16x1536xf32, #tpu.memory_space<vmem>>, vector<1x16x1536xf32>
    %3 = vector.shape_cast %2 : vector<1x16x1536xf32> to vector<16x1536xf32>
    %c19_i32 = arith.constant 19 : i32
    %4 = tpu.dynamic_rotate %3 by %c19_i32 dim 1 : vector<16x1536xf32>, i32 -> vector<16x1536xf32>
    %c0_4 = arith.constant 0 : index
    %c0_5 = arith.constant 0 : index
    %5 = vector.load %arg6[%c0_4, %c0_5] : memref<144x1536xf32, #tpu.memory_space<vmem>>, vector<16x1536xf32>
    tpu.vector_store %arg6[%c0_4, %c0_5], %4 {strides = array<i32>} : memref<144x1536xf32, #tpu.memory_space<vmem>>, vector<16x1536xf32>,
    %c18_i32 = arith.constant 18 : i32
    %6 = tpu.dynamic_rotate %3 by %c18_i32 dim 1 : vector<16x1536xf32>, i32 -> vector<16x1536xf32>
    %7 = vector.extract_strided_slice %6 {offsets = [0, 0], sizes = [16, 768], strides = [1, 1]} : vector<16x1536xf32> to vector<16x768xf32>
    %c48 = arith.constant 48 : index
    %c0_6 = arith.constant 0 : index
    %8 = vector.load %arg6[%c48, %c0_6] : memref<144x1536xf32, #tpu.memory_space<vmem>>, vector<16x768xf32>
    tpu.vector_store %arg6[%c48, %c0_6], %7 {strides = array<i32>} : memref<144x1536xf32, #tpu.memory_space<vmem>>, vector<16x768xf32>,
    %9 = vector.extract_strided_slice %6 {offsets = [0, 768], sizes = [16, 768], strides = [1, 1]} : vector<16x1536xf32> to vector<16x768xf32>
    %c16 = arith.constant 16 : index
    %c768 = arith.constant 768 : index
    %10 = vector.load %arg6[%c16, %c768] : memref<144x1536xf32, #tpu.memory_space<vmem>>, vector<16x768xf32>
    tpu.vector_store %arg6[%c16, %c768], %9 {strides = array<i32>} : memref<144x1536xf32, #tpu.memory_space<vmem>>, vector<16x768xf32>,
    %c17_i32 = arith.constant 17 : i32
    %11 = tpu.dynamic_rotate %3 by %c17_i32 dim 1 : vector<16x1536xf32>, i32 -> vector<16x1536xf32>
    %12 = vector.extract_strided_slice %11 {offsets = [0, 0], sizes = [16, 768], strides = [1, 1]} : vector<16x1536xf32> to vector<16x768xf32>
    %c96 = arith.constant 96 : index
    %c0_7 = arith.constant 0 : index
    %13 = vector.load %arg6[%c96, %c0_7] : memref<144x1536xf32, #tpu.memory_space<vmem>>, vector<16x768xf32>
    tpu.vector_store %arg6[%c96, %c0_7], %12 {strides = array<i32>} : memref<144x1536xf32, #tpu.memory_space<vmem>>, vector<16x768xf32>,
    %14 = vector.extract_strided_slice %11 {offsets = [0, 768], sizes = [16, 768], strides = [1, 1]} : vector<16x1536xf32> to vector<16x768xf32>
    %c32 = arith.constant 32 : index
    %c768_8 = arith.constant 768 : index
    %15 = vector.load %arg6[%c32, %c768_8] : memref<144x1536xf32, #tpu.memory_space<vmem>>, vector<16x768xf32>
    tpu.vector_store %arg6[%c32, %c768_8], %14 {strides = array<i32>} : memref<144x1536xf32, #tpu.memory_space<vmem>>, vector<16x768xf32>,
    %c1_i32 = arith.constant 1 : i32
    %16 = tpu.dynamic_rotate %3 by %c1_i32 dim 1 : vector<16x1536xf32>, i32 -> vector<16x1536xf32>
    %17 = vector.extract_strided_slice %16 {offsets = [0, 0], sizes = [16, 768], strides = [1, 1]} : vector<16x1536xf32> to vector<16x768xf32>
    %c16_9 = arith.constant 16 : index
    %c0_10 = arith.constant 0 : index
    %18 = vector.load %arg6[%c16_9, %c0_10] : memref<144x1536xf32, #tpu.memory_space<vmem>>, vector<16x768xf32>
    tpu.vector_store %arg6[%c16_9, %c0_10], %17 {strides = array<i32>} : memref<144x1536xf32, #tpu.memory_space<vmem>>, vector<16x768xf32>,
    %19 = vector.extract_strided_slice %16 {offsets = [0, 768], sizes = [16, 768], strides = [1, 1]} : vector<16x1536xf32> to vector<16x768xf32>
    %c48_11 = arith.constant 48 : index
    %c768_12 = arith.constant 768 : index
    %20 = vector.load %arg6[%c48_11, %c768_12] : memref<144x1536xf32, #tpu.memory_space<vmem>>, vector<16x768xf32>
    tpu.vector_store %arg6[%c48_11, %c768_12], %19 {strides = array<i32>} : memref<144x1536xf32, #tpu.memory_space<vmem>>, vector<16x768xf32>,
    %c64 = arith.constant 64 : index
    %c0_13 = arith.constant 0 : index
    %21 = vector.load %arg6[%c64, %c0_13] : memref<144x1536xf32, #tpu.memory_space<vmem>>, vector<16x1536xf32>
    tpu.vector_store %arg6[%c64, %c0_13], %3 {strides = array<i32>} : memref<144x1536xf32, #tpu.memory_space<vmem>>, vector<16x1536xf32>,
    %c1535_i32 = arith.constant 1535 : i32
    %22 = tpu.dynamic_rotate %3 by %c1535_i32 dim 1 : vector<16x1536xf32>, i32 -> vector<16x1536xf32>
    %23 = vector.extract_strided_slice %22 {offsets = [0, 0], sizes = [16, 768], strides = [1, 1]} : vector<16x1536xf32> to vector<16x768xf32>
    %c112 = arith.constant 112 : index
    %c0_14 = arith.constant 0 : index
    %24 = vector.load %arg6[%c112, %c0_14] : memref<144x1536xf32, #tpu.memory_space<vmem>>, vector<16x768xf32>
    tpu.vector_store %arg6[%c112, %c0_14], %23 {strides = array<i32>} : memref<144x1536xf32, #tpu.memory_space<vmem>>, vector<16x768xf32>,
    %25 = vector.extract_strided_slice %22 {offsets = [0, 768], sizes = [16, 768], strides = [1, 1]} : vector<16x1536xf32> to vector<16x768xf32>
    %c80 = arith.constant 80 : index
    %c768_15 = arith.constant 768 : index
    %26 = vector.load %arg6[%c80, %c768_15] : memref<144x1536xf32, #tpu.memory_space<vmem>>, vector<16x768xf32>
    tpu.vector_store %arg6[%c80, %c768_15], %25 {strides = array<i32>} : memref<144x1536xf32, #tpu.memory_space<vmem>>, vector<16x768xf32>,
    %c1519_i32 = arith.constant 1519 : i32
    %27 = tpu.dynamic_rotate %3 by %c1519_i32 dim 1 : vector<16x1536xf32>, i32 -> vector<16x1536xf32>
    %28 = vector.extract_strided_slice %27 {offsets = [0, 0], sizes = [16, 768], strides = [1, 1]} : vector<16x1536xf32> to vector<16x768xf32>
    %c32_16 = arith.constant 32 : index
    %c0_17 = arith.constant 0 : index
    %29 = vector.load %arg6[%c32_16, %c0_17] : memref<144x1536xf32, #tpu.memory_space<vmem>>, vector<16x768xf32>
    tpu.vector_store %arg6[%c32_16, %c0_17], %28 {strides = array<i32>} : memref<144x1536xf32, #tpu.memory_space<vmem>>, vector<16x768xf32>,
    %30 = vector.extract_strided_slice %27 {offsets = [0, 768], sizes = [16, 768], strides = [1, 1]} : vector<16x1536xf32> to vector<16x768xf32>
    %c96_18 = arith.constant 96 : index
    %c768_19 = arith.constant 768 : index
    %31 = vector.load %arg6[%c96_18, %c768_19] : memref<144x1536xf32, #tpu.memory_space<vmem>>, vector<16x768xf32>
    tpu.vector_store %arg6[%c96_18, %c768_19], %30 {strides = array<i32>} : memref<144x1536xf32, #tpu.memory_space<vmem>>, vector<16x768xf32>,
    %c1518_i32 = arith.constant 1518 : i32
    %32 = tpu.dynamic_rotate %3 by %c1518_i32 dim 1 : vector<16x1536xf32>, i32 -> vector<16x1536xf32>
    %33 = vector.extract_strided_slice %32 {offsets = [0, 0], sizes = [16, 768], strides = [1, 1]} : vector<16x1536xf32> to vector<16x768xf32>
    %c80_20 = arith.constant 80 : index
    %c0_21 = arith.constant 0 : index
    %34 = vector.load %arg6[%c80_20, %c0_21] : memref<144x1536xf32, #tpu.memory_space<vmem>>, vector<16x768xf32>
    tpu.vector_store %arg6[%c80_20, %c0_21], %33 {strides = array<i32>} : memref<144x1536xf32, #tpu.memory_space<vmem>>, vector<16x768xf32>,
    %35 = vector.extract_strided_slice %32 {offsets = [0, 768], sizes = [16, 768], strides = [1, 1]} : vector<16x1536xf32> to vector<16x768xf32>
    %c112_22 = arith.constant 112 : index
    %c768_23 = arith.constant 768 : index
    %36 = vector.load %arg6[%c112_22, %c768_23] : memref<144x1536xf32, #tpu.memory_space<vmem>>, vector<16x768xf32>
    tpu.vector_store %arg6[%c112_22, %c768_23], %35 {strides = array<i32>} : memref<144x1536xf32, #tpu.memory_space<vmem>>, vector<16x768xf32>,
    %c1517_i32 = arith.constant 1517 : i32
    %37 = tpu.dynamic_rotate %3 by %c1517_i32 dim 1 : vector<16x1536xf32>, i32 -> vector<16x1536xf32>
    %c128 = arith.constant 128 : index
    %c0_24 = arith.constant 0 : index
    %38 = vector.load %arg6[%c128, %c0_24] : memref<144x1536xf32, #tpu.memory_space<vmem>>, vector<16x1536xf32>
    tpu.vector_store %arg6[%c128, %c0_24], %37 {strides = array<i32>} : memref<144x1536xf32, #tpu.memory_space<vmem>>, vector<16x1536xf32>,
    %c0_25 = arith.constant 0 : index
    %c0_26 = arith.constant 0 : index
    %c0_27 = arith.constant 0 : index
    %39 = vector.load %arg3[%c0_25, %c0_26, %c0_27] : memref<4x16x144xf32, #tpu.memory_space<vmem>>, vector<1x16x144xf32>
    %40 = vector.shape_cast %39 : vector<1x16x144xf32> to vector<16x144xf32>
    %c0_28 = arith.constant 0 : index
    %c0_29 = arith.constant 0 : index
    %41 = vector.load %arg6[%c0_28, %c0_29] : memref<144x1536xf32, #tpu.memory_space<vmem>>, vector<144x1536xf32>
    %cst = arith.constant dense<0.000000e+00> : vector<16x1536xf32>
    %42 = tpu.matmul %40, %41, %cst {dimension_numbers = #tpu.dot_dimension_numbers<[1], [0], [0], [1], [0, 0, 1, 1], [], []>} : vector<16x144xf32>, vector<144x1536xf32>, vector<16x1536xf32> -> vector<16x1536xf32>
    %c0_30 = arith.constant 0 : index
    %c0_31 = arith.constant 0 : index
    %c0_32 = arith.constant 0 : index
    %43 = vector.load %arg4[%c0_30, %c0_31, %c0_32] : memref<4x16x1xf32, #tpu.memory_space<vmem>>, vector<1x16x1xf32>
    %44 = vector.shape_cast %43 : vector<1x16x1xf32> to vector<16x1xf32>
    %45 = vector.broadcast %44 : vector<16x1xf32> to vector<16x1536xf32>
    %46 = arith.addf %42, %45 : vector<16x1536xf32>
    %cst_33 = arith.constant 0.000000e+00 : f32
    %47 = vector.broadcast %cst_33 : f32 to vector<16x1536xf32>
    %48 = arith.maximumf %46, %47 : vector<16x1536xf32>
    %49 = vector.broadcast %0 : vector<1x1536xf32> to vector<16x1536xf32>
    %50 = arith.mulf %48, %49 : vector<16x1536xf32>
    %c19_i32_34 = arith.constant 19 : i32
    %51 = tpu.dynamic_rotate %50 by %c19_i32_34 dim 1 : vector<16x1536xf32>, i32 -> vector<16x1536xf32>
    %c0_35 = arith.constant 0 : index
    %c0_36 = arith.constant 0 : index
    %52 = vector.load %arg6[%c0_35, %c0_36] : memref<144x1536xf32, #tpu.memory_space<vmem>>, vector<16x1536xf32>
    tpu.vector_store %arg6[%c0_35, %c0_36], %51 {strides = array<i32>} : memref<144x1536xf32, #tpu.memory_space<vmem>>, vector<16x1536xf32>,
    %c18_i32_37 = arith.constant 18 : i32
    %53 = tpu.dynamic_rotate %50 by %c18_i32_37 dim 1 : vector<16x1536xf32>, i32 -> vector<16x1536xf32>
    %54 = vector.extract_strided_slice %53 {offsets = [0, 0], sizes = [16, 768], strides = [1, 1]} : vector<16x1536xf32> to vector<16x768xf32>
    %c48_38 = arith.constant 48 : index
    %c0_39 = arith.constant 0 : index
    %55 = vector.load %arg6[%c48_38, %c0_39] : memref<144x1536xf32, #tpu.memory_space<vmem>>, vector<16x768xf32>
    tpu.vector_store %arg6[%c48_38, %c0_39], %54 {strides = array<i32>} : memref<144x1536xf32, #tpu.memory_space<vmem>>, vector<16x768xf32>,
    %56 = vector.extract_strided_slice %53 {offsets = [0, 768], sizes = [16, 768], strides = [1, 1]} : vector<16x1536xf32> to vector<16x768xf32>
    %c16_40 = arith.constant 16 : index
    %c768_41 = arith.constant 768 : index
    %57 = vector.load %arg6[%c16_40, %c768_41] : memref<144x1536xf32, #tpu.memory_space<vmem>>, vector<16x768xf32>
    tpu.vector_store %arg6[%c16_40, %c768_41], %56 {strides = array<i32>} : memref<144x1536xf32, #tpu.memory_space<vmem>>, vector<16x768xf32>,
    %c17_i32_42 = arith.constant 17 : i32
    %58 = tpu.dynamic_rotate %50 by %c17_i32_42 dim 1 : vector<16x1536xf32>, i32 -> vector<16x1536xf32>
    %59 = vector.extract_strided_slice %58 {offsets = [0, 0], sizes = [16, 768], strides = [1, 1]} : vector<16x1536xf32> to vector<16x768xf32>
    %c96_43 = arith.constant 96 : index
    %c0_44 = arith.constant 0 : index
    %60 = vector.load %arg6[%c96_43, %c0_44] : memref<144x1536xf32, #tpu.memory_space<vmem>>, vector<16x768xf32>
    tpu.vector_store %arg6[%c96_43, %c0_44], %59 {strides = array<i32>} : memref<144x1536xf32, #tpu.memory_space<vmem>>, vector<16x768xf32>,
    %61 = vector.extract_strided_slice %58 {offsets = [0, 768], sizes = [16, 768], strides = [1, 1]} : vector<16x1536xf32> to vector<16x768xf32>
    %c32_45 = arith.constant 32 : index
    %c768_46 = arith.constant 768 : index
    %62 = vector.load %arg6[%c32_45, %c768_46] : memref<144x1536xf32, #tpu.memory_space<vmem>>, vector<16x768xf32>
    tpu.vector_store %arg6[%c32_45, %c768_46], %61 {strides = array<i32>} : memref<144x1536xf32, #tpu.memory_space<vmem>>, vector<16x768xf32>,
    %c1_i32_47 = arith.constant 1 : i32
    %63 = tpu.dynamic_rotate %50 by %c1_i32_47 dim 1 : vector<16x1536xf32>, i32 -> vector<16x1536xf32>
    %64 = vector.extract_strided_slice %63 {offsets = [0, 0], sizes = [16, 768], strides = [1, 1]} : vector<16x1536xf32> to vector<16x768xf32>
    %c16_48 = arith.constant 16 : index
    %c0_49 = arith.constant 0 : index
    %65 = vector.load %arg6[%c16_48, %c0_49] : memref<144x1536xf32, #tpu.memory_space<vmem>>, vector<16x768xf32>
    tpu.vector_store %arg6[%c16_48, %c0_49], %64 {strides = array<i32>} : memref<144x1536xf32, #tpu.memory_space<vmem>>, vector<16x768xf32>,
    %66 = vector.extract_strided_slice %63 {offsets = [0, 768], sizes = [16, 768], strides = [1, 1]} : vector<16x1536xf32> to vector<16x768xf32>
    %c48_50 = arith.constant 48 : index
    %c768_51 = arith.constant 768 : index
    %67 = vector.load %arg6[%c48_50, %c768_51] : memref<144x1536xf32, #tpu.memory_space<vmem>>, vector<16x768xf32>
    tpu.vector_store %arg6[%c48_50, %c768_51], %66 {strides = array<i32>} : memref<144x1536xf32, #tpu.memory_space<vmem>>, vector<16x768xf32>,
    %c64_52 = arith.constant 64 : index
    %c0_53 = arith.constant 0 : index
    %68 = vector.load %arg6[%c64_52, %c0_53] : memref<144x1536xf32, #tpu.memory_space<vmem>>, vector<16x1536xf32>
    tpu.vector_store %arg6[%c64_52, %c0_53], %50 {strides = array<i32>} : memref<144x1536xf32, #tpu.memory_space<vmem>>, vector<16x1536xf32>,
    %c1535_i32_54 = arith.constant 1535 : i32
    %69 = tpu.dynamic_rotate %50 by %c1535_i32_54 dim 1 : vector<16x1536xf32>, i32 -> vector<16x1536xf32>
    %70 = vector.extract_strided_slice %69 {offsets = [0, 0], sizes = [16, 768], strides = [1, 1]} : vector<16x1536xf32> to vector<16x768xf32>
    %c112_55 = arith.constant 112 : index
    %c0_56 = arith.constant 0 : index
    %71 = vector.load %arg6[%c112_55, %c0_56] : memref<144x1536xf32, #tpu.memory_space<vmem>>, vector<16x768xf32>
    tpu.vector_store %arg6[%c112_55, %c0_56], %70 {strides = array<i32>} : memref<144x1536xf32, #tpu.memory_space<vmem>>, vector<16x768xf32>,
    %72 = vector.extract_strided_slice %69 {offsets = [0, 768], sizes = [16, 768], strides = [1, 1]} : vector<16x1536xf32> to vector<16x768xf32>
    %c80_57 = arith.constant 80 : index
    %c768_58 = arith.constant 768 : index
    %73 = vector.load %arg6[%c80_57, %c768_58] : memref<144x1536xf32, #tpu.memory_space<vmem>>, vector<16x768xf32>
    tpu.vector_store %arg6[%c80_57, %c768_58], %72 {strides = array<i32>} : memref<144x1536xf32, #tpu.memory_space<vmem>>, vector<16x768xf32>,
    %c1519_i32_59 = arith.constant 1519 : i32
    %74 = tpu.dynamic_rotate %50 by %c1519_i32_59 dim 1 : vector<16x1536xf32>, i32 -> vector<16x1536xf32>
    %75 = vector.extract_strided_slice %74 {offsets = [0, 0], sizes = [16, 768], strides = [1, 1]} : vector<16x1536xf32> to vector<16x768xf32>
    %c32_60 = arith.constant 32 : index
    %c0_61 = arith.constant 0 : index
    %76 = vector.load %arg6[%c32_60, %c0_61] : memref<144x1536xf32, #tpu.memory_space<vmem>>, vector<16x768xf32>
    tpu.vector_store %arg6[%c32_60, %c0_61], %75 {strides = array<i32>} : memref<144x1536xf32, #tpu.memory_space<vmem>>, vector<16x768xf32>,
    %77 = vector.extract_strided_slice %74 {offsets = [0, 768], sizes = [16, 768], strides = [1, 1]} : vector<16x1536xf32> to vector<16x768xf32>
    %c96_62 = arith.constant 96 : index
    %c768_63 = arith.constant 768 : index
    %78 = vector.load %arg6[%c96_62, %c768_63] : memref<144x1536xf32, #tpu.memory_space<vmem>>, vector<16x768xf32>
    tpu.vector_store %arg6[%c96_62, %c768_63], %77 {strides = array<i32>} : memref<144x1536xf32, #tpu.memory_space<vmem>>, vector<16x768xf32>,
    %c1518_i32_64 = arith.constant 1518 : i32
    %79 = tpu.dynamic_rotate %50 by %c1518_i32_64 dim 1 : vector<16x1536xf32>, i32 -> vector<16x1536xf32>
    %80 = vector.extract_strided_slice %79 {offsets = [0, 0], sizes = [16, 768], strides = [1, 1]} : vector<16x1536xf32> to vector<16x768xf32>
    %c80_65 = arith.constant 80 : index
    %c0_66 = arith.constant 0 : index
    %81 = vector.load %arg6[%c80_65, %c0_66] : memref<144x1536xf32, #tpu.memory_space<vmem>>, vector<16x768xf32>
    tpu.vector_store %arg6[%c80_65, %c0_66], %80 {strides = array<i32>} : memref<144x1536xf32, #tpu.memory_space<vmem>>, vector<16x768xf32>,
    %82 = vector.extract_strided_slice %79 {offsets = [0, 768], sizes = [16, 768], strides = [1, 1]} : vector<16x1536xf32> to vector<16x768xf32>
    %c112_67 = arith.constant 112 : index
    %c768_68 = arith.constant 768 : index
    %83 = vector.load %arg6[%c112_67, %c768_68] : memref<144x1536xf32, #tpu.memory_space<vmem>>, vector<16x768xf32>
    tpu.vector_store %arg6[%c112_67, %c768_68], %82 {strides = array<i32>} : memref<144x1536xf32, #tpu.memory_space<vmem>>, vector<16x768xf32>,
    %c1517_i32_69 = arith.constant 1517 : i32
    %84 = tpu.dynamic_rotate %50 by %c1517_i32_69 dim 1 : vector<16x1536xf32>, i32 -> vector<16x1536xf32>
    %c128_70 = arith.constant 128 : index
    %c0_71 = arith.constant 0 : index
    %85 = vector.load %arg6[%c128_70, %c0_71] : memref<144x1536xf32, #tpu.memory_space<vmem>>, vector<16x1536xf32>
    tpu.vector_store %arg6[%c128_70, %c0_71], %84 {strides = array<i32>} : memref<144x1536xf32, #tpu.memory_space<vmem>>, vector<16x1536xf32>,
    %c1 = arith.constant 1 : index
    %c0_72 = arith.constant 0 : index
    %c0_73 = arith.constant 0 : index
    %86 = vector.load %arg3[%c1, %c0_72, %c0_73] : memref<4x16x144xf32, #tpu.memory_space<vmem>>, vector<1x16x144xf32>
    %87 = vector.shape_cast %86 : vector<1x16x144xf32> to vector<16x144xf32>
    %c0_74 = arith.constant 0 : index
    %c0_75 = arith.constant 0 : index
    %88 = vector.load %arg6[%c0_74, %c0_75] : memref<144x1536xf32, #tpu.memory_space<vmem>>, vector<144x1536xf32>
    %cst_76 = arith.constant dense<0.000000e+00> : vector<16x1536xf32>
    %89 = tpu.matmul %87, %88, %cst_76 {dimension_numbers = #tpu.dot_dimension_numbers<[1], [0], [0], [1], [0, 0, 1, 1], [], []>} : vector<16x144xf32>, vector<144x1536xf32>, vector<16x1536xf32> -> vector<16x1536xf32>
    %c1_77 = arith.constant 1 : index
    %c0_78 = arith.constant 0 : index
    %c0_79 = arith.constant 0 : index
    %90 = vector.load %arg4[%c1_77, %c0_78, %c0_79] : memref<4x16x1xf32, #tpu.memory_space<vmem>>, vector<1x16x1xf32>
    %91 = vector.shape_cast %90 : vector<1x16x1xf32> to vector<16x1xf32>
    %92 = vector.broadcast %91 : vector<16x1xf32> to vector<16x1536xf32>
    %93 = arith.addf %89, %92 : vector<16x1536xf32>
    %cst_80 = arith.constant 0.000000e+00 : f32
    %94 = vector.broadcast %cst_80 : f32 to vector<16x1536xf32>
    %95 = arith.maximumf %93, %94 : vector<16x1536xf32>
    %96 = vector.broadcast %0 : vector<1x1536xf32> to vector<16x1536xf32>
    %97 = arith.mulf %95, %96 : vector<16x1536xf32>
    %98 = vector.extract_strided_slice %97 {offsets = [0, 0], sizes = [8, 768], strides = [1, 1]} : vector<16x1536xf32> to vector<8x768xf32>
    %99 = vector.extract_strided_slice %97 {offsets = [0, 768], sizes = [8, 768], strides = [1, 1]} : vector<16x1536xf32> to vector<8x768xf32>
    %100 = tpu.concatenate %98, %99 in 0 : vector<8x768xf32>, vector<8x768xf32> -> vector<16x768xf32>
    %c19_i32_81 = arith.constant 19 : i32
    %101 = tpu.dynamic_rotate %100 by %c19_i32_81 dim 1 : vector<16x768xf32>, i32 -> vector<16x768xf32>
    %c0_82 = arith.constant 0 : index
    %c0_83 = arith.constant 0 : index
    %102 = vector.load %arg6[%c0_82, %c0_83] : memref<144x1536xf32, #tpu.memory_space<vmem>>, vector<16x768xf32>
    tpu.vector_store %arg6[%c0_82, %c0_83], %101 {strides = array<i32>} : memref<144x1536xf32, #tpu.memory_space<vmem>>, vector<16x768xf32>,
    %c18_i32_84 = arith.constant 18 : i32
    %103 = tpu.dynamic_rotate %100 by %c18_i32_84 dim 1 : vector<16x768xf32>, i32 -> vector<16x768xf32>
    %c16_85 = arith.constant 16 : index
    %c0_86 = arith.constant 0 : index
    %104 = vector.load %arg6[%c16_85, %c0_86] : memref<144x1536xf32, #tpu.memory_space<vmem>>, vector<16x768xf32>
    tpu.vector_store %arg6[%c16_85, %c0_86], %103 {strides = array<i32>} : memref<144x1536xf32, #tpu.memory_space<vmem>>, vector<16x768xf32>,
    %c17_i32_87 = arith.constant 17 : i32
    %105 = tpu.dynamic_rotate %100 by %c17_i32_87 dim 1 : vector<16x768xf32>, i32 -> vector<16x768xf32>
    %c32_88 = arith.constant 32 : index
    %c0_89 = arith.constant 0 : index
    %106 = vector.load %arg6[%c32_88, %c0_89] : memref<144x1536xf32, #tpu.memory_space<vmem>>, vector<16x768xf32>
    tpu.vector_store %arg6[%c32_88, %c0_89], %105 {strides = array<i32>} : memref<144x1536xf32, #tpu.memory_space<vmem>>, vector<16x768xf32>,
    %c1_i32_90 = arith.constant 1 : i32
    %107 = tpu.dynamic_rotate %100 by %c1_i32_90 dim 1 : vector<16x768xf32>, i32 -> vector<16x768xf32>
    %c48_91 = arith.constant 48 : index
    %c0_92 = arith.constant 0 : index
    %108 = vector.load %arg6[%c48_91, %c0_92] : memref<144x1536xf32, #tpu.memory_space<vmem>>, vector<16x768xf32>
    tpu.vector_store %arg6[%c48_91, %c0_92], %107 {strides = array<i32>} : memref<144x1536xf32, #tpu.memory_space<vmem>>, vector<16x768xf32>,
    %c64_93 = arith.constant 64 : index
    %c0_94 = arith.constant 0 : index
    %109 = vector.load %arg6[%c64_93, %c0_94] : memref<144x1536xf32, #tpu.memory_space<vmem>>, vector<16x768xf32>
    tpu.vector_store %arg6[%c64_93, %c0_94], %100 {strides = array<i32>} : memref<144x1536xf32, #tpu.memory_space<vmem>>, vector<16x768xf32>,
    %c767_i32 = arith.constant 767 : i32
    %110 = tpu.dynamic_rotate %100 by %c767_i32 dim 1 : vector<16x768xf32>, i32 -> vector<16x768xf32>
    %c80_95 = arith.constant 80 : index
    %c0_96 = arith.constant 0 : index
    %111 = vector.load %arg6[%c80_95, %c0_96] : memref<144x1536xf32, #tpu.memory_space<vmem>>, vector<16x768xf32>
    tpu.vector_store %arg6[%c80_95, %c0_96], %110 {strides = array<i32>} : memref<144x1536xf32, #tpu.memory_space<vmem>>, vector<16x768xf32>,
    %c751_i32 = arith.constant 751 : i32
    %112 = tpu.dynamic_rotate %100 by %c751_i32 dim 1 : vector<16x768xf32>, i32 -> vector<16x768xf32>
    %c96_97 = arith.constant 96 : index
    %c0_98 = arith.constant 0 : index
    %113 = vector.load %arg6[%c96_97, %c0_98] : memref<144x1536xf32, #tpu.memory_space<vmem>>, vector<16x768xf32>
    tpu.vector_store %arg6[%c96_97, %c0_98], %112 {strides = array<i32>} : memref<144x1536xf32, #tpu.memory_space<vmem>>, vector<16x768xf32>,
    %c750_i32 = arith.constant 750 : i32
    %114 = tpu.dynamic_rotate %100 by %c750_i32 dim 1 : vector<16x768xf32>, i32 -> vector<16x768xf32>
    %c112_99 = arith.constant 112 : index
    %c0_100 = arith.constant 0 : index
    %115 = vector.load %arg6[%c112_99, %c0_100] : memref<144x1536xf32, #tpu.memory_space<vmem>>, vector<16x768xf32>
    tpu.vector_store %arg6[%c112_99, %c0_100], %114 {strides = array<i32>} : memref<144x1536xf32, #tpu.memory_space<vmem>>, vector<16x768xf32>,
    %c749_i32 = arith.constant 749 : i32
    %116 = tpu.dynamic_rotate %100 by %c749_i32 dim 1 : vector<16x768xf32>, i32 -> vector<16x768xf32>
    %c128_101 = arith.constant 128 : index
    %c0_102 = arith.constant 0 : index
    %117 = vector.load %arg6[%c128_101, %c0_102] : memref<144x1536xf32, #tpu.memory_space<vmem>>, vector<16x768xf32>
    tpu.vector_store %arg6[%c128_101, %c0_102], %116 {strides = array<i32>} : memref<144x1536xf32, #tpu.memory_space<vmem>>, vector<16x768xf32>,
    %c2 = arith.constant 2 : index
    %c0_103 = arith.constant 0 : index
    %c0_104 = arith.constant 0 : index
    %118 = vector.load %arg3[%c2, %c0_103, %c0_104] : memref<4x16x144xf32, #tpu.memory_space<vmem>>, vector<1x16x144xf32>
    %119 = vector.shape_cast %118 : vector<1x16x144xf32> to vector<16x144xf32>
    %c0_105 = arith.constant 0 : index
    %c0_106 = arith.constant 0 : index
    %120 = vector.load %arg6[%c0_105, %c0_106] : memref<144x1536xf32, #tpu.memory_space<vmem>>, vector<144x768xf32>
    %cst_107 = arith.constant dense<0.000000e+00> : vector<16x768xf32>
    %121 = tpu.matmul %119, %120, %cst_107 {dimension_numbers = #tpu.dot_dimension_numbers<[1], [0], [0], [1], [0, 0, 1, 1], [], []>} : vector<16x144xf32>, vector<144x768xf32>, vector<16x768xf32> -> vector<16x768xf32>
    %c2_108 = arith.constant 2 : index
    %c0_109 = arith.constant 0 : index
    %c0_110 = arith.constant 0 : index
    %122 = vector.load %arg4[%c2_108, %c0_109, %c0_110] : memref<4x16x1xf32, #tpu.memory_space<vmem>>, vector<1x16x1xf32>
    %123 = vector.shape_cast %122 : vector<1x16x1xf32> to vector<16x1xf32>
    %124 = vector.broadcast %123 : vector<16x1xf32> to vector<16x768xf32>
    %125 = arith.addf %121, %124 : vector<16x768xf32>
    %cst_111 = arith.constant 0.000000e+00 : f32
    %126 = vector.broadcast %cst_111 : f32 to vector<16x768xf32>
    %127 = arith.maximumf %125, %126 : vector<16x768xf32>
    %128 = vector.broadcast %1 : vector<1x768xf32> to vector<16x768xf32>
    %129 = arith.mulf %127, %128 : vector<16x768xf32>
    %c19_i32_112 = arith.constant 19 : i32
    %130 = tpu.dynamic_rotate %129 by %c19_i32_112 dim 1 : vector<16x768xf32>, i32 -> vector<16x768xf32>
    %c0_113 = arith.constant 0 : index
    %c0_114 = arith.constant 0 : index
    %131 = vector.load %arg6[%c0_113, %c0_114] : memref<144x1536xf32, #tpu.memory_space<vmem>>, vector<16x768xf32>
    tpu.vector_store %arg6[%c0_113, %c0_114], %130 {strides = array<i32>} : memref<144x1536xf32, #tpu.memory_space<vmem>>, vector<16x768xf32>,
    %c18_i32_115 = arith.constant 18 : i32
    %132 = tpu.dynamic_rotate %129 by %c18_i32_115 dim 1 : vector<16x768xf32>, i32 -> vector<16x768xf32>
    %c16_116 = arith.constant 16 : index
    %c0_117 = arith.constant 0 : index
    %133 = vector.load %arg6[%c16_116, %c0_117] : memref<144x1536xf32, #tpu.memory_space<vmem>>, vector<16x768xf32>
    tpu.vector_store %arg6[%c16_116, %c0_117], %132 {strides = array<i32>} : memref<144x1536xf32, #tpu.memory_space<vmem>>, vector<16x768xf32>,
    %c17_i32_118 = arith.constant 17 : i32
    %134 = tpu.dynamic_rotate %129 by %c17_i32_118 dim 1 : vector<16x768xf32>, i32 -> vector<16x768xf32>
    %c32_119 = arith.constant 32 : index
    %c0_120 = arith.constant 0 : index
    %135 = vector.load %arg6[%c32_119, %c0_120] : memref<144x1536xf32, #tpu.memory_space<vmem>>, vector<16x768xf32>
    tpu.vector_store %arg6[%c32_119, %c0_120], %134 {strides = array<i32>} : memref<144x1536xf32, #tpu.memory_space<vmem>>, vector<16x768xf32>,
    %c1_i32_121 = arith.constant 1 : i32
    %136 = tpu.dynamic_rotate %129 by %c1_i32_121 dim 1 : vector<16x768xf32>, i32 -> vector<16x768xf32>
    %c48_122 = arith.constant 48 : index
    %c0_123 = arith.constant 0 : index
    %137 = vector.load %arg6[%c48_122, %c0_123] : memref<144x1536xf32, #tpu.memory_space<vmem>>, vector<16x768xf32>
    tpu.vector_store %arg6[%c48_122, %c0_123], %136 {strides = array<i32>} : memref<144x1536xf32, #tpu.memory_space<vmem>>, vector<16x768xf32>,
    %c64_124 = arith.constant 64 : index
    %c0_125 = arith.constant 0 : index
    %138 = vector.load %arg6[%c64_124, %c0_125] : memref<144x1536xf32, #tpu.memory_space<vmem>>, vector<16x768xf32>
    tpu.vector_store %arg6[%c64_124, %c0_125], %129 {strides = array<i32>} : memref<144x1536xf32, #tpu.memory_space<vmem>>, vector<16x768xf32>,
    %c767_i32_126 = arith.constant 767 : i32
    %139 = tpu.dynamic_rotate %129 by %c767_i32_126 dim 1 : vector<16x768xf32>, i32 -> vector<16x768xf32>
    %c80_127 = arith.constant 80 : index
    %c0_128 = arith.constant 0 : index
    %140 = vector.load %arg6[%c80_127, %c0_128] : memref<144x1536xf32, #tpu.memory_space<vmem>>, vector<16x768xf32>
    tpu.vector_store %arg6[%c80_127, %c0_128], %139 {strides = array<i32>} : memref<144x1536xf32, #tpu.memory_space<vmem>>, vector<16x768xf32>,
    %c751_i32_129 = arith.constant 751 : i32
    %141 = tpu.dynamic_rotate %129 by %c751_i32_129 dim 1 : vector<16x768xf32>, i32 -> vector<16x768xf32>
    %c96_130 = arith.constant 96 : index
    %c0_131 = arith.constant 0 : index
    %142 = vector.load %arg6[%c96_130, %c0_131] : memref<144x1536xf32, #tpu.memory_space<vmem>>, vector<16x768xf32>
    tpu.vector_store %arg6[%c96_130, %c0_131], %141 {strides = array<i32>} : memref<144x1536xf32, #tpu.memory_space<vmem>>, vector<16x768xf32>,
    %c750_i32_132 = arith.constant 750 : i32
    %143 = tpu.dynamic_rotate %129 by %c750_i32_132 dim 1 : vector<16x768xf32>, i32 -> vector<16x768xf32>
    %c112_133 = arith.constant 112 : index
    %c0_134 = arith.constant 0 : index
    %144 = vector.load %arg6[%c112_133, %c0_134] : memref<144x1536xf32, #tpu.memory_space<vmem>>, vector<16x768xf32>
    tpu.vector_store %arg6[%c112_133, %c0_134], %143 {strides = array<i32>} : memref<144x1536xf32, #tpu.memory_space<vmem>>, vector<16x768xf32>,
    %c749_i32_135 = arith.constant 749 : i32
    %145 = tpu.dynamic_rotate %129 by %c749_i32_135 dim 1 : vector<16x768xf32>, i32 -> vector<16x768xf32>
    %c128_136 = arith.constant 128 : index
    %c0_137 = arith.constant 0 : index
    %146 = vector.load %arg6[%c128_136, %c0_137] : memref<144x1536xf32, #tpu.memory_space<vmem>>, vector<16x768xf32>
    tpu.vector_store %arg6[%c128_136, %c0_137], %145 {strides = array<i32>} : memref<144x1536xf32, #tpu.memory_space<vmem>>, vector<16x768xf32>,
    %c3 = arith.constant 3 : index
    %c0_138 = arith.constant 0 : index
    %c0_139 = arith.constant 0 : index
    %147 = vector.load %arg3[%c3, %c0_138, %c0_139] : memref<4x16x144xf32, #tpu.memory_space<vmem>>, vector<1x16x144xf32>
    %148 = vector.shape_cast %147 : vector<1x16x144xf32> to vector<16x144xf32>
    %c0_140 = arith.constant 0 : index
    %c0_141 = arith.constant 0 : index
    %149 = vector.load %arg6[%c0_140, %c0_141] : memref<144x1536xf32, #tpu.memory_space<vmem>>, vector<144x768xf32>
    %cst_142 = arith.constant dense<0.000000e+00> : vector<16x768xf32>
    %150 = tpu.matmul %148, %149, %cst_142 {dimension_numbers = #tpu.dot_dimension_numbers<[1], [0], [0], [1], [0, 0, 1, 1], [], []>} : vector<16x144xf32>, vector<144x768xf32>, vector<16x768xf32> -> vector<16x768xf32>
    %c3_143 = arith.constant 3 : index
    %c0_144 = arith.constant 0 : index
    %c0_145 = arith.constant 0 : index
    %151 = vector.load %arg4[%c3_143, %c0_144, %c0_145] : memref<4x16x1xf32, #tpu.memory_space<vmem>>, vector<1x16x1xf32>
    %152 = vector.shape_cast %151 : vector<1x16x1xf32> to vector<16x1xf32>
    %153 = vector.broadcast %152 : vector<16x1xf32> to vector<16x768xf32>
    %154 = arith.addf %150, %153 : vector<16x768xf32>
    %c0_146 = arith.constant 0 : index
    %c0_147 = arith.constant 0 : index
    %c0_148 = arith.constant 0 : index
    %155 = vector.load %arg5[%c0_146, %c0_147, %c0_148] : memref<1x16x768xf32, #tpu.memory_space<vmem>>, vector<1x16x768xf32>
    %156 = vector.shape_cast %155 : vector<1x16x768xf32> to vector<16x768xf32>
    %157 = vector.shape_cast %154 : vector<16x768xf32> to vector<1x16x768xf32>
    tpu.vector_store %arg5[%c0_146, %c0_147, %c0_148], %157 {strides = array<i32>} : memref<1x16x768xf32, #tpu.memory_space<vmem>>, vector<1x16x768xf32>,
    return
  }
  func.func @transform_0(%arg0: i32) -> (i32, i32, i32) {
    %c0_i32 = arith.constant 0 : i32
    %c0_i32_0 = arith.constant 0 : i32
    %c0_i32_1 = arith.constant 0 : i32
    return %arg0, %c0_i32, %c0_i32_0 : i32, i32, i32
  }
  func.func @transform_1(%arg0: i32) -> (i32, i32) {
    %c0_i32 = arith.constant 0 : i32
    %c0_i32_0 = arith.constant 0 : i32
    %c0_i32_1 = arith.constant 0 : i32
    return %c0_i32, %c0_i32_0 : i32, i32
  }
  func.func @transform_2(%arg0: i32) -> (i32, i32, i32) {
    %c0_i32 = arith.constant 0 : i32
    %c0_i32_0 = arith.constant 0 : i32
    %c0_i32_1 = arith.constant 0 : i32
    %c0_i32_2 = arith.constant 0 : i32
    return %c0_i32, %c0_i32_0, %c0_i32_1 : i32, i32, i32
  }
  func.func @transform_3(%arg0: i32) -> (i32, i32, i32) {
    %c0_i32 = arith.constant 0 : i32
    %c0_i32_0 = arith.constant 0 : i32
    %c0_i32_1 = arith.constant 0 : i32
    %c0_i32_2 = arith.constant 0 : i32
    return %c0_i32, %c0_i32_0, %c0_i32_1 : i32, i32, i32
  }
  func.func @transform_4(%arg0: i32) -> (i32, i32, i32) {
    %c0_i32 = arith.constant 0 : i32
    %c0_i32_0 = arith.constant 0 : i32
    %c0_i32_1 = arith.constant 0 : i32
    return %arg0, %c0_i32, %c0_i32_0 : i32, i32, i32
  }
}

</mosaic_0001>

<llo_original>
// kernel: squeeze.1
$region0: #{squeeze.1}
  %s0 = inlined_call_operand.vmem [shape: f32[768], index: 0, kind: input, shape index: {}]
  %s1 = inlined_call_operand.vmem [shape: f32[2,384], index: 1, kind: output, shape index: {}]
  $region1: #{squeeze.1} parent=0
    #allocation0 [shape = 'u8[12288]{0}', space=vmem, size = 0x3000, scoped, tag = 'scoped mem for output reshape']
    %v2 = vld [vmem:[%s0] sm:$0x3f]
    %3 = vst [vmem:[#allocation0] ss:$8 sm:$0x7] %v2
    %s4 = scalar_lea.vmem [#allocation0], 4294967273
    %5 = vst [vmem:[%s4] ss:$8 sm:$0x38] %v2
    %s7 = sshll.u32 1, 2
    %s8 = ssub.s32 %s7, 1
    %v10 = vld [vmem:[#allocation0] sm:%s8]
    %s11 = sshll.u32 1, 2
    %s12 = ssub.s32 %s11, 1
    %13 = vst [vmem:[%s1] sm:%s12] %v10
    %s14 = scalar_lea.vmem [#allocation0], 8
    %v15 = vld [vmem:[%s14] sm:%s8]
    %s16 = sshll.u32 1, 2
    %s17 = ssub.s32 %s16, 1
    %s18 = scalar_lea.vmem %s1, 2
    %19 = vst [vmem:[%s18] sm:%s17] %v15
    %s20 = scalar_lea.vmem [#allocation0], 16
    %v21 = vld [vmem:[%s20] sm:%s8]
    %s22 = sshll.u32 1, 2
    %s23 = ssub.s32 %s22, 1
    %s24 = smul.addr 2, 2
    %s25 = scalar_lea.vmem %s1, %s24
    %26 = vst [vmem:[%s25] sm:%s23] %v21

// kernel: feed_forward_pallas.1
$region0: #{feed_forward_pallas.1}
  #allocation0 [shape = 'u32[]', space=smem, size = 0x4, offset = 0x4, fixed_abs, tag = 'smem constant byte address 0x4 - core index']
  #allocation1 [shape = 'u32[144,128]{1,0:T(1,128)}', space=vmem, size = 0x12000, scoped, tag = 'internal scratch']
  #allocation2 [shape = 'f32[144,1536]{1,0:T(8,128)}', space=vmem, size = 0xd8000, scoped, tag = 'scratch operand']
  %s0 = inlined_call_operand.vmem [shape: f32[1,16,1536], index: 0, kind: input, shape index: {}]
  %s1 = inlined_call_operand.vmem [shape: f32[1,1536], index: 1, kind: input, shape index: {}]
  %s2 = inlined_call_operand.vmem [shape: f32[4,16,144], index: 2, kind: input, shape index: {}]
  %s3 = inlined_call_operand.vmem [shape: f32[4,16,1], index: 3, kind: input, shape index: {}]
  %s4 = inlined_call_operand.vmem [shape: f32[1,16,768], index: 4, kind: output, shape index: {}]
  %s5 = sld [smem:[#allocation0]]
  $region26: #{feed_forward_pallas.1} parent=0
    _
  %s7 = ssub.s32 1, %s5
  %s8 = scalar_select 0, %s7, %s5
  // Predicated region
  $region2: #{feed_forward_pallas.1} parent=0 // pred_check
    _
  $region3: #{feed_forward_pallas.1} parent=0 // pred_check_branch
    %10 = sbr.rel (0) target = $region5
  $region4: #{feed_forward_pallas.1} parent=0 // pred_region
    _
  $region5: #{feed_forward_pallas.1} parent=0 // pred_fallthru
    _
  // Predicated region
  $region6: #{feed_forward_pallas.1} parent=0 // pred_check
    _
  $region7: #{feed_forward_pallas.1} parent=0 // pred_check_branch
    %12 = sbr.rel (0) target = $region9
  $region8: #{feed_forward_pallas.1} parent=0 // pred_region
    _
  $region9: #{feed_forward_pallas.1} parent=0 // pred_fallthru
    _
  // Predicated region
  $region10: #{feed_forward_pallas.1} parent=0 // pred_check
    _
  $region11: #{feed_forward_pallas.1} parent=0 // pred_check_branch
    %14 = sbr.rel (0) target = $region13
  $region12: #{feed_forward_pallas.1} parent=0 // pred_region
    _
  $region13: #{feed_forward_pallas.1} parent=0 // pred_fallthru
    _
  // Predicated region
  $region14: #{feed_forward_pallas.1} parent=0 // pred_check
    _
  $region15: #{feed_forward_pallas.1} parent=0 // pred_check_branch
    %16 = sbr.rel (0) target = $region17
  $region16: #{feed_forward_pallas.1} parent=0 // pred_region
    _
  $region17: #{feed_forward_pallas.1} parent=0 // pred_fallthru
    _
  %v17 = vld [vmem:[%s1] sm:$0xff]
  %v18 = vld [vmem:[%s1 + $0x8] sm:$0xf]
  %v19 = vld [vmem:[%s0] sm:$0xff]
  %v20 = vld [vmem:[%s0 + $0x8] sm:$0xff]
  %v21 = vld [vmem:[%s0 + $0x10] sm:$0xff]
  %v22 = vld [vmem:[%s0 + $0x18] sm:$0xff]
  %v23 = vld [vmem:[%s0 + $0x20] sm:$0xff]
  %v24 = vld [vmem:[%s0 + $0x28] sm:$0xff]
  %v25 = vld [vmem:[%s0 + $0x30] sm:$0xff]
  %v26 = vld [vmem:[%s0 + $0x38] sm:$0xff]
  %v27 = vld [vmem:[%s0 + $0x40] sm:$0xff]
  %v28 = vld [vmem:[%s0 + $0x48] sm:$0xff]
  %v29 = vld [vmem:[%s0 + $0x50] sm:$0xff]
  %v30 = vld [vmem:[%s0 + $0x58] sm:$0xff]
  %v31 = vld [vmem:[%s0 + $0x60] sm:$0xff]
  %v32 = vld [vmem:[%s0 + $0x68] sm:$0xff]
  %v33 = vld [vmem:[%s0 + $0x70] sm:$0xff]
  %v34 = vld [vmem:[%s0 + $0x78] sm:$0xff]
  %v35 = vld [vmem:[%s0 + $0x80] sm:$0xff]
  %v36 = vld [vmem:[%s0 + $0x88] sm:$0xff]
  %v37 = vld [vmem:[%s0 + $0x90] sm:$0xff]
  %v38 = vld [vmem:[%s0 + $0x98] sm:$0xff]
  %v39 = vld [vmem:[%s0 + $0xa0] sm:$0xff]
  %v40 = vld [vmem:[%s0 + $0xa8] sm:$0xff]
  %v41 = vld [vmem:[%s0 + $0xb0] sm:$0xff]
  %v42 = vld [vmem:[%s0 + $0xb8] sm:$0xff]
  %43 = vrot.lane.b32.xlu0 %v19, 19
  %v44 = vpop.permute.xlu0 %43
  %45 = vrot.lane.b32.xlu0 %v31, 19
  %v46 = vpop.permute.xlu0 %45
  %47 = vrot.lane.b32.xlu0 %v20, 19
  %v48 = vpop.permute.xlu0 %47
  %49 = vrot.lane.b32.xlu0 %v32, 19
  %v50 = vpop.permute.xlu0 %49
  %51 = vrot.lane.b32.xlu0 %v21, 19
  %v52 = vpop.permute.xlu0 %51
  %53 = vrot.lane.b32.xlu0 %v33, 19
  %v54 = vpop.permute.xlu0 %53
  %55 = vrot.lane.b32.xlu0 %v22, 19
  %v56 = vpop.permute.xlu0 %55
  %57 = vrot.lane.b32.xlu0 %v34, 19
  %v58 = vpop.permute.xlu0 %57
  %59 = vrot.lane.b32.xlu0 %v23, 19
  %v60 = vpop.permute.xlu0 %59
  %61 = vrot.lane.b32.xlu0 %v35, 19
  %v62 = vpop.permute.xlu0 %61
  %63 = vrot.lane.b32.xlu0 %v24, 19
  %v64 = vpop.permute.xlu0 %63
  %65 = vrot.lane.b32.xlu0 %v36, 19
  %v66 = vpop.permute.xlu0 %65
  %67 = vrot.lane.b32.xlu0 %v25, 19
  %v68 = vpop.permute.xlu0 %67
  %69 = vrot.lane.b32.xlu0 %v37, 19
  %v70 = vpop.permute.xlu0 %69
  %71 = vrot.lane.b32.xlu0 %v26, 19
  %v72 = vpop.permute.xlu0 %71
  %73 = vrot.lane.b32.xlu0 %v38, 19
  %v74 = vpop.permute.xlu0 %73
  %75 = vrot.lane.b32.xlu0 %v27, 19
  %v76 = vpop.permute.xlu0 %75
  %77 = vrot.lane.b32.xlu0 %v39, 19
  %v78 = vpop.permute.xlu0 %77
  %79 = vrot.lane.b32.xlu0 %v28, 19
  %v80 = vpop.permute.xlu0 %79
  %81 = vrot.lane.b32.xlu0 %v40, 19
  %v82 = vpop.permute.xlu0 %81
  %83 = vrot.lane.b32.xlu0 %v29, 19
  %v84 = vpop.permute.xlu0 %83
  %85 = vrot.lane.b32.xlu0 %v41, 19
  %v86 = vpop.permute.xlu0 %85
  %87 = vrot.lane.b32.xlu0 %v30, 19
  %v88 = vpop.permute.xlu0 %87
  %89 = vrot.lane.b32.xlu0 %v42, 19
  %v90 = vpop.permute.xlu0 %89
  %v91 = vlaneseq
  %v92 = vand.u32 %v91, 127
  %vm93 = vcmp.lt.s32.totalorder %v92, 19
  %v94 = vsel %vm93, %v84, %v88
  %v95 = vsel %vm93, %v86, %v90
  %v96 = vsel %vm93, %v80, %v84
  %v97 = vsel %vm93, %v82, %v86
  %v98 = vsel %vm93, %v76, %v80
  %v99 = vsel %vm93, %v78, %v82
  %v100 = vsel %vm93, %v72, %v76
  %v101 = vsel %vm93, %v74, %v78
  %v102 = vsel %vm93, %v68, %v72
  %v103 = vsel %vm93, %v70, %v74
  %v104 = vsel %vm93, %v64, %v68
  %v105 = vsel %vm93, %v66, %v70
  %v106 = vsel %vm93, %v60, %v64
  %v107 = vsel %vm93, %v62, %v66
  %v108 = vsel %vm93, %v56, %v60
  %v109 = vsel %vm93, %v58, %v62
  %v110 = vsel %vm93, %v52, %v56
  %v111 = vsel %vm93, %v54, %v58
  %v112 = vsel %vm93, %v48, %v52
  %v113 = vsel %vm93, %v50, %v54
  %v114 = vsel %vm93, %v44, %v48
  %v115 = vsel %vm93, %v46, %v50
  %v116 = vsel %vm93, %v88, %v44
  %v117 = vsel %vm93, %v90, %v46
  %118 = vst [vmem:[#allocation2] sm:$0xff] %v116
  %119 = vst [vmem:[#allocation2 + $0x8] sm:$0xff] %v114
  %120 = vst [vmem:[#allocation2 + $0x10] sm:$0xff] %v112
  %121 = vst [vmem:[#allocation2 + $0x18] sm:$0xff] %v110
  %122 = vst [vmem:[#allocation2 + $0x20] sm:$0xff] %v108
  %123 = vst [vmem:[#allocation2 + $0x28] sm:$0xff] %v106
  %124 = vst [vmem:[#allocation2 + $0x30] sm:$0xff] %v104
  %125 = vst [vmem:[#allocation2 + $0x38] sm:$0xff] %v102
  %126 = vst [vmem:[#allocation2 + $0x40] sm:$0xff] %v100
  %127 = vst [vmem:[#allocation2 + $0x48] sm:$0xff] %v98
  %128 = vst [vmem:[#allocation2 + $0x50] sm:$0xff] %v96
  %129 = vst [vmem:[#allocation2 + $0x58] sm:$0xff] %v94
  %130 = vst [vmem:[#allocation2 + $0x60] sm:$0xff] %v117
  %131 = vst [vmem:[#allocation2 + $0x68] sm:$0xff] %v115
  %132 = vst [vmem:[#allocation2 + $0x70] sm:$0xff] %v113
  %133 = vst [vmem:[#allocation2 + $0x78] sm:$0xff] %v111
  %134 = vst [vmem:[#allocation2 + $0x80] sm:$0xff] %v109
  %135 = vst [vmem:[#allocation2 + $0x88] sm:$0xff] %v107
  %136 = vst [vmem:[#allocation2 + $0x90] sm:$0xff] %v105
  %137 = vst [vmem:[#allocation2 + $0x98] sm:$0xff] %v103
  %138 = vst [vmem:[#allocation2 + $0xa0] sm:$0xff] %v101
  %139 = vst [vmem:[#allocation2 + $0xa8] sm:$0xff] %v99
  %140 = vst [vmem:[#allocation2 + $0xb0] sm:$0xff] %v97
  %141 = vst [vmem:[#allocation2 + $0xb8] sm:$0xff] %v95
  %142 = vrot.lane.b32.xlu0 %v19, 18
  %v143 = vpop.permute.xlu0 %142
  %144 = vrot.lane.b32.xlu0 %v31, 18
  %v145 = vpop.permute.xlu0 %144
  %146 = vrot.lane.b32.xlu0 %v20, 18
  %v147 = vpop.permute.xlu0 %146
  %148 = vrot.lane.b32.xlu0 %v32, 18
  %v149 = vpop.permute.xlu0 %148
  %150 = vrot.lane.b32.xlu0 %v21, 18
  %v151 = vpop.permute.xlu0 %150
  %152 = vrot.lane.b32.xlu0 %v33, 18
  %v153 = vpop.permute.xlu0 %152
  %154 = vrot.lane.b32.xlu0 %v22, 18
  %v155 = vpop.permute.xlu0 %154
  %156 = vrot.lane.b32.xlu0 %v34, 18
  %v157 = vpop.permute.xlu0 %156
  %158 = vrot.lane.b32.xlu0 %v23, 18
  %v159 = vpop.permute.xlu0 %158
  %160 = vrot.lane.b32.xlu0 %v35, 18
  %v161 = vpop.permute.xlu0 %160
  %162 = vrot.lane.b32.xlu0 %v24, 18
  %v163 = vpop.permute.xlu0 %162
  %164 = vrot.lane.b32.xlu0 %v36, 18
  %v165 = vpop.permute.xlu0 %164
  %166 = vrot.lane.b32.xlu0 %v25, 18
  %v167 = vpop.permute.xlu0 %166
  %168 = vrot.lane.b32.xlu0 %v37, 18
  %v169 = vpop.permute.xlu0 %168
  %170 = vrot.lane.b32.xlu0 %v26, 18
  %v171 = vpop.permute.xlu0 %170
  %172 = vrot.lane.b32.xlu0 %v38, 18
  %v173 = vpop.permute.xlu0 %172
  %174 = vrot.lane.b32.xlu0 %v27, 18
  %v175 = vpop.permute.xlu0 %174
  %176 = vrot.lane.b32.xlu0 %v39, 18
  %v177 = vpop.permute.xlu0 %176
  %178 = vrot.lane.b32.xlu0 %v28, 18
  %v179 = vpop.permute.xlu0 %178
  %180 = vrot.lane.b32.xlu0 %v40, 18
  %v181 = vpop.permute.xlu0 %180
  %182 = vrot.lane.b32.xlu0 %v29, 18
  %v183 = vpop.permute.xlu0 %182
  %184 = vrot.lane.b32.xlu0 %v41, 18
  %v185 = vpop.permute.xlu0 %184
  %186 = vrot.lane.b32.xlu0 %v30, 18
  %v187 = vpop.permute.xlu0 %186
  %188 = vrot.lane.b32.xlu0 %v42, 18
  %v189 = vpop.permute.xlu0 %188
  %vm190 = vcmp.lt.s32.totalorder %v92, 18
  %v191 = vsel %vm190, %v183, %v187
  %v192 = vsel %vm190, %v185, %v189
  %v193 = vsel %vm190, %v179, %v183
  %v194 = vsel %vm190, %v181, %v185
  %v195 = vsel %vm190, %v175, %v179
  %v196 = vsel %vm190, %v177, %v181
  %v197 = vsel %vm190, %v171, %v175
  %v198 = vsel %vm190, %v173, %v177
  %v199 = vsel %vm190, %v167, %v171
  %v200 = vsel %vm190, %v169, %v173
  %v201 = vsel %vm190, %v163, %v167
  %v202 = vsel %vm190, %v165, %v169
  %v203 = vsel %vm190, %v159, %v163
  %v204 = vsel %vm190, %v161, %v165
  %v205 = vsel %vm190, %v155, %v159
  %v206 = vsel %vm190, %v157, %v161
  %v207 = vsel %vm190, %v151, %v155
  %v208 = vsel %vm190, %v153, %v157
  %v209 = vsel %vm190, %v147, %v151
  %v210 = vsel %vm190, %v149, %v153
  %v211 = vsel %vm190, %v143, %v147
  %v212 = vsel %vm190, %v145, %v149
  %v213 = vsel %vm190, %v187, %v143
  %v214 = vsel %vm190, %v189, %v145
  %215 = vst [vmem:[#allocation2 + $0x240] sm:$0xff] %v213
  %216 = vst [vmem:[#allocation2 + $0x248] sm:$0xff] %v211
  %217 = vst [vmem:[#allocation2 + $0x250] sm:$0xff] %v209
  %218 = vst [vmem:[#allocation2 + $0x258] sm:$0xff] %v207
  %219 = vst [vmem:[#allocation2 + $0x260] sm:$0xff] %v205
  %220 = vst [vmem:[#allocation2 + $0x268] sm:$0xff] %v203
  %221 = vst [vmem:[#allocation2 + $0x2a0] sm:$0xff] %v214
  %222 = vst [vmem:[#allocation2 + $0x2a8] sm:$0xff] %v212
  %223 = vst [vmem:[#allocation2 + $0x2b0] sm:$0xff] %v210
  %224 = vst [vmem:[#allocation2 + $0x2b8] sm:$0xff] %v208
  %225 = vst [vmem:[#allocation2 + $0x2c0] sm:$0xff] %v206
  %226 = vst [vmem:[#allocation2 + $0x2c8] sm:$0xff] %v204
  %227 = vst [vmem:[#allocation2 + $0xf0] sm:$0xff] %v201
  %228 = vst [vmem:[#allocation2 + $0xf8] sm:$0xff] %v199
  %229 = vst [vmem:[#allocation2 + $0x100] sm:$0xff] %v197
  %230 = vst [vmem:[#allocation2 + $0x108] sm:$0xff] %v195
  %231 = vst [vmem:[#allocation2 + $0x110] sm:$0xff] %v193
  %232 = vst [vmem:[#allocation2 + $0x118] sm:$0xff] %v191
  %233 = vst [vmem:[#allocation2 + $0x150] sm:$0xff] %v202
  %234 = vst [vmem:[#allocation2 + $0x158] sm:$0xff] %v200
  %235 = vst [vmem:[#allocation2 + $0x160] sm:$0xff] %v198
  %236 = vst [vmem:[#allocation2 + $0x168] sm:$0xff] %v196
  %237 = vst [vmem:[#allocation2 + $0x170] sm:$0xff] %v194
  %238 = vst [vmem:[#allocation2 + $0x178] sm:$0xff] %v192
  %239 = vrot.lane.b32.xlu0 %v19, 17
  %v240 = vpop.permute.xlu0 %239
  %241 = vrot.lane.b32.xlu0 %v31, 17
  %v242 = vpop.permute.xlu0 %241
  %243 = vrot.lane.b32.xlu0 %v20, 17
  %v244 = vpop.permute.xlu0 %243
  %245 = vrot.lane.b32.xlu0 %v32, 17
  %v246 = vpop.permute.xlu0 %245
  %247 = vrot.lane.b32.xlu0 %v21, 17
  %v248 = vpop.permute.xlu0 %247
  %249 = vrot.lane.b32.xlu0 %v33, 17
  %v250 = vpop.permute.xlu0 %249
  %251 = vrot.lane.b32.xlu0 %v22, 17
  %v252 = vpop.permute.xlu0 %251
  %253 = vrot.lane.b32.xlu0 %v34, 17
  %v254 = vpop.permute.xlu0 %253
  %255 = vrot.lane.b32.xlu0 %v23, 17
  %v256 = vpop.permute.xlu0 %255
  %257 = vrot.lane.b32.xlu0 %v35, 17
  %v258 = vpop.permute.xlu0 %257
  %259 = vrot.lane.b32.xlu0 %v24, 17
  %v260 = vpop.permute.xlu0 %259
  %261 = vrot.lane.b32.xlu0 %v36, 17
  %v262 = vpop.permute.xlu0 %261
  %263 = vrot.lane.b32.xlu0 %v25, 17
  %v264 = vpop.permute.xlu0 %263
  %265 = vrot.lane.b32.xlu0 %v37, 17
  %v266 = vpop.permute.xlu0 %265
  %267 = vrot.lane.b32.xlu0 %v26, 17
  %v268 = vpop.permute.xlu0 %267
  %269 = vrot.lane.b32.xlu0 %v38, 17
  %v270 = vpop.permute.xlu0 %269
  %271 = vrot.lane.b32.xlu0 %v27, 17
  %v272 = vpop.permute.xlu0 %271
  %273 = vrot.lane.b32.xlu0 %v39, 17
  %v274 = vpop.permute.xlu0 %273
  %275 = vrot.lane.b32.xlu0 %v28, 17
  %v276 = vpop.permute.xlu0 %275
  %277 = vrot.lane.b32.xlu0 %v40, 17
  %v278 = vpop.permute.xlu0 %277
  %279 = vrot.lane.b32.xlu0 %v29, 17
  %v280 = vpop.permute.xlu0 %279
  %281 = vrot.lane.b32.xlu0 %v41, 17
  %v282 = vpop.permute.xlu0 %281
  %283 = vrot.lane.b32.xlu0 %v30, 17
  %v284 = vpop.permute.xlu0 %283
  %285 = vrot.lane.b32.xlu0 %v42, 17
  %v286 = vpop.permute.xlu0 %285
  %vm287 = vcmp.lt.s32.totalorder %v92, 17
  %v288 = vsel %vm287, %v280, %v284
  %v289 = vsel %vm287, %v282, %v286
  %v290 = vsel %vm287, %v276, %v280
  %v291 = vsel %vm287, %v278, %v282
  %v292 = vsel %vm287, %v272, %v276
  %v293 = vsel %vm287, %v274, %v278
  %v294 = vsel %vm287, %v268, %v272
  %v295 = vsel %vm287, %v270, %v274
  %v296 = vsel %vm287, %v264, %v268
  %v297 = vsel %vm287, %v266, %v270
  %v298 = vsel %vm287, %v260, %v264
  %v299 = vsel %vm287, %v262, %v266
  %v300 = vsel %vm287, %v256, %v260
  %v301 = vsel %vm287, %v258, %v262
  %v302 = vsel %vm287, %v252, %v256
  %v303 = vsel %vm287, %v254, %v258
  %v304 = vsel %vm287, %v248, %v252
  %v305 = vsel %vm287, %v250, %v254
  %v306 = vsel %vm287, %v244, %v248
  %v307 = vsel %vm287, %v246, %v250
  %v308 = vsel %vm287, %v240, %v244
  %v309 = vsel %vm287, %v242, %v246
  %v310 = vsel %vm287, %v284, %v240
  %v311 = vsel %vm287, %v286, %v242
  %312 = vst [vmem:[#allocation2 + $0x480] sm:$0xff] %v310
  %313 = vst [vmem:[#allocation2 + $0x488] sm:$0xff] %v308
  %314 = vst [vmem:[#allocation2 + $0x490] sm:$0xff] %v306
  %315 = vst [vmem:[#allocation2 + $0x498] sm:$0xff] %v304
  %316 = vst [vmem:[#allocation2 + $0x4a0] sm:$0xff] %v302
  %317 = vst [vmem:[#allocation2 + $0x4a8] sm:$0xff] %v300
  %318 = vst [vmem:[#allocation2 + $0x4e0] sm:$0xff] %v311
  %319 = vst [vmem:[#allocation2 + $0x4e8] sm:$0xff] %v309
  %320 = vst [vmem:[#allocation2 + $0x4f0] sm:$0xff] %v307
  %321 = vst [vmem:[#allocation2 + $0x4f8] sm:$0xff] %v305
  %322 = vst [vmem:[#allocation2 + $0x500] sm:$0xff] %v303
  %323 = vst [vmem:[#allocation2 + $0x508] sm:$0xff] %v301
  %324 = vst [vmem:[#allocation2 + $0x1b0] sm:$0xff] %v298
  %325 = vst [vmem:[#allocation2 + $0x1b8] sm:$0xff] %v296
  %326 = vst [vmem:[#allocation2 + $0x1c0] sm:$0xff] %v294
  %327 = vst [vmem:[#allocation2 + $0x1c8] sm:$0xff] %v292
  %328 = vst [vmem:[#allocation2 + $0x1d0] sm:$0xff] %v290
  %329 = vst [vmem:[#allocation2 + $0x1d8] sm:$0xff] %v288
  %330 = vst [vmem:[#allocation2 + $0x210] sm:$0xff] %v299
  %331 = vst [vmem:[#allocation2 + $0x218] sm:$0xff] %v297
  %332 = vst [vmem:[#allocation2 + $0x220] sm:$0xff] %v295
  %333 = vst [vmem:[#allocation2 + $0x228] sm:$0xff] %v293
  %334 = vst [vmem:[#allocation2 + $0x230] sm:$0xff] %v291
  %335 = vst [vmem:[#allocation2 + $0x238] sm:$0xff] %v289
  %336 = vrot.lane.b32.xlu0 %v19, 1
  %v337 = vpop.permute.xlu0 %336
  %338 = vrot.lane.b32.xlu0 %v31, 1
  %v339 = vpop.permute.xlu0 %338
  %340 = vrot.lane.b32.xlu0 %v20, 1
  %v341 = vpop.permute.xlu0 %340
  %342 = vrot.lane.b32.xlu0 %v32, 1
  %v343 = vpop.permute.xlu0 %342
  %344 = vrot.lane.b32.xlu0 %v21, 1
  %v345 = vpop.permute.xlu0 %344
  %346 = vrot.lane.b32.xlu0 %v33, 1
  %v347 = vpop.permute.xlu0 %346
  %348 = vrot.lane.b32.xlu0 %v22, 1
  %v349 = vpop.permute.xlu0 %348
  %350 = vrot.lane.b32.xlu0 %v34, 1
  %v351 = vpop.permute.xlu0 %350
  %352 = vrot.lane.b32.xlu0 %v23, 1
  %v353 = vpop.permute.xlu0 %352
  %354 = vrot.lane.b32.xlu0 %v35, 1
  %v355 = vpop.permute.xlu0 %354
  %356 = vrot.lane.b32.xlu0 %v24, 1
  %v357 = vpop.permute.xlu0 %356
  %358 = vrot.lane.b32.xlu0 %v36, 1
  %v359 = vpop.permute.xlu0 %358
  %360 = vrot.lane.b32.xlu0 %v25, 1
  %v361 = vpop.permute.xlu0 %360
  %362 = vrot.lane.b32.xlu0 %v37, 1
  %v363 = vpop.permute.xlu0 %362
  %364 = vrot.lane.b32.xlu0 %v26, 1
  %v365 = vpop.permute.xlu0 %364
  %366 = vrot.lane.b32.xlu0 %v38, 1
  %v367 = vpop.permute.xlu0 %366
  %368 = vrot.lane.b32.xlu0 %v27, 1
  %v369 = vpop.permute.xlu0 %368
  %370 = vrot.lane.b32.xlu0 %v39, 1
  %v371 = vpop.permute.xlu0 %370
  %372 = vrot.lane.b32.xlu0 %v28, 1
  %v373 = vpop.permute.xlu0 %372
  %374 = vrot.lane.b32.xlu0 %v40, 1
  %v375 = vpop.permute.xlu0 %374
  %376 = vrot.lane.b32.xlu0 %v29, 1
  %v377 = vpop.permute.xlu0 %376
  %378 = vrot.lane.b32.xlu0 %v41, 1
  %v379 = vpop.permute.xlu0 %378
  %380 = vrot.lane.b32.xlu0 %v30, 1
  %v381 = vpop.permute.xlu0 %380
  %382 = vrot.lane.b32.xlu0 %v42, 1
  %v383 = vpop.permute.xlu0 %382
  %vm384 = vcmp.lt.s32.totalorder %v92, 1
  %v385 = vsel %vm384, %v377, %v381
  %v386 = vsel %vm384, %v379, %v383
  %v387 = vsel %vm384, %v373, %v377
  %v388 = vsel %vm384, %v375, %v379
  %v389 = vsel %vm384, %v369, %v373
  %v390 = vsel %vm384, %v371, %v375
  %v391 = vsel %vm384, %v365, %v369
  %v392 = vsel %vm384, %v367, %v371
  %v393 = vsel %vm384, %v361, %v365
  %v394 = vsel %vm384, %v363, %v367
  %v395 = vsel %vm384, %v357, %v361
  %v396 = vsel %vm384, %v359, %v363
  %v397 = vsel %vm384, %v353, %v357
  %v398 = vsel %vm384, %v355, %v359
  %v399 = vsel %vm384, %v349, %v353
  %v400 = vsel %vm384, %v351, %v355
  %v401 = vsel %vm384, %v345, %v349
  %v402 = vsel %vm384, %v347, %v351
  %v403 = vsel %vm384, %v341, %v345
  %v404 = vsel %vm384, %v343, %v347
  %v405 = vsel %vm384, %v337, %v341
  %v406 = vsel %vm384, %v339, %v343
  %v407 = vsel %vm384, %v381, %v337
  %v408 = vsel %vm384, %v383, %v339
  %409 = vst [vmem:[#allocation2 + $0xc0] sm:$0xff] %v407
  %410 = vst [vmem:[#allocation2 + $0xc8] sm:$0xff] %v405
  %411 = vst [vmem:[#allocation2 + $0xd0] sm:$0xff] %v403
  %412 = vst [vmem:[#allocation2 + $0xd8] sm:$0xff] %v401
  %413 = vst [vmem:[#allocation2 + $0xe0] sm:$0xff] %v399
  %414 = vst [vmem:[#allocation2 + $0xe8] sm:$0xff] %v397
  %415 = vst [vmem:[#allocation2 + $0x120] sm:$0xff] %v408
  %416 = vst [vmem:[#allocation2 + $0x128] sm:$0xff] %v406
  %417 = vst [vmem:[#allocation2 + $0x130] sm:$0xff] %v404
  %418 = vst [vmem:[#allocation2 + $0x138] sm:$0xff] %v402
  %419 = vst [vmem:[#allocation2 + $0x140] sm:$0xff] %v400
  %420 = vst [vmem:[#allocation2 + $0x148] sm:$0xff] %v398
  %421 = vst [vmem:[#allocation2 + $0x270] sm:$0xff] %v395
  %422 = vst [vmem:[#allocation2 + $0x278] sm:$0xff] %v393
  %423 = vst [vmem:[#allocation2 + $0x280] sm:$0xff] %v391
  %424 = vst [vmem:[#allocation2 + $0x288] sm:$0xff] %v389
  %425 = vst [vmem:[#allocation2 + $0x290] sm:$0xff] %v387
  %426 = vst [vmem:[#allocation2 + $0x298] sm:$0xff] %v385
  %427 = vst [vmem:[#allocation2 + $0x2d0] sm:$0xff] %v396
  %428 = vst [vmem:[#allocation2 + $0x2d8] sm:$0xff] %v394
  %429 = vst [vmem:[#allocation2 + $0x2e0] sm:$0xff] %v392
  %430 = vst [vmem:[#allocation2 + $0x2e8] sm:$0xff] %v390
  %431 = vst [vmem:[#allocation2 + $0x2f0] sm:$0xff] %v388
  %432 = vst [vmem:[#allocation2 + $0x2f8] sm:$0xff] %v386
  %433 = vst [vmem:[#allocation2 + $0x300] sm:$0xff] %v19
  %434 = vst [vmem:[#allocation2 + $0x308] sm:$0xff] %v20
  %435 = vst [vmem:[#allocation2 + $0x310] sm:$0xff] %v21
  %436 = vst [vmem:[#allocation2 + $0x318] sm:$0xff] %v22
  %437 = vst [vmem:[#allocation2 + $0x320] sm:$0xff] %v23
  %438 = vst [vmem:[#allocation2 + $0x328] sm:$0xff] %v24
  %439 = vst [vmem:[#allocation2 + $0x330] sm:$0xff] %v25
  %440 = vst [vmem:[#allocation2 + $0x338] sm:$0xff] %v26
  %441 = vst [vmem:[#allocation2 + $0x340] sm:$0xff] %v27
  %442 = vst [vmem:[#allocation2 + $0x348] sm:$0xff] %v28
  %443 = vst [vmem:[#allocation2 + $0x350] sm:$0xff] %v29
  %444 = vst [vmem:[#allocation2 + $0x358] sm:$0xff] %v30
  %445 = vst [vmem:[#allocation2 + $0x360] sm:$0xff] %v31
  %446 = vst [vmem:[#allocation2 + $0x368] sm:$0xff] %v32
  %447 = vst [vmem:[#allocation2 + $0x370] sm:$0xff] %v33
  %448 = vst [vmem:[#allocation2 + $0x378] sm:$0xff] %v34
  %449 = vst [vmem:[#allocation2 + $0x380] sm:$0xff] %v35
  %450 = vst [vmem:[#allocation2 + $0x388] sm:$0xff] %v36
  %451 = vst [vmem:[#allocation2 + $0x390] sm:$0xff] %v37
  %452 = vst [vmem:[#allocation2 + $0x398] sm:$0xff] %v38
  %453 = vst [vmem:[#allocation2 + $0x3a0] sm:$0xff] %v39
  %454 = vst [vmem:[#allocation2 + $0x3a8] sm:$0xff] %v40
  %455 = vst [vmem:[#allocation2 + $0x3b0] sm:$0xff] %v41
  %456 = vst [vmem:[#allocation2 + $0x3b8] sm:$0xff] %v42
  %457 = vrot.lane.b32.xlu0 %v19, 127
  %v458 = vpop.permute.xlu0 %457
  %459 = vrot.lane.b32.xlu0 %v31, 127
  %v460 = vpop.permute.xlu0 %459
  %461 = vrot.lane.b32.xlu0 %v20, 127
  %v462 = vpop.permute.xlu0 %461
  %463 = vrot.lane.b32.xlu0 %v32, 127
  %v464 = vpop.permute.xlu0 %463
  %465 = vrot.lane.b32.xlu0 %v21, 127
  %v466 = vpop.permute.xlu0 %465
  %467 = vrot.lane.b32.xlu0 %v33, 127
  %v468 = vpop.permute.xlu0 %467
  %469 = vrot.lane.b32.xlu0 %v22, 127
  %v470 = vpop.permute.xlu0 %469
  %471 = vrot.lane.b32.xlu0 %v34, 127
  %v472 = vpop.permute.xlu0 %471
  %473 = vrot.lane.b32.xlu0 %v23, 127
  %v474 = vpop.permute.xlu0 %473
  %475 = vrot.lane.b32.xlu0 %v35, 127
  %v476 = vpop.permute.xlu0 %475
  %477 = vrot.lane.b32.xlu0 %v24, 127
  %v478 = vpop.permute.xlu0 %477
  %479 = vrot.lane.b32.xlu0 %v36, 127
  %v480 = vpop.permute.xlu0 %479
  %481 = vrot.lane.b32.xlu0 %v25, 127
  %v482 = vpop.permute.xlu0 %481
  %483 = vrot.lane.b32.xlu0 %v37, 127
  %v484 = vpop.permute.xlu0 %483
  %485 = vrot.lane.b32.xlu0 %v26, 127
  %v486 = vpop.permute.xlu0 %485
  %487 = vrot.lane.b32.xlu0 %v38, 127
  %v488 = vpop.permute.xlu0 %487
  %489 = vrot.lane.b32.xlu0 %v27, 127
  %v490 = vpop.permute.xlu0 %489
  %491 = vrot.lane.b32.xlu0 %v39, 127
  %v492 = vpop.permute.xlu0 %491
  %493 = vrot.lane.b32.xlu0 %v28, 127
  %v494 = vpop.permute.xlu0 %493
  %495 = vrot.lane.b32.xlu0 %v40, 127
  %v496 = vpop.permute.xlu0 %495
  %497 = vrot.lane.b32.xlu0 %v29, 127
  %v498 = vpop.permute.xlu0 %497
  %499 = vrot.lane.b32.xlu0 %v41, 127
  %v500 = vpop.permute.xlu0 %499
  %501 = vrot.lane.b32.xlu0 %v30, 127
  %v502 = vpop.permute.xlu0 %501
  %503 = vrot.lane.b32.xlu0 %v42, 127
  %v504 = vpop.permute.xlu0 %503
  %vm505 = vcmp.lt.s32.totalorder %v92, 127
  %v506 = vsel %vm505, %v498, %v502
  %v507 = vsel %vm505, %v500, %v504
  %v508 = vsel %vm505, %v494, %v498
  %v509 = vsel %vm505, %v496, %v500
  %v510 = vsel %vm505, %v490, %v494
  %v511 = vsel %vm505, %v492, %v496
  %v512 = vsel %vm505, %v486, %v490
  %v513 = vsel %vm505, %v488, %v492
  %v514 = vsel %vm505, %v482, %v486
  %v515 = vsel %vm505, %v484, %v488
  %v516 = vsel %vm505, %v478, %v482
  %v517 = vsel %vm505, %v480, %v484
  %v518 = vsel %vm505, %v474, %v478
  %v519 = vsel %vm505, %v476, %v480
  %v520 = vsel %vm505, %v470, %v474
  %v521 = vsel %vm505, %v472, %v476
  %v522 = vsel %vm505, %v466, %v470
  %v523 = vsel %vm505, %v468, %v472
  %v524 = vsel %vm505, %v462, %v466
  %v525 = vsel %vm505, %v464, %v468
  %v526 = vsel %vm505, %v458, %v462
  %v527 = vsel %vm505, %v460, %v464
  %v528 = vsel %vm505, %v502, %v458
  %v529 = vsel %vm505, %v504, %v460
  %530 = vst [vmem:[#allocation2 + $0x540] sm:$0xff] %v526
  %531 = vst [vmem:[#allocation2 + $0x548] sm:$0xff] %v524
  %532 = vst [vmem:[#allocation2 + $0x550] sm:$0xff] %v522
  %533 = vst [vmem:[#allocation2 + $0x558] sm:$0xff] %v520
  %534 = vst [vmem:[#allocation2 + $0x560] sm:$0xff] %v518
  %535 = vst [vmem:[#allocation2 + $0x568] sm:$0xff] %v516
  %536 = vst [vmem:[#allocation2 + $0x5a0] sm:$0xff] %v527
  %537 = vst [vmem:[#allocation2 + $0x5a8] sm:$0xff] %v525
  %538 = vst [vmem:[#allocation2 + $0x5b0] sm:$0xff] %v523
  %539 = vst [vmem:[#allocation2 + $0x5b8] sm:$0xff] %v521
  %540 = vst [vmem:[#allocation2 + $0x5c0] sm:$0xff] %v519
  %541 = vst [vmem:[#allocation2 + $0x5c8] sm:$0xff] %v517
  %542 = vst [vmem:[#allocation2 + $0x3f0] sm:$0xff] %v514
  %543 = vst [vmem:[#allocation2 + $0x3f8] sm:$0xff] %v512
  %544 = vst [vmem:[#allocation2 + $0x400] sm:$0xff] %v510
  %545 = vst [vmem:[#allocation2 + $0x408] sm:$0xff] %v508
  %546 = vst [vmem:[#allocation2 + $0x410] sm:$0xff] %v506
  %547 = vst [vmem:[#allocation2 + $0x418] sm:$0xff] %v528
  %548 = vst [vmem:[#allocation2 + $0x450] sm:$0xff] %v515
  %549 = vst [vmem:[#allocation2 + $0x458] sm:$0xff] %v513
  %550 = vst [vmem:[#allocation2 + $0x460] sm:$0xff] %v511
  %551 = vst [vmem:[#allocation2 + $0x468] sm:$0xff] %v509
  %552 = vst [vmem:[#allocation2 + $0x470] sm:$0xff] %v507
  %553 = vst [vmem:[#allocation2 + $0x478] sm:$0xff] %v529
  %554 = vrot.lane.b32.xlu0 %v19, 111
  %v555 = vpop.permute.xlu0 %554
  %556 = vrot.lane.b32.xlu0 %v31, 111
  %v557 = vpop.permute.xlu0 %556
  %558 = vrot.lane.b32.xlu0 %v20, 111
  %v559 = vpop.permute.xlu0 %558
  %560 = vrot.lane.b32.xlu0 %v32, 111
  %v561 = vpop.permute.xlu0 %560
  %562 = vrot.lane.b32.xlu0 %v21, 111
  %v563 = vpop.permute.xlu0 %562
  %564 = vrot.lane.b32.xlu0 %v33, 111
  %v565 = vpop.permute.xlu0 %564
  %566 = vrot.lane.b32.xlu0 %v22, 111
  %v567 = vpop.permute.xlu0 %566
  %568 = vrot.lane.b32.xlu0 %v34, 111
  %v569 = vpop.permute.xlu0 %568
  %570 = vrot.lane.b32.xlu0 %v23, 111
  %v571 = vpop.permute.xlu0 %570
  %572 = vrot.lane.b32.xlu0 %v35, 111
  %v573 = vpop.permute.xlu0 %572
  %574 = vrot.lane.b32.xlu0 %v24, 111
  %v575 = vpop.permute.xlu0 %574
  %576 = vrot.lane.b32.xlu0 %v36, 111
  %v577 = vpop.permute.xlu0 %576
  %578 = vrot.lane.b32.xlu0 %v25, 111
  %v579 = vpop.permute.xlu0 %578
  %580 = vrot.lane.b32.xlu0 %v37, 111
  %v581 = vpop.permute.xlu0 %580
  %582 = vrot.lane.b32.xlu0 %v26, 111
  %v583 = vpop.permute.xlu0 %582
  %584 = vrot.lane.b32.xlu0 %v38, 111
  %v585 = vpop.permute.xlu0 %584
  %586 = vrot.lane.b32.xlu0 %v27, 111
  %v587 = vpop.permute.xlu0 %586
  %588 = vrot.lane.b32.xlu0 %v39, 111
  %v589 = vpop.permute.xlu0 %588
  %590 = vrot.lane.b32.xlu0 %v28, 111
  %v591 = vpop.permute.xlu0 %590
  %592 = vrot.lane.b32.xlu0 %v40, 111
  %v593 = vpop.permute.xlu0 %592
  %594 = vrot.lane.b32.xlu0 %v29, 111
  %v595 = vpop.permute.xlu0 %594
  %596 = vrot.lane.b32.xlu0 %v41, 111
  %v597 = vpop.permute.xlu0 %596
  %598 = vrot.lane.b32.xlu0 %v30, 111
  %v599 = vpop.permute.xlu0 %598
  %600 = vrot.lane.b32.xlu0 %v42, 111
  %v601 = vpop.permute.xlu0 %600
  %vm602 = vcmp.lt.s32.totalorder %v92, 111
  %v603 = vsel %vm602, %v595, %v599
  %v604 = vsel %vm602, %v597, %v601
  %v605 = vsel %vm602, %v591, %v595
  %v606 = vsel %vm602, %v593, %v597
  %v607 = vsel %vm602, %v587, %v591
  %v608 = vsel %vm602, %v589, %v593
  %v609 = vsel %vm602, %v583, %v587
  %v610 = vsel %vm602, %v585, %v589
  %v611 = vsel %vm602, %v579, %v583
  %v612 = vsel %vm602, %v581, %v585
  %v613 = vsel %vm602, %v575, %v579
  %v614 = vsel %vm602, %v577, %v581
  %v615 = vsel %vm602, %v571, %v575
  %v616 = vsel %vm602, %v573, %v577
  %v617 = vsel %vm602, %v567, %v571
  %v618 = vsel %vm602, %v569, %v573
  %v619 = vsel %vm602, %v563, %v567
  %v620 = vsel %vm602, %v565, %v569
  %v621 = vsel %vm602, %v559, %v563
  %v622 = vsel %vm602, %v561, %v565
  %v623 = vsel %vm602, %v555, %v559
  %v624 = vsel %vm602, %v557, %v561
  %v625 = vsel %vm602, %v599, %v555
  %v626 = vsel %vm602, %v601, %v557
  %627 = vst [vmem:[#allocation2 + $0x180] sm:$0xff] %v623
  %628 = vst [vmem:[#allocation2 + $0x188] sm:$0xff] %v621
  %629 = vst [vmem:[#allocation2 + $0x190] sm:$0xff] %v619
  %630 = vst [vmem:[#allocation2 + $0x198] sm:$0xff] %v617
  %631 = vst [vmem:[#allocation2 + $0x1a0] sm:$0xff] %v615
  %632 = vst [vmem:[#allocation2 + $0x1a8] sm:$0xff] %v613
  %633 = vst [vmem:[#allocation2 + $0x1e0] sm:$0xff] %v624
  %634 = vst [vmem:[#allocation2 + $0x1e8] sm:$0xff] %v622
  %635 = vst [vmem:[#allocation2 + $0x1f0] sm:$0xff] %v620
  %636 = vst [vmem:[#allocation2 + $0x1f8] sm:$0xff] %v618
  %637 = vst [vmem:[#allocation2 + $0x200] sm:$0xff] %v616
  %638 = vst [vmem:[#allocation2 + $0x208] sm:$0xff] %v614
  %639 = vst [vmem:[#allocation2 + $0x4b0] sm:$0xff] %v611
  %640 = vst [vmem:[#allocation2 + $0x4b8] sm:$0xff] %v609
  %641 = vst [vmem:[#allocation2 + $0x4c0] sm:$0xff] %v607
  %642 = vst [vmem:[#allocation2 + $0x4c8] sm:$0xff] %v605
  %643 = vst [vmem:[#allocation2 + $0x4d0] sm:$0xff] %v603
  %644 = vst [vmem:[#allocation2 + $0x4d8] sm:$0xff] %v625
  %645 = vst [vmem:[#allocation2 + $0x510] sm:$0xff] %v612
  %646 = vst [vmem:[#allocation2 + $0x518] sm:$0xff] %v610
  %647 = vst [vmem:[#allocation2 + $0x520] sm:$0xff] %v608
  %648 = vst [vmem:[#allocation2 + $0x528] sm:$0xff] %v606
  %649 = vst [vmem:[#allocation2 + $0x530] sm:$0xff] %v604
  %650 = vst [vmem:[#allocation2 + $0x538] sm:$0xff] %v626
  %651 = vrot.lane.b32.xlu0 %v19, 110
  %v652 = vpop.permute.xlu0 %651
  %653 = vrot.lane.b32.xlu0 %v31, 110
  %v654 = vpop.permute.xlu0 %653
  %655 = vrot.lane.b32.xlu0 %v20, 110
  %v656 = vpop.permute.xlu0 %655
  %657 = vrot.lane.b32.xlu0 %v32, 110
  %v658 = vpop.permute.xlu0 %657
  %659 = vrot.lane.b32.xlu0 %v21, 110
  %v660 = vpop.permute.xlu0 %659
  %661 = vrot.lane.b32.xlu0 %v33, 110
  %v662 = vpop.permute.xlu0 %661
  %663 = vrot.lane.b32.xlu0 %v22, 110
  %v664 = vpop.permute.xlu0 %663
  %665 = vrot.lane.b32.xlu0 %v34, 110
  %v666 = vpop.permute.xlu0 %665
  %667 = vrot.lane.b32.xlu0 %v23, 110
  %v668 = vpop.permute.xlu0 %667
  %669 = vrot.lane.b32.xlu0 %v35, 110
  %v670 = vpop.permute.xlu0 %669
  %671 = vrot.lane.b32.xlu0 %v24, 110
  %v672 = vpop.permute.xlu0 %671
  %673 = vrot.lane.b32.xlu0 %v36, 110
  %v674 = vpop.permute.xlu0 %673
  %675 = vrot.lane.b32.xlu0 %v25, 110
  %v676 = vpop.permute.xlu0 %675
  %677 = vrot.lane.b32.xlu0 %v37, 110
  %v678 = vpop.permute.xlu0 %677
  %679 = vrot.lane.b32.xlu0 %v26, 110
  %v680 = vpop.permute.xlu0 %679
  %681 = vrot.lane.b32.xlu0 %v38, 110
  %v682 = vpop.permute.xlu0 %681
  %683 = vrot.lane.b32.xlu0 %v27, 110
  %v684 = vpop.permute.xlu0 %683
  %685 = vrot.lane.b32.xlu0 %v39, 110
  %v686 = vpop.permute.xlu0 %685
  %687 = vrot.lane.b32.xlu0 %v28, 110
  %v688 = vpop.permute.xlu0 %687
  %689 = vrot.lane.b32.xlu0 %v40, 110
  %v690 = vpop.permute.xlu0 %689
  %691 = vrot.lane.b32.xlu0 %v29, 110
  %v692 = vpop.permute.xlu0 %691
  %693 = vrot.lane.b32.xlu0 %v41, 110
  %v694 = vpop.permute.xlu0 %693
  %695 = vrot.lane.b32.xlu0 %v30, 110
  %v696 = vpop.permute.xlu0 %695
  %697 = vrot.lane.b32.xlu0 %v42, 110
  %v698 = vpop.permute.xlu0 %697
  %vm699 = vcmp.lt.s32.totalorder %v92, 110
  %v700 = vsel %vm699, %v692, %v696
  %v701 = vsel %vm699, %v694, %v698
  %v702 = vsel %vm699, %v688, %v692
  %v703 = vsel %vm699, %v690, %v694
  %v704 = vsel %vm699, %v684, %v688
  %v705 = vsel %vm699, %v686, %v690
  %v706 = vsel %vm699, %v680, %v684
  %v707 = vsel %vm699, %v682, %v686
  %v708 = vsel %vm699, %v676, %v680
  %v709 = vsel %vm699, %v678, %v682
  %v710 = vsel %vm699, %v672, %v676
  %v711 = vsel %vm699, %v674, %v678
  %v712 = vsel %vm699, %v668, %v672
  %v713 = vsel %vm699, %v670, %v674
  %v714 = vsel %vm699, %v664, %v668
  %v715 = vsel %vm699, %v666, %v670
  %v716 = vsel %vm699, %v660, %v664
  %v717 = vsel %vm699, %v662, %v666
  %v718 = vsel %vm699, %v656, %v660
  %v719 = vsel %vm699, %v658, %v662
  %v720 = vsel %vm699, %v652, %v656
  %v721 = vsel %vm699, %v654, %v658
  %v722 = vsel %vm699, %v696, %v652
  %v723 = vsel %vm699, %v698, %v654
  %724 = vst [vmem:[#allocation2 + $0x3c0] sm:$0xff] %v720
  %725 = vst [vmem:[#allocation2 + $0x3c8] sm:$0xff] %v718
  %726 = vst [vmem:[#allocation2 + $0x3d0] sm:$0xff] %v716
  %727 = vst [vmem:[#allocation2 + $0x3d8] sm:$0xff] %v714
  %728 = vst [vmem:[#allocation2 + $0x3e0] sm:$0xff] %v712
  %729 = vst [vmem:[#allocation2 + $0x3e8] sm:$0xff] %v710
  %730 = vst [vmem:[#allocation2 + $0x420] sm:$0xff] %v721
  %731 = vst [vmem:[#allocation2 + $0x428] sm:$0xff] %v719
  %732 = vst [vmem:[#allocation2 + $0x430] sm:$0xff] %v717
  %733 = vst [vmem:[#allocation2 + $0x438] sm:$0xff] %v715
  %734 = vst [vmem:[#allocation2 + $0x440] sm:$0xff] %v713
  %735 = vst [vmem:[#allocation2 + $0x448] sm:$0xff] %v711
  %736 = vst [vmem:[#allocation2 + $0x570] sm:$0xff] %v708
  %737 = vst [vmem:[#allocation2 + $0x578] sm:$0xff] %v706
  %738 = vst [vmem:[#allocation2 + $0x580] sm:$0xff] %v704
  %739 = vst [vmem:[#allocation2 + $0x588] sm:$0xff] %v702
  %740 = vst [vmem:[#allocation2 + $0x590] sm:$0xff] %v700
  %741 = vst [vmem:[#allocation2 + $0x598] sm:$0xff] %v722
  %742 = vst [vmem:[#allocation2 + $0x5d0] sm:$0xff] %v709
  %743 = vst [vmem:[#allocation2 + $0x5d8] sm:$0xff] %v707
  %744 = vst [vmem:[#allocation2 + $0x5e0] sm:$0xff] %v705
  %745 = vst [vmem:[#allocation2 + $0x5e8] sm:$0xff] %v703
  %746 = vst [vmem:[#allocation2 + $0x5f0] sm:$0xff] %v701
  %747 = vst [vmem:[#allocation2 + $0x5f8] sm:$0xff] %v723
  %748 = vrot.lane.b32.xlu0 %v19, 109
  %v749 = vpop.permute.xlu0 %748
  %750 = vrot.lane.b32.xlu0 %v31, 109
  %v751 = vpop.permute.xlu0 %750
  %752 = vrot.lane.b32.xlu0 %v20, 109
  %v753 = vpop.permute.xlu0 %752
  %754 = vrot.lane.b32.xlu0 %v32, 109
  %v755 = vpop.permute.xlu0 %754
  %756 = vrot.lane.b32.xlu0 %v21, 109
  %v757 = vpop.permute.xlu0 %756
  %758 = vrot.lane.b32.xlu0 %v33, 109
  %v759 = vpop.permute.xlu0 %758
  %760 = vrot.lane.b32.xlu0 %v22, 109
  %v761 = vpop.permute.xlu0 %760
  %762 = vrot.lane.b32.xlu0 %v34, 109
  %v763 = vpop.permute.xlu0 %762
  %764 = vrot.lane.b32.xlu0 %v23, 109
  %v765 = vpop.permute.xlu0 %764
  %766 = vrot.lane.b32.xlu0 %v35, 109
  %v767 = vpop.permute.xlu0 %766
  %768 = vrot.lane.b32.xlu0 %v24, 109
  %v769 = vpop.permute.xlu0 %768
  %770 = vrot.lane.b32.xlu0 %v36, 109
  %v771 = vpop.permute.xlu0 %770
  %772 = vrot.lane.b32.xlu0 %v25, 109
  %v773 = vpop.permute.xlu0 %772
  %774 = vrot.lane.b32.xlu0 %v37, 109
  %v775 = vpop.permute.xlu0 %774
  %776 = vrot.lane.b32.xlu0 %v26, 109
  %v777 = vpop.permute.xlu0 %776
  %778 = vrot.lane.b32.xlu0 %v38, 109
  %v779 = vpop.permute.xlu0 %778
  %780 = vrot.lane.b32.xlu0 %v27, 109
  %v781 = vpop.permute.xlu0 %780
  %782 = vrot.lane.b32.xlu0 %v39, 109
  %v783 = vpop.permute.xlu0 %782
  %784 = vrot.lane.b32.xlu0 %v28, 109
  %v785 = vpop.permute.xlu0 %784
  %786 = vrot.lane.b32.xlu0 %v40, 109
  %v787 = vpop.permute.xlu0 %786
  %788 = vrot.lane.b32.xlu0 %v29, 109
  %v789 = vpop.permute.xlu0 %788
  %790 = vrot.lane.b32.xlu0 %v41, 109
  %v791 = vpop.permute.xlu0 %790
  %792 = vrot.lane.b32.xlu0 %v30, 109
  %v793 = vpop.permute.xlu0 %792
  %794 = vrot.lane.b32.xlu0 %v42, 109
  %v795 = vpop.permute.xlu0 %794
  %vm796 = vcmp.lt.s32.totalorder %v92, 109
  %v797 = vsel %vm796, %v789, %v793
  %v798 = vsel %vm796, %v791, %v795
  %v799 = vsel %vm796, %v785, %v789
  %v800 = vsel %vm796, %v787, %v791
  %v801 = vsel %vm796, %v781, %v785
  %v802 = vsel %vm796, %v783, %v787
  %v803 = vsel %vm796, %v777, %v781
  %v804 = vsel %vm796, %v779, %v783
  %v805 = vsel %vm796, %v773, %v777
  %v806 = vsel %vm796, %v775, %v779
  %v807 = vsel %vm796, %v769, %v773
  %v808 = vsel %vm796, %v771, %v775
  %v809 = vsel %vm796, %v765, %v769
  %v810 = vsel %vm796, %v767, %v771
  %v811 = vsel %vm796, %v761, %v765
  %v812 = vsel %vm796, %v763, %v767
  %v813 = vsel %vm796, %v757, %v761
  %v814 = vsel %vm796, %v759, %v763
  %v815 = vsel %vm796, %v753, %v757
  %v816 = vsel %vm796, %v755, %v759
  %v817 = vsel %vm796, %v749, %v753
  %v818 = vsel %vm796, %v751, %v755
  %v819 = vsel %vm796, %v793, %v749
  %v820 = vsel %vm796, %v795, %v751
  %821 = vst [vmem:[#allocation2 + $0x600] sm:$0xff] %v817
  %822 = vst [vmem:[#allocation2 + $0x608] sm:$0xff] %v815
  %823 = vst [vmem:[#allocation2 + $0x610] sm:$0xff] %v813
  %824 = vst [vmem:[#allocation2 + $0x618] sm:$0xff] %v811
  %825 = vst [vmem:[#allocation2 + $0x620] sm:$0xff] %v809
  %826 = vst [vmem:[#allocation2 + $0x628] sm:$0xff] %v807
  %827 = vst [vmem:[#allocation2 + $0x630] sm:$0xff] %v805
  %828 = vst [vmem:[#allocation2 + $0x638] sm:$0xff] %v803
  %829 = vst [vmem:[#allocation2 + $0x640] sm:$0xff] %v801
  %830 = vst [vmem:[#allocation2 + $0x648] sm:$0xff] %v799
  %831 = vst [vmem:[#allocation2 + $0x650] sm:$0xff] %v797
  %832 = vst [vmem:[#allocation2 + $0x658] sm:$0xff] %v819
  %833 = vst [vmem:[#allocation2 + $0x660] sm:$0xff] %v818
  %834 = vst [vmem:[#allocation2 + $0x668] sm:$0xff] %v816
  %835 = vst [vmem:[#allocation2 + $0x670] sm:$0xff] %v814
  %836 = vst [vmem:[#allocation2 + $0x678] sm:$0xff] %v812
  %837 = vst [vmem:[#allocation2 + $0x680] sm:$0xff] %v810
  %838 = vst [vmem:[#allocation2 + $0x688] sm:$0xff] %v808
  %839 = vst [vmem:[#allocation2 + $0x690] sm:$0xff] %v806
  %840 = vst [vmem:[#allocation2 + $0x698] sm:$0xff] %v804
  %841 = vst [vmem:[#allocation2 + $0x6a0] sm:$0xff] %v802
  %842 = vst [vmem:[#allocation2 + $0x6a8] sm:$0xff] %v800
  %843 = vst [vmem:[#allocation2 + $0x6b0] sm:$0xff] %v798
  %844 = vst [vmem:[#allocation2 + $0x6b8] sm:$0xff] %v820
  %v845 = vld [vmem:[%s2] sm:$0xff]
  %v846 = vld [vmem:[%s2 + $0x8] sm:$0xff]
  %v847 = vld [vmem:[%s2 + $0x10] sm:$0xff]
  %v848 = vld [vmem:[%s2 + $0x18] sm:$0xff]
  %v849 = vld [vmem:[#allocation2] sm:$0xff]
  %v850 = vld [vmem:[#allocation2 + $0x8] sm:$0xff]
  %v851 = vld [vmem:[#allocation2 + $0x10] sm:$0xff]
  %v852 = vld [vmem:[#allocation2 + $0x18] sm:$0xff]
  %v853 = vld [vmem:[#allocation2 + $0x20] sm:$0xff]
  %v854 = vld [vmem:[#allocation2 + $0x28] sm:$0xff]
  %v855 = vld [vmem:[#allocation2 + $0x30] sm:$0xff]
  %v856 = vld [vmem:[#allocation2 + $0x38] sm:$0xff]
  %v857 = vld [vmem:[#allocation2 + $0x40] sm:$0xff]
  %v858 = vld [vmem:[#allocation2 + $0x48] sm:$0xff]
  %v859 = vld [vmem:[#allocation2 + $0x50] sm:$0xff]
  %v860 = vld [vmem:[#allocation2 + $0x58] sm:$0xff]
  %v861 = vld [vmem:[#allocation2 + $0x60] sm:$0xff]
  %v862 = vld [vmem:[#allocation2 + $0x68] sm:$0xff]
  %v863 = vld [vmem:[#allocation2 + $0x70] sm:$0xff]
  %v864 = vld [vmem:[#allocation2 + $0x78] sm:$0xff]
  %v865 = vld [vmem:[#allocation2 + $0x80] sm:$0xff]
  %v866 = vld [vmem:[#allocation2 + $0x88] sm:$0xff]
  %v867 = vld [vmem:[#allocation2 + $0x90] sm:$0xff]
  %v868 = vld [vmem:[#allocation2 + $0x98] sm:$0xff]
  %v869 = vld [vmem:[#allocation2 + $0xa0] sm:$0xff]
  %v870 = vld [vmem:[#allocation2 + $0xa8] sm:$0xff]
  %v871 = vld [vmem:[#allocation2 + $0xb0] sm:$0xff]
  %v872 = vld [vmem:[#allocation2 + $0xb8] sm:$0xff]
  %v873 = vld [vmem:[#allocation2 + $0xc0] sm:$0xff]
  %v874 = vld [vmem:[#allocation2 + $0xc8] sm:$0xff]
  %v875 = vld [vmem:[#allocation2 + $0xd0] sm:$0xff]
  %v876 = vld [vmem:[#allocation2 + $0xd8] sm:$0xff]
  %v877 = vld [vmem:[#allocation2 + $0xe0] sm:$0xff]
  %v878 = vld [vmem:[#allocation2 + $0xe8] sm:$0xff]
  %v879 = vld [vmem:[#allocation2 + $0xf0] sm:$0xff]
  %v880 = vld [vmem:[#allocation2 + $0xf8] sm:$0xff]
  %v881 = vld [vmem:[#allocation2 + $0x100] sm:$0xff]
  %v882 = vld [vmem:[#allocation2 + $0x108] sm:$0xff]
  %v883 = vld [vmem:[#allocation2 + $0x110] sm:$0xff]
  %v884 = vld [vmem:[#allocation2 + $0x118] sm:$0xff]
  %v885 = vld [vmem:[#allocation2 + $0x120] sm:$0xff]
  %v886 = vld [vmem:[#allocation2 + $0x128] sm:$0xff]
  %v887 = vld [vmem:[#allocation2 + $0x130] sm:$0xff]
  %v888 = vld [vmem:[#allocation2 + $0x138] sm:$0xff]
  %v889 = vld [vmem:[#allocation2 + $0x140] sm:$0xff]
  %v890 = vld [vmem:[#allocation2 + $0x148] sm:$0xff]
  %v891 = vld [vmem:[#allocation2 + $0x150] sm:$0xff]
  %v892 = vld [vmem:[#allocation2 + $0x158] sm:$0xff]
  %v893 = vld [vmem:[#allocation2 + $0x160] sm:$0xff]
  %v894 = vld [vmem:[#allocation2 + $0x168] sm:$0xff]
  %v895 = vld [vmem:[#allocation2 + $0x170] sm:$0xff]
  %v896 = vld [vmem:[#allocation2 + $0x178] sm:$0xff]
  %v897 = vld [vmem:[#allocation2 + $0x180] sm:$0xff]
  %v898 = vld [vmem:[#allocation2 + $0x188] sm:$0xff]
  %v899 = vld [vmem:[#allocation2 + $0x190] sm:$0xff]
  %v900 = vld [vmem:[#allocation2 + $0x198] sm:$0xff]
  %v901 = vld [vmem:[#allocation2 + $0x1a0] sm:$0xff]
  %v902 = vld [vmem:[#allocation2 + $0x1a8] sm:$0xff]
  %v903 = vld [vmem:[#allocation2 + $0x1b0] sm:$0xff]
  %v904 = vld [vmem:[#allocation2 + $0x1b8] sm:$0xff]
  %v905 = vld [vmem:[#allocation2 + $0x1c0] sm:$0xff]
  %v906 = vld [vmem:[#allocation2 + $0x1c8] sm:$0xff]
  %v907 = vld [vmem:[#allocation2 + $0x1d0] sm:$0xff]
  %v908 = vld [vmem:[#allocation2 + $0x1d8] sm:$0xff]
  %v909 = vld [vmem:[#allocation2 + $0x1e0] sm:$0xff]
  %v910 = vld [vmem:[#allocation2 + $0x1e8] sm:$0xff]
  %v911 = vld [vmem:[#allocation2 + $0x1f0] sm:$0xff]
  %v912 = vld [vmem:[#allocation2 + $0x1f8] sm:$0xff]
  %v913 = vld [vmem:[#allocation2 + $0x200] sm:$0xff]
  %v914 = vld [vmem:[#allocation2 + $0x208] sm:$0xff]
  %v915 = vld [vmem:[#allocation2 + $0x210] sm:$0xff]
  %v916 = vld [vmem:[#allocation2 + $0x218] sm:$0xff]
  %v917 = vld [vmem:[#allocation2 + $0x220] sm:$0xff]
  %v918 = vld [vmem:[#allocation2 + $0x228] sm:$0xff]
  %v919 = vld [vmem:[#allocation2 + $0x230] sm:$0xff]
  %v920 = vld [vmem:[#allocation2 + $0x238] sm:$0xff]
  %v921 = vld [vmem:[#allocation2 + $0x240] sm:$0xff]
  %v922 = vld [vmem:[#allocation2 + $0x248] sm:$0xff]
  %v923 = vld [vmem:[#allocation2 + $0x250] sm:$0xff]
  %v924 = vld [vmem:[#allocation2 + $0x258] sm:$0xff]
  %v925 = vld [vmem:[#allocation2 + $0x260] sm:$0xff]
  %v926 = vld [vmem:[#allocation2 + $0x268] sm:$0xff]
  %v927 = vld [vmem:[#allocation2 + $0x270] sm:$0xff]
  %v928 = vld [vmem:[#allocation2 + $0x278] sm:$0xff]
  %v929 = vld [vmem:[#allocation2 + $0x280] sm:$0xff]
  %v930 = vld [vmem:[#allocation2 + $0x288] sm:$0xff]
  %v931 = vld [vmem:[#allocation2 + $0x290] sm:$0xff]
  %v932 = vld [vmem:[#allocation2 + $0x298] sm:$0xff]
  %v933 = vld [vmem:[#allocation2 + $0x2a0] sm:$0xff]
  %v934 = vld [vmem:[#allocation2 + $0x2a8] sm:$0xff]
  %v935 = vld [vmem:[#allocation2 + $0x2b0] sm:$0xff]
  %v936 = vld [vmem:[#allocation2 + $0x2b8] sm:$0xff]
  %v937 = vld [vmem:[#allocation2 + $0x2c0] sm:$0xff]
  %v938 = vld [vmem:[#allocation2 + $0x2c8] sm:$0xff]
  %v939 = vld [vmem:[#allocation2 + $0x2d0] sm:$0xff]
  %v940 = vld [vmem:[#allocation2 + $0x2d8] sm:$0xff]
  %v941 = vld [vmem:[#allocation2 + $0x2e0] sm:$0xff]
  %v942 = vld [vmem:[#allocation2 + $0x2e8] sm:$0xff]
  %v943 = vld [vmem:[#allocation2 + $0x2f0] sm:$0xff]
  %v944 = vld [vmem:[#allocation2 + $0x2f8] sm:$0xff]
  %v945 = vld [vmem:[#allocation2 + $0x300] sm:$0xff]
  %v946 = vld [vmem:[#allocation2 + $0x308] sm:$0xff]
  %v947 = vld [vmem:[#allocation2 + $0x310] sm:$0xff]
  %v948 = vld [vmem:[#allocation2 + $0x318] sm:$0xff]
  %v949 = vld [vmem:[#allocation2 + $0x320] sm:$0xff]
  %v950 = vld [vmem:[#allocation2 + $0x328] sm:$0xff]
  %v951 = vld [vmem:[#allocation2 + $0x330] sm:$0xff]
  %v952 = vld [vmem:[#allocation2 + $0x338] sm:$0xff]
  %v953 = vld [vmem:[#allocation2 + $0x340] sm:$0xff]
  %v954 = vld [vmem:[#allocation2 + $0x348] sm:$0xff]
  %v955 = vld [vmem:[#allocation2 + $0x350] sm:$0xff]
  %v956 = vld [vmem:[#allocation2 + $0x358] sm:$0xff]
  %v957 = vld [vmem:[#allocation2 + $0x360] sm:$0xff]
  %v958 = vld [vmem:[#allocation2 + $0x368] sm:$0xff]
  %v959 = vld [vmem:[#allocation2 + $0x370] sm:$0xff]
  %v960 = vld [vmem:[#allocation2 + $0x378] sm:$0xff]
  %v961 = vld [vmem:[#allocation2 + $0x380] sm:$0xff]
  %v962 = vld [vmem:[#allocation2 + $0x388] sm:$0xff]
  %v963 = vld [vmem:[#allocation2 + $0x390] sm:$0xff]
  %v964 = vld [vmem:[#allocation2 + $0x398] sm:$0xff]
  %v965 = vld [vmem:[#allocation2 + $0x3a0] sm:$0xff]
  %v966 = vld [vmem:[#allocation2 + $0x3a8] sm:$0xff]
  %v967 = vld [vmem:[#allocation2 + $0x3b0] sm:$0xff]
  %v968 = vld [vmem:[#allocation2 + $0x3b8] sm:$0xff]
  %v969 = vld [vmem:[#allocation2 + $0x3c0] sm:$0xff]
  %v970 = vld [vmem:[#allocation2 + $0x3c8] sm:$0xff]
  %v971 = vld [vmem:[#allocation2 + $0x3d0] sm:$0xff]
  %v972 = vld [vmem:[#allocation2 + $0x3d8] sm:$0xff]
  %v973 = vld [vmem:[#allocation2 + $0x3e0] sm:$0xff]
  %v974 = vld [vmem:[#allocation2 + $0x3e8] sm:$0xff]
  %v975 = vld [vmem:[#allocation2 + $0x3f0] sm:$0xff]
  %v976 = vld [vmem:[#allocation2 + $0x3f8] sm:$0xff]
  %v977 = vld [vmem:[#allocation2 + $0x400] sm:$0xff]
  %v978 = vld [vmem:[#allocation2 + $0x408] sm:$0xff]
  %v979 = vld [vmem:[#allocation2 + $0x410] sm:$0xff]
  %v980 = vld [vmem:[#allocation2 + $0x418] sm:$0xff]
  %v981 = vld [vmem:[#allocation2 + $0x420] sm:$0xff]
  %v982 = vld [vmem:[#allocation2 + $0x428] sm:$0xff]
  %v983 = vld [vmem:[#allocation2 + $0x430] sm:$0xff]
  %v984 = vld [vmem:[#allocation2 + $0x438] sm:$0xff]
  %v985 = vld [vmem:[#allocation2 + $0x440] sm:$0xff]
  %v986 = vld [vmem:[#allocation2 + $0x448] sm:$0xff]
  %v987 = vld [vmem:[#allocation2 + $0x450] sm:$0xff]
  %v988 = vld [vmem:[#allocation2 + $0x458] sm:$0xff]
  %v989 = vld [vmem:[#allocation2 + $0x460] sm:$0xff]
  %v990 = vld [vmem:[#allocation2 + $0x468] sm:$0xff]
  %v991 = vld [vmem:[#allocation2 + $0x470] sm:$0xff]
  %v992 = vld [vmem:[#allocation2 + $0x478] sm:$0xff]
  %v993 = vld [vmem:[#allocation2 + $0x480] sm:$0xff]
  %v994 = vld [vmem:[#allocation2 + $0x488] sm:$0xff]
  %v995 = vld [vmem:[#allocation2 + $0x490] sm:$0xff]
  %v996 = vld [vmem:[#allocation2 + $0x498] sm:$0xff]
  %v997 = vld [vmem:[#allocation2 + $0x4a0] sm:$0xff]
  %v998 = vld [vmem:[#allocation2 + $0x4a8] sm:$0xff]
  %v999 = vld [vmem:[#allocation2 + $0x4b0] sm:$0xff]
  %v1000 = vld [vmem:[#allocation2 + $0x4b8] sm:$0xff]
  %v1001 = vld [vmem:[#allocation2 + $0x4c0] sm:$0xff]
  %v1002 = vld [vmem:[#allocation2 + $0x4c8] sm:$0xff]
  %v1003 = vld [vmem:[#allocation2 + $0x4d0] sm:$0xff]
  %v1004 = vld [vmem:[#allocation2 + $0x4d8] sm:$0xff]
  %v1005 = vld [vmem:[#allocation2 + $0x4e0] sm:$0xff]
  %v1006 = vld [vmem:[#allocation2 + $0x4e8] sm:$0xff]
  %v1007 = vld [vmem:[#allocation2 + $0x4f0] sm:$0xff]
  %v1008 = vld [vmem:[#allocation2 + $0x4f8] sm:$0xff]
  %v1009 = vld [vmem:[#allocation2 + $0x500] sm:$0xff]
  %v1010 = vld [vmem:[#allocation2 + $0x508] sm:$0xff]
  %v1011 = vld [vmem:[#allocation2 + $0x510] sm:$0xff]
  %v1012 = vld [vmem:[#allocation2 + $0x518] sm:$0xff]
  %v1013 = vld [vmem:[#allocation2 + $0x520] sm:$0xff]
  %v1014 = vld [vmem:[#allocation2 + $0x528] sm:$0xff]
  %v1015 = vld [vmem:[#allocation2 + $0x530] sm:$0xff]
  %v1016 = vld [vmem:[#allocation2 + $0x538] sm:$0xff]
  %v1017 = vld [vmem:[#allocation2 + $0x540] sm:$0xff]
  %v1018 = vld [vmem:[#allocation2 + $0x548] sm:$0xff]
  %v1019 = vld [vmem:[#allocation2 + $0x550] sm:$0xff]
  %v1020 = vld [vmem:[#allocation2 + $0x558] sm:$0xff]
  %v1021 = vld [vmem:[#allocation2 + $0x560] sm:$0xff]
  %v1022 = vld [vmem:[#allocation2 + $0x568] sm:$0xff]
  %v1023 = vld [vmem:[#allocation2 + $0x570] sm:$0xff]
  %v1024 = vld [vmem:[#allocation2 + $0x578] sm:$0xff]
  %v1025 = vld [vmem:[#allocation2 + $0x580] sm:$0xff]
  %v1026 = vld [vmem:[#allocation2 + $0x588] sm:$0xff]
  %v1027 = vld [vmem:[#allocation2 + $0x590] sm:$0xff]
  %v1028 = vld [vmem:[#allocation2 + $0x598] sm:$0xff]
  %v1029 = vld [vmem:[#allocation2 + $0x5a0] sm:$0xff]
  %v1030 = vld [vmem:[#allocation2 + $0x5a8] sm:$0xff]
  %v1031 = vld [vmem:[#allocation2 + $0x5b0] sm:$0xff]
  %v1032 = vld [vmem:[#allocation2 + $0x5b8] sm:$0xff]
  %v1033 = vld [vmem:[#allocation2 + $0x5c0] sm:$0xff]
  %v1034 = vld [vmem:[#allocation2 + $0x5c8] sm:$0xff]
  %v1035 = vld [vmem:[#allocation2 + $0x5d0] sm:$0xff]
  %v1036 = vld [vmem:[#allocation2 + $0x5d8] sm:$0xff]
  %v1037 = vld [vmem:[#allocation2 + $0x5e0] sm:$0xff]
  %v1038 = vld [vmem:[#allocation2 + $0x5e8] sm:$0xff]
  %v1039 = vld [vmem:[#allocation2 + $0x5f0] sm:$0xff]
  %v1040 = vld [vmem:[#allocation2 + $0x5f8] sm:$0xff]
  %v1041 = vld [vmem:[#allocation2 + $0x600] sm:$0xff]
  %v1042 = vld [vmem:[#allocation2 + $0x608] sm:$0xff]
  %v1043 = vld [vmem:[#allocation2 + $0x610] sm:$0xff]
  %v1044 = vld [vmem:[#allocation2 + $0x618] sm:$0xff]
  %v1045 = vld [vmem:[#allocation2 + $0x620] sm:$0xff]
  %v1046 = vld [vmem:[#allocation2 + $0x628] sm:$0xff]
  %v1047 = vld [vmem:[#allocation2 + $0x630] sm:$0xff]
  %v1048 = vld [vmem:[#allocation2 + $0x638] sm:$0xff]
  %v1049 = vld [vmem:[#allocation2 + $0x640] sm:$0xff]
  %v1050 = vld [vmem:[#allocation2 + $0x648] sm:$0xff]
  %v1051 = vld [vmem:[#allocation2 + $0x650] sm:$0xff]
  %v1052 = vld [vmem:[#allocation2 + $0x658] sm:$0xff]
  %v1053 = vld [vmem:[#allocation2 + $0x660] sm:$0xff]
  %v1054 = vld [vmem:[#allocation2 + $0x668] sm:$0xff]
  %v1055 = vld [vmem:[#allocation2 + $0x670] sm:$0xff]
  %v1056 = vld [vmem:[#allocation2 + $0x678] sm:$0xff]
  %v1057 = vld [vmem:[#allocation2 + $0x680] sm:$0xff]
  %v1058 = vld [vmem:[#allocation2 + $0x688] sm:$0xff]
  %v1059 = vld [vmem:[#allocation2 + $0x690] sm:$0xff]
  %v1060 = vld [vmem:[#allocation2 + $0x698] sm:$0xff]
  %v1061 = vld [vmem:[#allocation2 + $0x6a0] sm:$0xff]
  %v1062 = vld [vmem:[#allocation2 + $0x6a8] sm:$0xff]
  %v1063 = vld [vmem:[#allocation2 + $0x6b0] sm:$0xff]
  %v1064 = vld [vmem:[#allocation2 + $0x6b8] sm:$0xff]
  %v1065 = vld [vmem:[%s3] sm:$0xff]
  %v1066 = vld [vmem:[%s3 + $0x8] sm:$0xff]
  %1068 = vset.pattern.permute.xlu0 0
  %1069 = vperm.xlu0 %1068, %v1065
  %v1070 = vpop.permute.xlu0 %1069
  %1073 = vset.pattern.permute.xlu0 0
  %1074 = vperm.xlu0 %1073, %v1066
  %v1075 = vpop.permute.xlu0 %1074
  %vm1077 = vcmask 130048
  %v1079 = vsel %vm1077, %v846, 0
  %v1082 = vsel %vm1077, %v848, 0
  %1084 = vmatprep.subr.mxu0 %v1030
  %1085 = vmatpush1.msra.mxu0 %v1029
  %1086 = vmatprep.subr.mxu0 %v1018
  %1087 = vmatpush1.msra.mxu0 %v1017
  %1088 = vmatprep.subr.mxu0 %v1006
  %1089 = vmatpush1.msra.mxu0 %v1005
  %1090 = vmatprep.subr.mxu0 %v994
  %1091 = vmatpush1.msra.mxu0 %v993
  %1092 = vmatprep.subr.mxu0 %v982
  %1093 = vmatpush1.msra.mxu0 %v981
  %1094 = vmatprep.subr.mxu0 %v970
  %1095 = vmatpush1.msra.mxu0 %v969
  %1096 = vmatprep.subr.mxu0 %v958
  %1097 = vmatpush1.msra.mxu0 %v957
  %1098 = vmatprep.subr.mxu0 %v946
  %1099 = vmatpush1.msra.mxu0 %v945
  %1100 = vmatprep.subr.mxu0 %v934
  %1101 = vmatpush1.msra.mxu0 %v933
  %1102 = vmatprep.subr.mxu0 %v922
  %1103 = vmatpush1.msra.mxu0 %v921
  %1104 = vmatprep.subr.mxu0 %v910
  %1105 = vmatpush1.msra.mxu0 %v909
  %1106 = vmatprep.subr.mxu0 %v898
  %1107 = vmatpush1.msra.mxu0 %v897
  %1108 = vmatprep.subr.mxu0 %v886
  %1109 = vmatpush1.msra.mxu0 %v885
  %1110 = vmatprep.subr.mxu0 %v874
  %1111 = vmatpush1.msra.mxu0 %v873
  %1112 = vmatprep.subr.mxu0 %v862
  %1113 = vmatpush1.msra.mxu0 %v861
  %1114 = vmatprep.subr.mxu0 %v850
  %1115 = vmatpush1.msra.mxu0 %v849
  %1116 = vmatprep.subr.mxu0 0.0
  %1117 = vmatpush2.msra.mxu0 0.0
  %1118 = vmatprep.subr.mxu0 0.0
  %1119 = vmatpush2.msra.mxu0 0.0
  %1120 = vmatprep.subr.mxu0 0.0
  %1121 = vmatpush2.msra.mxu0 0.0
  %1122 = vmatprep.subr.mxu0 0.0
  %1123 = vmatpush2.msra.mxu0 0.0
  %1124 = vmatprep.subr.mxu0 0.0
  %1125 = vmatpush2.msra.mxu0 0.0
  %1126 = vmatprep.subr.mxu0 0.0
  %1127 = vmatpush2.msra.mxu0 0.0
  %1128 = vmatprep.subr.mxu0 0.0
  %1129 = vmatpush2.msra.mxu0 0.0
  %1130 = vmatprep.subr.mxu0 0.0
  %1131 = vmatpush2.msra.mxu0 0.0
  %1132 = vmatprep.subr.mxu0 0.0
  %1133 = vmatpush2.msra.mxu0 0.0
  %1134 = vmatprep.subr.mxu0 0.0
  %1135 = vmatpush2.msra.mxu0 0.0
  %1136 = vmatprep.subr.mxu0 0.0
  %1137 = vmatpush2.msra.mxu0 0.0
  %1138 = vmatprep.subr.mxu0 0.0
  %1139 = vmatpush2.msra.mxu0 0.0
  %1140 = vmatprep.subr.mxu0 0.0
  %1141 = vmatpush2.msra.mxu0 0.0
  %1142 = vmatprep.subr.mxu0 0.0
  %1143 = vmatpush2.msra.mxu0 0.0
  %1144 = vmatprep.subr.mxu0 %v1054
  %1145 = vmatpush2.msra.mxu0 %v1053
  %1146 = vmatprep.subr.mxu0 %v1042
  %1147 = vmatpush2.msra.mxu0 %v1041
  %1148 = vmatprep.mubr.f32.mxu0 %v1079
  %1149 = vmatmul.mubr.f32.gmra.mxu0 %v845
  %v1150 = vpop.f32.mrf.mxu0
  %v1151 = vadd.f32 %v1070, %v1150
  %v1152 = vpop.f32.mrf.mxu0
  %v1153 = vadd.f32 %v1070, %v1152
  %1154 = vmatprep.mubr.f32.mxu0 %v1082
  %1155 = vmatmul.mubr.f32.gmra.mxu0 %v847
  %v1156 = vpop.f32.mrf.mxu0
  %v1157 = vadd.f32 %v1075, %v1156
  %v1158 = vpop.f32.mrf.mxu0
  %v1159 = vadd.f32 %v1075, %v1158
  %1160 = vdwg.mxu0
  %1161 = vmatprep.subr.mxu0 %v1032
  %1162 = vmatpush1.msra.mxu0 %v1031
  %1163 = vmatprep.subr.mxu0 %v1020
  %1164 = vmatpush1.msra.mxu0 %v1019
  %1165 = vmatprep.subr.mxu0 %v1008
  %1166 = vmatpush1.msra.mxu0 %v1007
  %1167 = vmatprep.subr.mxu0 %v996
  %1168 = vmatpush1.msra.mxu0 %v995
  %1169 = vmatprep.subr.mxu0 %v984
  %1170 = vmatpush1.msra.mxu0 %v983
  %1171 = vmatprep.subr.mxu0 %v972
  %1172 = vmatpush1.msra.mxu0 %v971
  %1173 = vmatprep.subr.mxu0 %v960
  %1174 = vmatpush1.msra.mxu0 %v959
  %1175 = vmatprep.subr.mxu0 %v948
  %1176 = vmatpush1.msra.mxu0 %v947
  %1177 = vmatprep.subr.mxu0 %v936
  %1178 = vmatpush1.msra.mxu0 %v935
  %1179 = vmatprep.subr.mxu0 %v924
  %1180 = vmatpush1.msra.mxu0 %v923
  %1181 = vmatprep.subr.mxu0 %v912
  %1182 = vmatpush1.msra.mxu0 %v911
  %1183 = vmatprep.subr.mxu0 %v900
  %1184 = vmatpush1.msra.mxu0 %v899
  %1185 = vmatprep.subr.mxu0 %v888
  %1186 = vmatpush1.msra.mxu0 %v887
  %1187 = vmatprep.subr.mxu0 %v876
  %1188 = vmatpush1.msra.mxu0 %v875
  %1189 = vmatprep.subr.mxu0 %v864
  %1190 = vmatpush1.msra.mxu0 %v863
  %1191 = vmatprep.subr.mxu0 %v852
  %1192 = vmatpush1.msra.mxu0 %v851
  %1193 = vmatprep.subr.mxu0 0.0
  %1194 = vmatpush2.msra.mxu0 0.0
  %1195 = vmatprep.subr.mxu0 0.0
  %1196 = vmatpush2.msra.mxu0 0.0
  %1197 = vmatprep.subr.mxu0 0.0
  %1198 = vmatpush2.msra.mxu0 0.0
  %1199 = vmatprep.subr.mxu0 0.0
  %1200 = vmatpush2.msra.mxu0 0.0
  %1201 = vmatprep.subr.mxu0 0.0
  %1202 = vmatpush2.msra.mxu0 0.0
  %1203 = vmatprep.subr.mxu0 0.0
  %1204 = vmatpush2.msra.mxu0 0.0
  %1205 = vmatprep.subr.mxu0 0.0
  %1206 = vmatpush2.msra.mxu0 0.0
  %1207 = vmatprep.subr.mxu0 0.0
  %1208 = vmatpush2.msra.mxu0 0.0
  %1209 = vmatprep.subr.mxu0 0.0
  %1210 = vmatpush2.msra.mxu0 0.0
  %1211 = vmatprep.subr.mxu0 0.0
  %1212 = vmatpush2.msra.mxu0 0.0
  %1213 = vmatprep.subr.mxu0 0.0
  %1214 = vmatpush2.msra.mxu0 0.0
  %1215 = vmatprep.subr.mxu0 0.0
  %1216 = vmatpush2.msra.mxu0 0.0
  %1217 = vmatprep.subr.mxu0 0.0
  %1218 = vmatpush2.msra.mxu0 0.0
  %1219 = vmatprep.subr.mxu0 0.0
  %1220 = vmatpush2.msra.mxu0 0.0
  %1221 = vmatprep.subr.mxu0 %v1056
  %1222 = vmatpush2.msra.mxu0 %v1055
  %1223 = vmatprep.subr.mxu0 %v1044
  %1224 = vmatpush2.msra.mxu0 %v1043
  %1225 = vmatprep.mubr.f32.mxu0 %v1079
  %1226 = vmatmul.mubr.f32.gmra.mxu0 %v845
  %v1227 = vpop.f32.mrf.mxu0
  %v1228 = vadd.f32 %v1070, %v1227
  %v1229 = vpop.f32.mrf.mxu0
  %v1230 = vadd.f32 %v1070, %v1229
  %1231 = vmatprep.mubr.f32.mxu0 %v1082
  %1232 = vmatmul.mubr.f32.gmra.mxu0 %v847
  %v1233 = vpop.f32.mrf.mxu0
  %v1234 = vadd.f32 %v1075, %v1233
  %v1235 = vpop.f32.mrf.mxu0
  %v1236 = vadd.f32 %v1075, %v1235
  %1237 = vdwg.mxu0
  %1238 = vmatprep.subr.mxu0 %v1034
  %1239 = vmatpush1.msra.mxu0 %v1033
  %1240 = vmatprep.subr.mxu0 %v1022
  %1241 = vmatpush1.msra.mxu0 %v1021
  %1242 = vmatprep.subr.mxu0 %v1010
  %1243 = vmatpush1.msra.mxu0 %v1009
  %1244 = vmatprep.subr.mxu0 %v998
  %1245 = vmatpush1.msra.mxu0 %v997
  %1246 = vmatprep.subr.mxu0 %v986
  %1247 = vmatpush1.msra.mxu0 %v985
  %1248 = vmatprep.subr.mxu0 %v974
  %1249 = vmatpush1.msra.mxu0 %v973
  %1250 = vmatprep.subr.mxu0 %v962
  %1251 = vmatpush1.msra.mxu0 %v961
  %1252 = vmatprep.subr.mxu0 %v950
  %1253 = vmatpush1.msra.mxu0 %v949
  %1254 = vmatprep.subr.mxu0 %v938
  %1255 = vmatpush1.msra.mxu0 %v937
  %1256 = vmatprep.subr.mxu0 %v926
  %1257 = vmatpush1.msra.mxu0 %v925
  %1258 = vmatprep.subr.mxu0 %v914
  %1259 = vmatpush1.msra.mxu0 %v913
  %1260 = vmatprep.subr.mxu0 %v902
  %1261 = vmatpush1.msra.mxu0 %v901
  %1262 = vmatprep.subr.mxu0 %v890
  %1263 = vmatpush1.msra.mxu0 %v889
  %1264 = vmatprep.subr.mxu0 %v878
  %1265 = vmatpush1.msra.mxu0 %v877
  %1266 = vmatprep.subr.mxu0 %v866
  %1267 = vmatpush1.msra.mxu0 %v865
  %1268 = vmatprep.subr.mxu0 %v854
  %1269 = vmatpush1.msra.mxu0 %v853
  %1270 = vmatprep.subr.mxu0 0.0
  %1271 = vmatpush2.msra.mxu0 0.0
  %1272 = vmatprep.subr.mxu0 0.0
  %1273 = vmatpush2.msra.mxu0 0.0
  %1274 = vmatprep.subr.mxu0 0.0
  %1275 = vmatpush2.msra.mxu0 0.0
  %1276 = vmatprep.subr.mxu0 0.0
  %1277 = vmatpush2.msra.mxu0 0.0
  %1278 = vmatprep.subr.mxu0 0.0
  %1279 = vmatpush2.msra.mxu0 0.0
  %1280 = vmatprep.subr.mxu0 0.0
  %1281 = vmatpush2.msra.mxu0 0.0
  %1282 = vmatprep.subr.mxu0 0.0
  %1283 = vmatpush2.msra.mxu0 0.0
  %1284 = vmatprep.subr.mxu0 0.0
  %1285 = vmatpush2.msra.mxu0 0.0
  %1286 = vmatprep.subr.mxu0 0.0
  %1287 = vmatpush2.msra.mxu0 0.0
  %1288 = vmatprep.subr.mxu0 0.0
  %1289 = vmatpush2.msra.mxu0 0.0
  %1290 = vmatprep.subr.mxu0 0.0
  %1291 = vmatpush2.msra.mxu0 0.0
  %1292 = vmatprep.subr.mxu0 0.0
  %1293 = vmatpush2.msra.mxu0 0.0
  %1294 = vmatprep.subr.mxu0 0.0
  %1295 = vmatpush2.msra.mxu0 0.0
  %1296 = vmatprep.subr.mxu0 0.0
  %1297 = vmatpush2.msra.mxu0 0.0
  %1298 = vmatprep.subr.mxu0 %v1058
  %1299 = vmatpush2.msra.mxu0 %v1057
  %1300 = vmatprep.subr.mxu0 %v1046
  %1301 = vmatpush2.msra.mxu0 %v1045
  %1302 = vmatprep.mubr.f32.mxu0 %v1079
  %1303 = vmatmul.mubr.f32.gmra.mxu0 %v845
  %v1304 = vpop.f32.mrf.mxu0
  %v1305 = vadd.f32 %v1070, %v1304
  %v1306 = vpop.f32.mrf.mxu0
  %v1307 = vadd.f32 %v1070, %v1306
  %1308 = vmatprep.mubr.f32.mxu0 %v1082
  %1309 = vmatmul.mubr.f32.gmra.mxu0 %v847
  %v1310 = vpop.f32.mrf.mxu0
  %v1311 = vadd.f32 %v1075, %v1310
  %v1312 = vpop.f32.mrf.mxu0
  %v1313 = vadd.f32 %v1075, %v1312
  %1314 = vdwg.mxu0
  %1315 = vmatprep.subr.mxu0 %v1036
  %1316 = vmatpush1.msra.mxu0 %v1035
  %1317 = vmatprep.subr.mxu0 %v1024
  %1318 = vmatpush1.msra.mxu0 %v1023
  %1319 = vmatprep.subr.mxu0 %v1012
  %1320 = vmatpush1.msra.mxu0 %v1011
  %1321 = vmatprep.subr.mxu0 %v1000
  %1322 = vmatpush1.msra.mxu0 %v999
  %1323 = vmatprep.subr.mxu0 %v988
  %1324 = vmatpush1.msra.mxu0 %v987
  %1325 = vmatprep.subr.mxu0 %v976
  %1326 = vmatpush1.msra.mxu0 %v975
  %1327 = vmatprep.subr.mxu0 %v964
  %1328 = vmatpush1.msra.mxu0 %v963
  %1329 = vmatprep.subr.mxu0 %v952
  %1330 = vmatpush1.msra.mxu0 %v951
  %1331 = vmatprep.subr.mxu0 %v940
  %1332 = vmatpush1.msra.mxu0 %v939
  %1333 = vmatprep.subr.mxu0 %v928
  %1334 = vmatpush1.msra.mxu0 %v927
  %1335 = vmatprep.subr.mxu0 %v916
  %1336 = vmatpush1.msra.mxu0 %v915
  %1337 = vmatprep.subr.mxu0 %v904
  %1338 = vmatpush1.msra.mxu0 %v903
  %1339 = vmatprep.subr.mxu0 %v892
  %1340 = vmatpush1.msra.mxu0 %v891
  %1341 = vmatprep.subr.mxu0 %v880
  %1342 = vmatpush1.msra.mxu0 %v879
  %1343 = vmatprep.subr.mxu0 %v868
  %1344 = vmatpush1.msra.mxu0 %v867
  %1345 = vmatprep.subr.mxu0 %v856
  %1346 = vmatpush1.msra.mxu0 %v855
  %1347 = vmatprep.subr.mxu0 0.0
  %1348 = vmatpush2.msra.mxu0 0.0
  %1349 = vmatprep.subr.mxu0 0.0
  %1350 = vmatpush2.msra.mxu0 0.0
  %1351 = vmatprep.subr.mxu0 0.0
  %1352 = vmatpush2.msra.mxu0 0.0
  %1353 = vmatprep.subr.mxu0 0.0
  %1354 = vmatpush2.msra.mxu0 0.0
  %1355 = vmatprep.subr.mxu0 0.0
  %1356 = vmatpush2.msra.mxu0 0.0
  %1357 = vmatprep.subr.mxu0 0.0
  %1358 = vmatpush2.msra.mxu0 0.0
  %1359 = vmatprep.subr.mxu0 0.0
  %1360 = vmatpush2.msra.mxu0 0.0
  %1361 = vmatprep.subr.mxu0 0.0
  %1362 = vmatpush2.msra.mxu0 0.0
  %1363 = vmatprep.subr.mxu0 0.0
  %1364 = vmatpush2.msra.mxu0 0.0
  %1365 = vmatprep.subr.mxu0 0.0
  %1366 = vmatpush2.msra.mxu0 0.0
  %1367 = vmatprep.subr.mxu0 0.0
  %1368 = vmatpush2.msra.mxu0 0.0
  %1369 = vmatprep.subr.mxu0 0.0
  %1370 = vmatpush2.msra.mxu0 0.0
  %1371 = vmatprep.subr.mxu0 0.0
  %1372 = vmatpush2.msra.mxu0 0.0
  %1373 = vmatprep.subr.mxu0 0.0
  %1374 = vmatpush2.msra.mxu0 0.0
  %1375 = vmatprep.subr.mxu0 %v1060
  %1376 = vmatpush2.msra.mxu0 %v1059
  %1377 = vmatprep.subr.mxu0 %v1048
  %1378 = vmatpush2.msra.mxu0 %v1047
  %1379 = vmatprep.mubr.f32.mxu0 %v1079
  %1380 = vmatmul.mubr.f32.gmra.mxu0 %v845
  %v1381 = vpop.f32.mrf.mxu0
  %v1382 = vadd.f32 %v1070, %v1381
  %v1383 = vpop.f32.mrf.mxu0
  %v1384 = vadd.f32 %v1070, %v1383
  %1385 = vmatprep.mubr.f32.mxu0 %v1082
  %1386 = vmatmul.mubr.f32.gmra.mxu0 %v847
  %v1387 = vpop.f32.mrf.mxu0
  %v1388 = vadd.f32 %v1075, %v1387
  %v1389 = vpop.f32.mrf.mxu0
  %v1390 = vadd.f32 %v1075, %v1389
  %1391 = vdwg.mxu0
  %1392 = vmatprep.subr.mxu0 %v1038
  %1393 = vmatpush1.msra.mxu0 %v1037
  %1394 = vmatprep.subr.mxu0 %v1026
  %1395 = vmatpush1.msra.mxu0 %v1025
  %1396 = vmatprep.subr.mxu0 %v1014
  %1397 = vmatpush1.msra.mxu0 %v1013
  %1398 = vmatprep.subr.mxu0 %v1002
  %1399 = vmatpush1.msra.mxu0 %v1001
  %1400 = vmatprep.subr.mxu0 %v990
  %1401 = vmatpush1.msra.mxu0 %v989
  %1402 = vmatprep.subr.mxu0 %v978
  %1403 = vmatpush1.msra.mxu0 %v977
  %1404 = vmatprep.subr.mxu0 %v966
  %1405 = vmatpush1.msra.mxu0 %v965
  %1406 = vmatprep.subr.mxu0 %v954
  %1407 = vmatpush1.msra.mxu0 %v953
  %1408 = vmatprep.subr.mxu0 %v942
  %1409 = vmatpush1.msra.mxu0 %v941
  %1410 = vmatprep.subr.mxu0 %v930
  %1411 = vmatpush1.msra.mxu0 %v929
  %1412 = vmatprep.subr.mxu0 %v918
  %1413 = vmatpush1.msra.mxu0 %v917
  %1414 = vmatprep.subr.mxu0 %v906
  %1415 = vmatpush1.msra.mxu0 %v905
  %1416 = vmatprep.subr.mxu0 %v894
  %1417 = vmatpush1.msra.mxu0 %v893
  %1418 = vmatprep.subr.mxu0 %v882
  %1419 = vmatpush1.msra.mxu0 %v881
  %1420 = vmatprep.subr.mxu0 %v870
  %1421 = vmatpush1.msra.mxu0 %v869
  %1422 = vmatprep.subr.mxu0 %v858
  %1423 = vmatpush1.msra.mxu0 %v857
  %1424 = vmatprep.subr.mxu0 0.0
  %1425 = vmatpush2.msra.mxu0 0.0
  %1426 = vmatprep.subr.mxu0 0.0
  %1427 = vmatpush2.msra.mxu0 0.0
  %1428 = vmatprep.subr.mxu0 0.0
  %1429 = vmatpush2.msra.mxu0 0.0
  %1430 = vmatprep.subr.mxu0 0.0
  %1431 = vmatpush2.msra.mxu0 0.0
  %1432 = vmatprep.subr.mxu0 0.0
  %1433 = vmatpush2.msra.mxu0 0.0
  %1434 = vmatprep.subr.mxu0 0.0
  %1435 = vmatpush2.msra.mxu0 0.0
  %1436 = vmatprep.subr.mxu0 0.0
  %1437 = vmatpush2.msra.mxu0 0.0
  %1438 = vmatprep.subr.mxu0 0.0
  %1439 = vmatpush2.msra.mxu0 0.0
  %1440 = vmatprep.subr.mxu0 0.0
  %1441 = vmatpush2.msra.mxu0 0.0
  %1442 = vmatprep.subr.mxu0 0.0
  %1443 = vmatpush2.msra.mxu0 0.0
  %1444 = vmatprep.subr.mxu0 0.0
  %1445 = vmatpush2.msra.mxu0 0.0
  %1446 = vmatprep.subr.mxu0 0.0
  %1447 = vmatpush2.msra.mxu0 0.0
  %1448 = vmatprep.subr.mxu0 0.0
  %1449 = vmatpush2.msra.mxu0 0.0
  %1450 = vmatprep.subr.mxu0 0.0
  %1451 = vmatpush2.msra.mxu0 0.0
  %1452 = vmatprep.subr.mxu0 %v1062
  %1453 = vmatpush2.msra.mxu0 %v1061
  %1454 = vmatprep.subr.mxu0 %v1050
  %1455 = vmatpush2.msra.mxu0 %v1049
  %1456 = vmatprep.mubr.f32.mxu0 %v1079
  %1457 = vmatmul.mubr.f32.gmra.mxu0 %v845
  %v1458 = vpop.f32.mrf.mxu0
  %v1459 = vadd.f32 %v1070, %v1458
  %v1460 = vpop.f32.mrf.mxu0
  %v1461 = vadd.f32 %v1070, %v1460
  %1462 = vmatprep.mubr.f32.mxu0 %v1082
  %1463 = vmatmul.mubr.f32.gmra.mxu0 %v847
  %v1464 = vpop.f32.mrf.mxu0
  %v1465 = vadd.f32 %v1075, %v1464
  %v1466 = vpop.f32.mrf.mxu0
  %v1467 = vadd.f32 %v1075, %v1466
  %1468 = vdwg.mxu0
  %1469 = vmatprep.subr.mxu0 %v1040
  %1470 = vmatpush1.msra.mxu0 %v1039
  %1471 = vmatprep.subr.mxu0 %v1028
  %1472 = vmatpush1.msra.mxu0 %v1027
  %1473 = vmatprep.subr.mxu0 %v1016
  %1474 = vmatpush1.msra.mxu0 %v1015
  %1475 = vmatprep.subr.mxu0 %v1004
  %1476 = vmatpush1.msra.mxu0 %v1003
  %1477 = vmatprep.subr.mxu0 %v992
  %1478 = vmatpush1.msra.mxu0 %v991
  %1479 = vmatprep.subr.mxu0 %v980
  %1480 = vmatpush1.msra.mxu0 %v979
  %1481 = vmatprep.subr.mxu0 %v968
  %1482 = vmatpush1.msra.mxu0 %v967
  %1483 = vmatprep.subr.mxu0 %v956
  %1484 = vmatpush1.msra.mxu0 %v955
  %1485 = vmatprep.subr.mxu0 %v944
  %1486 = vmatpush1.msra.mxu0 %v943
  %1487 = vmatprep.subr.mxu0 %v932
  %1488 = vmatpush1.msra.mxu0 %v931
  %1489 = vmatprep.subr.mxu0 %v920
  %1490 = vmatpush1.msra.mxu0 %v919
  %1491 = vmatprep.subr.mxu0 %v908
  %1492 = vmatpush1.msra.mxu0 %v907
  %1493 = vmatprep.subr.mxu0 %v896
  %1494 = vmatpush1.msra.mxu0 %v895
  %1495 = vmatprep.subr.mxu0 %v884
  %1496 = vmatpush1.msra.mxu0 %v883
  %1497 = vmatprep.subr.mxu0 %v872
  %1498 = vmatpush1.msra.mxu0 %v871
  %1499 = vmatprep.subr.mxu0 %v860
  %1500 = vmatpush1.msra.mxu0 %v859
  %1501 = vmatprep.subr.mxu0 0.0
  %1502 = vmatpush2.msra.mxu0 0.0
  %1503 = vmatprep.subr.mxu0 0.0
  %1504 = vmatpush2.msra.mxu0 0.0
  %1505 = vmatprep.subr.mxu0 0.0
  %1506 = vmatpush2.msra.mxu0 0.0
  %1507 = vmatprep.subr.mxu0 0.0
  %1508 = vmatpush2.msra.mxu0 0.0
  %1509 = vmatprep.subr.mxu0 0.0
  %1510 = vmatpush2.msra.mxu0 0.0
  %1511 = vmatprep.subr.mxu0 0.0
  %1512 = vmatpush2.msra.mxu0 0.0
  %1513 = vmatprep.subr.mxu0 0.0
  %1514 = vmatpush2.msra.mxu0 0.0
  %1515 = vmatprep.subr.mxu0 0.0
  %1516 = vmatpush2.msra.mxu0 0.0
  %1517 = vmatprep.subr.mxu0 0.0
  %1518 = vmatpush2.msra.mxu0 0.0
  %1519 = vmatprep.subr.mxu0 0.0
  %1520 = vmatpush2.msra.mxu0 0.0
  %1521 = vmatprep.subr.mxu0 0.0
  %1522 = vmatpush2.msra.mxu0 0.0
  %1523 = vmatprep.subr.mxu0 0.0
  %1524 = vmatpush2.msra.mxu0 0.0
  %1525 = vmatprep.subr.mxu0 0.0
  %1526 = vmatpush2.msra.mxu0 0.0
  %1527 = vmatprep.subr.mxu0 0.0
  %1528 = vmatpush2.msra.mxu0 0.0
  %1529 = vmatprep.subr.mxu0 %v1064
  %1530 = vmatpush2.msra.mxu0 %v1063
  %1531 = vmatprep.subr.mxu0 %v1052
  %1532 = vmatpush2.msra.mxu0 %v1051
  %1533 = vmatprep.mubr.f32.mxu0 %v1079
  %1534 = vmatmul.mubr.f32.gmra.mxu0 %v845
  %v1535 = vpop.f32.mrf.mxu0
  %v1536 = vadd.f32 %v1070, %v1535
  %v1537 = vpop.f32.mrf.mxu0
  %v1538 = vadd.f32 %v1070, %v1537
  %1539 = vmatprep.mubr.f32.mxu0 %v1082
  %1540 = vmatmul.mubr.f32.gmra.mxu0 %v847
  %v1541 = vpop.f32.mrf.mxu0
  %v1542 = vadd.f32 %v1075, %v1541
  %v1543 = vpop.f32.mrf.mxu0
  %v1544 = vadd.f32 %v1075, %v1543
  %1545 = vdwg.mxu0
  %v1546 = vmax.f32 %v1151, 0.0
  %v1547 = vmax.f32 %v1153, 0.0
  %v1548 = vmax.f32 %v1228, 0.0
  %v1549 = vmax.f32 %v1230, 0.0
  %v1550 = vmax.f32 %v1305, 0.0
  %v1551 = vmax.f32 %v1307, 0.0
  %v1552 = vmax.f32 %v1382, 0.0
  %v1553 = vmax.f32 %v1384, 0.0
  %v1554 = vmax.f32 %v1459, 0.0
  %v1555 = vmax.f32 %v1461, 0.0
  %v1556 = vmax.f32 %v1536, 0.0
  %v1557 = vmax.f32 %v1538, 0.0
  %v1558 = vmax.f32 %v1157, 0.0
  %v1559 = vmax.f32 %v1159, 0.0
  %v1560 = vmax.f32 %v1234, 0.0
  %v1561 = vmax.f32 %v1236, 0.0
  %v1562 = vmax.f32 %v1311, 0.0
  %v1563 = vmax.f32 %v1313, 0.0
  %v1564 = vmax.f32 %v1388, 0.0
  %v1565 = vmax.f32 %v1390, 0.0
  %v1566 = vmax.f32 %v1465, 0.0
  %v1567 = vmax.f32 %v1467, 0.0
  %v1568 = vmax.f32 %v1542, 0.0
  %v1569 = vmax.f32 %v1544, 0.0
  %v1572 = vlaneseq
  %v1573 = vshrl.u32 %v1572, 7
  %v1574 = vsub.s32 0, %v1573
  %v1575 = vrot.slane %v17, %v1574
  %v1576 = vlaneseq
  %v1577 = vshrl.u32 %v1576, 7
  %v1578 = vsub.s32 1, %v1577
  %v1579 = vrot.slane %v17, %v1578
  %v1580 = vlaneseq
  %v1581 = vshrl.u32 %v1580, 7
  %v1582 = vsub.s32 2, %v1581
  %v1583 = vrot.slane %v17, %v1582
  %v1584 = vlaneseq
  %v1585 = vshrl.u32 %v1584, 7
  %v1586 = vsub.s32 3, %v1585
  %v1587 = vrot.slane %v17, %v1586
  %v1588 = vlaneseq
  %v1589 = vshrl.u32 %v1588, 7
  %v1590 = vsub.s32 4, %v1589
  %v1591 = vrot.slane %v17, %v1590
  %v1592 = vlaneseq
  %v1593 = vshrl.u32 %v1592, 7
  %v1594 = vsub.s32 5, %v1593
  %v1595 = vrot.slane %v17, %v1594
  %v1596 = vlaneseq
  %v1597 = vshrl.u32 %v1596, 7
  %v1598 = vsub.s32 6, %v1597
  %v1599 = vrot.slane %v17, %v1598
  %v1600 = vlaneseq
  %v1601 = vshrl.u32 %v1600, 7
  %v1602 = vsub.s32 7, %v1601
  %v1603 = vrot.slane %v17, %v1602
  %v1604 = vlaneseq
  %v1605 = vshrl.u32 %v1604, 7
  %v1606 = vsub.s32 0, %v1605
  %v1607 = vrot.slane %v18, %v1606
  %v1608 = vlaneseq
  %v1609 = vshrl.u32 %v1608, 7
  %v1610 = vsub.s32 1, %v1609
  %v1611 = vrot.slane %v18, %v1610
  %v1612 = vlaneseq
  %v1613 = vshrl.u32 %v1612, 7
  %v1614 = vsub.s32 2, %v1613
  %v1615 = vrot.slane %v18, %v1614
  %v1616 = vlaneseq
  %v1617 = vshrl.u32 %v1616, 7
  %v1618 = vsub.s32 3, %v1617
  %v1619 = vrot.slane %v18, %v1618
  %v1632 = vmul.f32 %v1546, %v1575
  %v1633 = vmul.f32 %v1547, %v1579
  %v1634 = vmul.f32 %v1548, %v1583
  %v1635 = vmul.f32 %v1549, %v1587
  %v1636 = vmul.f32 %v1550, %v1591
  %v1637 = vmul.f32 %v1551, %v1595
  %v1638 = vmul.f32 %v1552, %v1599
  %v1639 = vmul.f32 %v1553, %v1603
  %v1640 = vmul.f32 %v1554, %v1607
  %v1641 = vmul.f32 %v1555, %v1611
  %v1642 = vmul.f32 %v1556, %v1615
  %v1643 = vmul.f32 %v1557, %v1619
  %v1644 = vmul.f32 %v1558, %v1575
  %v1645 = vmul.f32 %v1559, %v1579
  %v1646 = vmul.f32 %v1560, %v1583
  %v1647 = vmul.f32 %v1561, %v1587
  %v1648 = vmul.f32 %v1562, %v1591
  %v1649 = vmul.f32 %v1563, %v1595
  %v1650 = vmul.f32 %v1564, %v1599
  %v1651 = vmul.f32 %v1565, %v1603
  %v1652 = vmul.f32 %v1566, %v1607
  %v1653 = vmul.f32 %v1567, %v1611
  %v1654 = vmul.f32 %v1568, %v1615
  %v1655 = vmul.f32 %v1569, %v1619
  %1656 = vrot.lane.b32.xlu0 %v1632, 19
  %v1657 = vpop.permute.xlu0 %1656
  %1658 = vrot.lane.b32.xlu0 %v1644, 19
  %v1659 = vpop.permute.xlu0 %1658
  %1660 = vrot.lane.b32.xlu0 %v1633, 19
  %v1661 = vpop.permute.xlu0 %1660
  %1662 = vrot.lane.b32.xlu0 %v1645, 19
  %v1663 = vpop.permute.xlu0 %1662
  %1664 = vrot.lane.b32.xlu0 %v1634, 19
  %v1665 = vpop.permute.xlu0 %1664
  %1666 = vrot.lane.b32.xlu0 %v1646, 19
  %v1667 = vpop.permute.xlu0 %1666
  %1668 = vrot.lane.b32.xlu0 %v1635, 19
  %v1669 = vpop.permute.xlu0 %1668
  %1670 = vrot.lane.b32.xlu0 %v1647, 19
  %v1671 = vpop.permute.xlu0 %1670
  %1672 = vrot.lane.b32.xlu0 %v1636, 19
  %v1673 = vpop.permute.xlu0 %1672
  %1674 = vrot.lane.b32.xlu0 %v1648, 19
  %v1675 = vpop.permute.xlu0 %1674
  %1676 = vrot.lane.b32.xlu0 %v1637, 19
  %v1677 = vpop.permute.xlu0 %1676
  %1678 = vrot.lane.b32.xlu0 %v1649, 19
  %v1679 = vpop.permute.xlu0 %1678
  %1680 = vrot.lane.b32.xlu0 %v1638, 19
  %v1681 = vpop.permute.xlu0 %1680
  %1682 = vrot.lane.b32.xlu0 %v1650, 19
  %v1683 = vpop.permute.xlu0 %1682
  %1684 = vrot.lane.b32.xlu0 %v1639, 19
  %v1685 = vpop.permute.xlu0 %1684
  %1686 = vrot.lane.b32.xlu0 %v1651, 19
  %v1687 = vpop.permute.xlu0 %1686
  %1688 = vrot.lane.b32.xlu0 %v1640, 19
  %v1689 = vpop.permute.xlu0 %1688
  %1690 = vrot.lane.b32.xlu0 %v1652, 19
  %v1691 = vpop.permute.xlu0 %1690
  %1692 = vrot.lane.b32.xlu0 %v1641, 19
  %v1693 = vpop.permute.xlu0 %1692
  %1694 = vrot.lane.b32.xlu0 %v1653, 19
  %v1695 = vpop.permute.xlu0 %1694
  %1696 = vrot.lane.b32.xlu0 %v1642, 19
  %v1697 = vpop.permute.xlu0 %1696
  %1698 = vrot.lane.b32.xlu0 %v1654, 19
  %v1699 = vpop.permute.xlu0 %1698
  %1700 = vrot.lane.b32.xlu0 %v1643, 19
  %v1701 = vpop.permute.xlu0 %1700
  %1702 = vrot.lane.b32.xlu0 %v1655, 19
  %v1703 = vpop.permute.xlu0 %1702
  %v1704 = vsel %vm93, %v1697, %v1701
  %v1705 = vsel %vm93, %v1699, %v1703
  %v1706 = vsel %vm93, %v1693, %v1697
  %v1707 = vsel %vm93, %v1695, %v1699
  %v1708 = vsel %vm93, %v1689, %v1693
  %v1709 = vsel %vm93, %v1691, %v1695
  %v1710 = vsel %vm93, %v1685, %v1689
  %v1711 = vsel %vm93, %v1687, %v1691
  %v1712 = vsel %vm93, %v1681, %v1685
  %v1713 = vsel %vm93, %v1683, %v1687
  %v1714 = vsel %vm93, %v1677, %v1681
  %v1715 = vsel %vm93, %v1679, %v1683
  %v1716 = vsel %vm93, %v1673, %v1677
  %v1717 = vsel %vm93, %v1675, %v1679
  %v1718 = vsel %vm93, %v1669, %v1673
  %v1719 = vsel %vm93, %v1671, %v1675
  %v1720 = vsel %vm93, %v1665, %v1669
  %v1721 = vsel %vm93, %v1667, %v1671
  %v1722 = vsel %vm93, %v1661, %v1665
  %v1723 = vsel %vm93, %v1663, %v1667
  %v1724 = vsel %vm93, %v1657, %v1661
  %v1725 = vsel %vm93, %v1659, %v1663
  %v1726 = vsel %vm93, %v1701, %v1657
  %v1727 = vsel %vm93, %v1703, %v1659
  %1728 = vst [vmem:[#allocation2] sm:$0xff] %v1726
  %1729 = vst [vmem:[#allocation2 + $0x8] sm:$0xff] %v1724
  %1730 = vst [vmem:[#allocation2 + $0x10] sm:$0xff] %v1722
  %1731 = vst [vmem:[#allocation2 + $0x18] sm:$0xff] %v1720
  %1732 = vst [vmem:[#allocation2 + $0x20] sm:$0xff] %v1718
  %1733 = vst [vmem:[#allocation2 + $0x28] sm:$0xff] %v1716
  %1734 = vst [vmem:[#allocation2 + $0x30] sm:$0xff] %v1714
  %1735 = vst [vmem:[#allocation2 + $0x38] sm:$0xff] %v1712
  %1736 = vst [vmem:[#allocation2 + $0x40] sm:$0xff] %v1710
  %1737 = vst [vmem:[#allocation2 + $0x48] sm:$0xff] %v1708
  %1738 = vst [vmem:[#allocation2 + $0x50] sm:$0xff] %v1706
  %1739 = vst [vmem:[#allocation2 + $0x58] sm:$0xff] %v1704
  %1740 = vst [vmem:[#allocation2 + $0x60] sm:$0xff] %v1727
  %1741 = vst [vmem:[#allocation2 + $0x68] sm:$0xff] %v1725
  %1742 = vst [vmem:[#allocation2 + $0x70] sm:$0xff] %v1723
  %1743 = vst [vmem:[#allocation2 + $0x78] sm:$0xff] %v1721
  %1744 = vst [vmem:[#allocation2 + $0x80] sm:$0xff] %v1719
  %1745 = vst [vmem:[#allocation2 + $0x88] sm:$0xff] %v1717
  %1746 = vst [vmem:[#allocation2 + $0x90] sm:$0xff] %v1715
  %1747 = vst [vmem:[#allocation2 + $0x98] sm:$0xff] %v1713
  %1748 = vst [vmem:[#allocation2 + $0xa0] sm:$0xff] %v1711
  %1749 = vst [vmem:[#allocation2 + $0xa8] sm:$0xff] %v1709
  %1750 = vst [vmem:[#allocation2 + $0xb0] sm:$0xff] %v1707
  %1751 = vst [vmem:[#allocation2 + $0xb8] sm:$0xff] %v1705
  %1752 = vrot.lane.b32.xlu0 %v1632, 18
  %v1753 = vpop.permute.xlu0 %1752
  %1754 = vrot.lane.b32.xlu0 %v1644, 18
  %v1755 = vpop.permute.xlu0 %1754
  %1756 = vrot.lane.b32.xlu0 %v1633, 18
  %v1757 = vpop.permute.xlu0 %1756
  %1758 = vrot.lane.b32.xlu0 %v1645, 18
  %v1759 = vpop.permute.xlu0 %1758
  %1760 = vrot.lane.b32.xlu0 %v1634, 18
  %v1761 = vpop.permute.xlu0 %1760
  %1762 = vrot.lane.b32.xlu0 %v1646, 18
  %v1763 = vpop.permute.xlu0 %1762
  %1764 = vrot.lane.b32.xlu0 %v1635, 18
  %v1765 = vpop.permute.xlu0 %1764
  %1766 = vrot.lane.b32.xlu0 %v1647, 18
  %v1767 = vpop.permute.xlu0 %1766
  %1768 = vrot.lane.b32.xlu0 %v1636, 18
  %v1769 = vpop.permute.xlu0 %1768
  %1770 = vrot.lane.b32.xlu0 %v1648, 18
  %v1771 = vpop.permute.xlu0 %1770
  %1772 = vrot.lane.b32.xlu0 %v1637, 18
  %v1773 = vpop.permute.xlu0 %1772
  %1774 = vrot.lane.b32.xlu0 %v1649, 18
  %v1775 = vpop.permute.xlu0 %1774
  %1776 = vrot.lane.b32.xlu0 %v1638, 18
  %v1777 = vpop.permute.xlu0 %1776
  %1778 = vrot.lane.b32.xlu0 %v1650, 18
  %v1779 = vpop.permute.xlu0 %1778
  %1780 = vrot.lane.b32.xlu0 %v1639, 18
  %v1781 = vpop.permute.xlu0 %1780
  %1782 = vrot.lane.b32.xlu0 %v1651, 18
  %v1783 = vpop.permute.xlu0 %1782
  %1784 = vrot.lane.b32.xlu0 %v1640, 18
  %v1785 = vpop.permute.xlu0 %1784
  %1786 = vrot.lane.b32.xlu0 %v1652, 18
  %v1787 = vpop.permute.xlu0 %1786
  %1788 = vrot.lane.b32.xlu0 %v1641, 18
  %v1789 = vpop.permute.xlu0 %1788
  %1790 = vrot.lane.b32.xlu0 %v1653, 18
  %v1791 = vpop.permute.xlu0 %1790
  %1792 = vrot.lane.b32.xlu0 %v1642, 18
  %v1793 = vpop.permute.xlu0 %1792
  %1794 = vrot.lane.b32.xlu0 %v1654, 18
  %v1795 = vpop.permute.xlu0 %1794
  %1796 = vrot.lane.b32.xlu0 %v1643, 18
  %v1797 = vpop.permute.xlu0 %1796
  %1798 = vrot.lane.b32.xlu0 %v1655, 18
  %v1799 = vpop.permute.xlu0 %1798
  %v1800 = vsel %vm190, %v1793, %v1797
  %v1801 = vsel %vm190, %v1795, %v1799
  %v1802 = vsel %vm190, %v1789, %v1793
  %v1803 = vsel %vm190, %v1791, %v1795
  %v1804 = vsel %vm190, %v1785, %v1789
  %v1805 = vsel %vm190, %v1787, %v1791
  %v1806 = vsel %vm190, %v1781, %v1785
  %v1807 = vsel %vm190, %v1783, %v1787
  %v1808 = vsel %vm190, %v1777, %v1781
  %v1809 = vsel %vm190, %v1779, %v1783
  %v1810 = vsel %vm190, %v1773, %v1777
  %v1811 = vsel %vm190, %v1775, %v1779
  %v1812 = vsel %vm190, %v1769, %v1773
  %v1813 = vsel %vm190, %v1771, %v1775
  %v1814 = vsel %vm190, %v1765, %v1769
  %v1815 = vsel %vm190, %v1767, %v1771
  %v1816 = vsel %vm190, %v1761, %v1765
  %v1817 = vsel %vm190, %v1763, %v1767
  %v1818 = vsel %vm190, %v1757, %v1761
  %v1819 = vsel %vm190, %v1759, %v1763
  %v1820 = vsel %vm190, %v1753, %v1757
  %v1821 = vsel %vm190, %v1755, %v1759
  %v1822 = vsel %vm190, %v1797, %v1753
  %v1823 = vsel %vm190, %v1799, %v1755
  %1824 = vst [vmem:[#allocation2 + $0x240] sm:$0xff] %v1822
  %1825 = vst [vmem:[#allocation2 + $0x248] sm:$0xff] %v1820
  %1826 = vst [vmem:[#allocation2 + $0x250] sm:$0xff] %v1818
  %1827 = vst [vmem:[#allocation2 + $0x258] sm:$0xff] %v1816
  %1828 = vst [vmem:[#allocation2 + $0x260] sm:$0xff] %v1814
  %1829 = vst [vmem:[#allocation2 + $0x268] sm:$0xff] %v1812
  %1830 = vst [vmem:[#allocation2 + $0x2a0] sm:$0xff] %v1823
  %1831 = vst [vmem:[#allocation2 + $0x2a8] sm:$0xff] %v1821
  %1832 = vst [vmem:[#allocation2 + $0x2b0] sm:$0xff] %v1819
  %1833 = vst [vmem:[#allocation2 + $0x2b8] sm:$0xff] %v1817
  %1834 = vst [vmem:[#allocation2 + $0x2c0] sm:$0xff] %v1815
  %1835 = vst [vmem:[#allocation2 + $0x2c8] sm:$0xff] %v1813
  %1836 = vst [vmem:[#allocation2 + $0xf0] sm:$0xff] %v1810
  %1837 = vst [vmem:[#allocation2 + $0xf8] sm:$0xff] %v1808
  %1838 = vst [vmem:[#allocation2 + $0x100] sm:$0xff] %v1806
  %1839 = vst [vmem:[#allocation2 + $0x108] sm:$0xff] %v1804
  %1840 = vst [vmem:[#allocation2 + $0x110] sm:$0xff] %v1802
  %1841 = vst [vmem:[#allocation2 + $0x118] sm:$0xff] %v1800
  %1842 = vst [vmem:[#allocation2 + $0x150] sm:$0xff] %v1811
  %1843 = vst [vmem:[#allocation2 + $0x158] sm:$0xff] %v1809
  %1844 = vst [vmem:[#allocation2 + $0x160] sm:$0xff] %v1807
  %1845 = vst [vmem:[#allocation2 + $0x168] sm:$0xff] %v1805
  %1846 = vst [vmem:[#allocation2 + $0x170] sm:$0xff] %v1803
  %1847 = vst [vmem:[#allocation2 + $0x178] sm:$0xff] %v1801
  %1848 = vrot.lane.b32.xlu0 %v1632, 17
  %v1849 = vpop.permute.xlu0 %1848
  %1850 = vrot.lane.b32.xlu0 %v1644, 17
  %v1851 = vpop.permute.xlu0 %1850
  %1852 = vrot.lane.b32.xlu0 %v1633, 17
  %v1853 = vpop.permute.xlu0 %1852
  %1854 = vrot.lane.b32.xlu0 %v1645, 17
  %v1855 = vpop.permute.xlu0 %1854
  %1856 = vrot.lane.b32.xlu0 %v1634, 17
  %v1857 = vpop.permute.xlu0 %1856
  %1858 = vrot.lane.b32.xlu0 %v1646, 17
  %v1859 = vpop.permute.xlu0 %1858
  %1860 = vrot.lane.b32.xlu0 %v1635, 17
  %v1861 = vpop.permute.xlu0 %1860
  %1862 = vrot.lane.b32.xlu0 %v1647, 17
  %v1863 = vpop.permute.xlu0 %1862
  %1864 = vrot.lane.b32.xlu0 %v1636, 17
  %v1865 = vpop.permute.xlu0 %1864
  %1866 = vrot.lane.b32.xlu0 %v1648, 17
  %v1867 = vpop.permute.xlu0 %1866
  %1868 = vrot.lane.b32.xlu0 %v1637, 17
  %v1869 = vpop.permute.xlu0 %1868
  %1870 = vrot.lane.b32.xlu0 %v1649, 17
  %v1871 = vpop.permute.xlu0 %1870
  %1872 = vrot.lane.b32.xlu0 %v1638, 17
  %v1873 = vpop.permute.xlu0 %1872
  %1874 = vrot.lane.b32.xlu0 %v1650, 17
  %v1875 = vpop.permute.xlu0 %1874
  %1876 = vrot.lane.b32.xlu0 %v1639, 17
  %v1877 = vpop.permute.xlu0 %1876
  %1878 = vrot.lane.b32.xlu0 %v1651, 17
  %v1879 = vpop.permute.xlu0 %1878
  %1880 = vrot.lane.b32.xlu0 %v1640, 17
  %v1881 = vpop.permute.xlu0 %1880
  %1882 = vrot.lane.b32.xlu0 %v1652, 17
  %v1883 = vpop.permute.xlu0 %1882
  %1884 = vrot.lane.b32.xlu0 %v1641, 17
  %v1885 = vpop.permute.xlu0 %1884
  %1886 = vrot.lane.b32.xlu0 %v1653, 17
  %v1887 = vpop.permute.xlu0 %1886
  %1888 = vrot.lane.b32.xlu0 %v1642, 17
  %v1889 = vpop.permute.xlu0 %1888
  %1890 = vrot.lane.b32.xlu0 %v1654, 17
  %v1891 = vpop.permute.xlu0 %1890
  %1892 = vrot.lane.b32.xlu0 %v1643, 17
  %v1893 = vpop.permute.xlu0 %1892
  %1894 = vrot.lane.b32.xlu0 %v1655, 17
  %v1895 = vpop.permute.xlu0 %1894
  %v1896 = vsel %vm287, %v1889, %v1893
  %v1897 = vsel %vm287, %v1891, %v1895
  %v1898 = vsel %vm287, %v1885, %v1889
  %v1899 = vsel %vm287, %v1887, %v1891
  %v1900 = vsel %vm287, %v1881, %v1885
  %v1901 = vsel %vm287, %v1883, %v1887
  %v1902 = vsel %vm287, %v1877, %v1881
  %v1903 = vsel %vm287, %v1879, %v1883
  %v1904 = vsel %vm287, %v1873, %v1877
  %v1905 = vsel %vm287, %v1875, %v1879
  %v1906 = vsel %vm287, %v1869, %v1873
  %v1907 = vsel %vm287, %v1871, %v1875
  %v1908 = vsel %vm287, %v1865, %v1869
  %v1909 = vsel %vm287, %v1867, %v1871
  %v1910 = vsel %vm287, %v1861, %v1865
  %v1911 = vsel %vm287, %v1863, %v1867
  %v1912 = vsel %vm287, %v1857, %v1861
  %v1913 = vsel %vm287, %v1859, %v1863
  %v1914 = vsel %vm287, %v1853, %v1857
  %v1915 = vsel %vm287, %v1855, %v1859
  %v1916 = vsel %vm287, %v1849, %v1853
  %v1917 = vsel %vm287, %v1851, %v1855
  %v1918 = vsel %vm287, %v1893, %v1849
  %v1919 = vsel %vm287, %v1895, %v1851
  %1920 = vst [vmem:[#allocation2 + $0x480] sm:$0xff] %v1918
  %1921 = vst [vmem:[#allocation2 + $0x488] sm:$0xff] %v1916
  %1922 = vst [vmem:[#allocation2 + $0x490] sm:$0xff] %v1914
  %1923 = vst [vmem:[#allocation2 + $0x498] sm:$0xff] %v1912
  %1924 = vst [vmem:[#allocation2 + $0x4a0] sm:$0xff] %v1910
  %1925 = vst [vmem:[#allocation2 + $0x4a8] sm:$0xff] %v1908
  %1926 = vst [vmem:[#allocation2 + $0x4e0] sm:$0xff] %v1919
  %1927 = vst [vmem:[#allocation2 + $0x4e8] sm:$0xff] %v1917
  %1928 = vst [vmem:[#allocation2 + $0x4f0] sm:$0xff] %v1915
  %1929 = vst [vmem:[#allocation2 + $0x4f8] sm:$0xff] %v1913
  %1930 = vst [vmem:[#allocation2 + $0x500] sm:$0xff] %v1911
  %1931 = vst [vmem:[#allocation2 + $0x508] sm:$0xff] %v1909
  %1932 = vst [vmem:[#allocation2 + $0x1b0] sm:$0xff] %v1906
  %1933 = vst [vmem:[#allocation2 + $0x1b8] sm:$0xff] %v1904
  %1934 = vst [vmem:[#allocation2 + $0x1c0] sm:$0xff] %v1902
  %1935 = vst [vmem:[#allocation2 + $0x1c8] sm:$0xff] %v1900
  %1936 = vst [vmem:[#allocation2 + $0x1d0] sm:$0xff] %v1898
  %1937 = vst [vmem:[#allocation2 + $0x1d8] sm:$0xff] %v1896
  %1938 = vst [vmem:[#allocation2 + $0x210] sm:$0xff] %v1907
  %1939 = vst [vmem:[#allocation2 + $0x218] sm:$0xff] %v1905
  %1940 = vst [vmem:[#allocation2 + $0x220] sm:$0xff] %v1903
  %1941 = vst [vmem:[#allocation2 + $0x228] sm:$0xff] %v1901
  %1942 = vst [vmem:[#allocation2 + $0x230] sm:$0xff] %v1899
  %1943 = vst [vmem:[#allocation2 + $0x238] sm:$0xff] %v1897
  %1944 = vrot.lane.b32.xlu0 %v1632, 1
  %v1945 = vpop.permute.xlu0 %1944
  %1946 = vrot.lane.b32.xlu0 %v1644, 1
  %v1947 = vpop.permute.xlu0 %1946
  %1948 = vrot.lane.b32.xlu0 %v1633, 1
  %v1949 = vpop.permute.xlu0 %1948
  %1950 = vrot.lane.b32.xlu0 %v1645, 1
  %v1951 = vpop.permute.xlu0 %1950
  %1952 = vrot.lane.b32.xlu0 %v1634, 1
  %v1953 = vpop.permute.xlu0 %1952
  %1954 = vrot.lane.b32.xlu0 %v1646, 1
  %v1955 = vpop.permute.xlu0 %1954
  %1956 = vrot.lane.b32.xlu0 %v1635, 1
  %v1957 = vpop.permute.xlu0 %1956
  %1958 = vrot.lane.b32.xlu0 %v1647, 1
  %v1959 = vpop.permute.xlu0 %1958
  %1960 = vrot.lane.b32.xlu0 %v1636, 1
  %v1961 = vpop.permute.xlu0 %1960
  %1962 = vrot.lane.b32.xlu0 %v1648, 1
  %v1963 = vpop.permute.xlu0 %1962
  %1964 = vrot.lane.b32.xlu0 %v1637, 1
  %v1965 = vpop.permute.xlu0 %1964
  %1966 = vrot.lane.b32.xlu0 %v1649, 1
  %v1967 = vpop.permute.xlu0 %1966
  %1968 = vrot.lane.b32.xlu0 %v1638, 1
  %v1969 = vpop.permute.xlu0 %1968
  %1970 = vrot.lane.b32.xlu0 %v1650, 1
  %v1971 = vpop.permute.xlu0 %1970
  %1972 = vrot.lane.b32.xlu0 %v1639, 1
  %v1973 = vpop.permute.xlu0 %1972
  %1974 = vrot.lane.b32.xlu0 %v1651, 1
  %v1975 = vpop.permute.xlu0 %1974
  %1976 = vrot.lane.b32.xlu0 %v1640, 1
  %v1977 = vpop.permute.xlu0 %1976
  %1978 = vrot.lane.b32.xlu0 %v1652, 1
  %v1979 = vpop.permute.xlu0 %1978
  %1980 = vrot.lane.b32.xlu0 %v1641, 1
  %v1981 = vpop.permute.xlu0 %1980
  %1982 = vrot.lane.b32.xlu0 %v1653, 1
  %v1983 = vpop.permute.xlu0 %1982
  %1984 = vrot.lane.b32.xlu0 %v1642, 1
  %v1985 = vpop.permute.xlu0 %1984
  %1986 = vrot.lane.b32.xlu0 %v1654, 1
  %v1987 = vpop.permute.xlu0 %1986
  %1988 = vrot.lane.b32.xlu0 %v1643, 1
  %v1989 = vpop.permute.xlu0 %1988
  %1990 = vrot.lane.b32.xlu0 %v1655, 1
  %v1991 = vpop.permute.xlu0 %1990
  %v1992 = vsel %vm384, %v1985, %v1989
  %v1993 = vsel %vm384, %v1987, %v1991
  %v1994 = vsel %vm384, %v1981, %v1985
  %v1995 = vsel %vm384, %v1983, %v1987
  %v1996 = vsel %vm384, %v1977, %v1981
  %v1997 = vsel %vm384, %v1979, %v1983
  %v1998 = vsel %vm384, %v1973, %v1977
  %v1999 = vsel %vm384, %v1975, %v1979
  %v2000 = vsel %vm384, %v1969, %v1973
  %v2001 = vsel %vm384, %v1971, %v1975
  %v2002 = vsel %vm384, %v1965, %v1969
  %v2003 = vsel %vm384, %v1967, %v1971
  %v2004 = vsel %vm384, %v1961, %v1965
  %v2005 = vsel %vm384, %v1963, %v1967
  %v2006 = vsel %vm384, %v1957, %v1961
  %v2007 = vsel %vm384, %v1959, %v1963
  %v2008 = vsel %vm384, %v1953, %v1957
  %v2009 = vsel %vm384, %v1955, %v1959
  %v2010 = vsel %vm384, %v1949, %v1953
  %v2011 = vsel %vm384, %v1951, %v1955
  %v2012 = vsel %vm384, %v1945, %v1949
  %v2013 = vsel %vm384, %v1947, %v1951
  %v2014 = vsel %vm384, %v1989, %v1945
  %v2015 = vsel %vm384, %v1991, %v1947
  %2016 = vst [vmem:[#allocation2 + $0xc0] sm:$0xff] %v2014
  %2017 = vst [vmem:[#allocation2 + $0xc8] sm:$0xff] %v2012
  %2018 = vst [vmem:[#allocation2 + $0xd0] sm:$0xff] %v2010
  %2019 = vst [vmem:[#allocation2 + $0xd8] sm:$0xff] %v2008
  %2020 = vst [vmem:[#allocation2 + $0xe0] sm:$0xff] %v2006
  %2021 = vst [vmem:[#allocation2 + $0xe8] sm:$0xff] %v2004
  %2022 = vst [vmem:[#allocation2 + $0x120] sm:$0xff] %v2015
  %2023 = vst [vmem:[#allocation2 + $0x128] sm:$0xff] %v2013
  %2024 = vst [vmem:[#allocation2 + $0x130] sm:$0xff] %v2011
  %2025 = vst [vmem:[#allocation2 + $0x138] sm:$0xff] %v2009
  %2026 = vst [vmem:[#allocation2 + $0x140] sm:$0xff] %v2007
  %2027 = vst [vmem:[#allocation2 + $0x148] sm:$0xff] %v2005
  %2028 = vst [vmem:[#allocation2 + $0x270] sm:$0xff] %v2002
  %2029 = vst [vmem:[#allocation2 + $0x278] sm:$0xff] %v2000
  %2030 = vst [vmem:[#allocation2 + $0x280] sm:$0xff] %v1998
  %2031 = vst [vmem:[#allocation2 + $0x288] sm:$0xff] %v1996
  %2032 = vst [vmem:[#allocation2 + $0x290] sm:$0xff] %v1994
  %2033 = vst [vmem:[#allocation2 + $0x298] sm:$0xff] %v1992
  %2034 = vst [vmem:[#allocation2 + $0x2d0] sm:$0xff] %v2003
  %2035 = vst [vmem:[#allocation2 + $0x2d8] sm:$0xff] %v2001
  %2036 = vst [vmem:[#allocation2 + $0x2e0] sm:$0xff] %v1999
  %2037 = vst [vmem:[#allocation2 + $0x2e8] sm:$0xff] %v1997
  %2038 = vst [vmem:[#allocation2 + $0x2f0] sm:$0xff] %v1995
  %2039 = vst [vmem:[#allocation2 + $0x2f8] sm:$0xff] %v1993
  %2040 = vst [vmem:[#allocation2 + $0x300] sm:$0xff] %v1632
  %2041 = vst [vmem:[#allocation2 + $0x308] sm:$0xff] %v1633
  %2042 = vst [vmem:[#allocation2 + $0x310] sm:$0xff] %v1634
  %2043 = vst [vmem:[#allocation2 + $0x318] sm:$0xff] %v1635
  %2044 = vst [vmem:[#allocation2 + $0x320] sm:$0xff] %v1636
  %2045 = vst [vmem:[#allocation2 + $0x328] sm:$0xff] %v1637
  %2046 = vst [vmem:[#allocation2 + $0x330] sm:$0xff] %v1638
  %2047 = vst [vmem:[#allocation2 + $0x338] sm:$0xff] %v1639
  %2048 = vst [vmem:[#allocation2 + $0x340] sm:$0xff] %v1640
  %2049 = vst [vmem:[#allocation2 + $0x348] sm:$0xff] %v1641
  %2050 = vst [vmem:[#allocation2 + $0x350] sm:$0xff] %v1642
  %2051 = vst [vmem:[#allocation2 + $0x358] sm:$0xff] %v1643
  %2052 = vst [vmem:[#allocation2 + $0x360] sm:$0xff] %v1644
  %2053 = vst [vmem:[#allocation2 + $0x368] sm:$0xff] %v1645
  %2054 = vst [vmem:[#allocation2 + $0x370] sm:$0xff] %v1646
  %2055 = vst [vmem:[#allocation2 + $0x378] sm:$0xff] %v1647
  %2056 = vst [vmem:[#allocation2 + $0x380] sm:$0xff] %v1648
  %2057 = vst [vmem:[#allocation2 + $0x388] sm:$0xff] %v1649
  %2058 = vst [vmem:[#allocation2 + $0x390] sm:$0xff] %v1650
  %2059 = vst [vmem:[#allocation2 + $0x398] sm:$0xff] %v1651
  %2060 = vst [vmem:[#allocation2 + $0x3a0] sm:$0xff] %v1652
  %2061 = vst [vmem:[#allocation2 + $0x3a8] sm:$0xff] %v1653
  %2062 = vst [vmem:[#allocation2 + $0x3b0] sm:$0xff] %v1654
  %2063 = vst [vmem:[#allocation2 + $0x3b8] sm:$0xff] %v1655
  %2064 = vrot.lane.b32.xlu0 %v1632, 127
  %v2065 = vpop.permute.xlu0 %2064
  %2066 = vrot.lane.b32.xlu0 %v1644, 127
  %v2067 = vpop.permute.xlu0 %2066
  %2068 = vrot.lane.b32.xlu0 %v1633, 127
  %v2069 = vpop.permute.xlu0 %2068
  %2070 = vrot.lane.b32.xlu0 %v1645, 127
  %v2071 = vpop.permute.xlu0 %2070
  %2072 = vrot.lane.b32.xlu0 %v1634, 127
  %v2073 = vpop.permute.xlu0 %2072
  %2074 = vrot.lane.b32.xlu0 %v1646, 127
  %v2075 = vpop.permute.xlu0 %2074
  %2076 = vrot.lane.b32.xlu0 %v1635, 127
  %v2077 = vpop.permute.xlu0 %2076
  %2078 = vrot.lane.b32.xlu0 %v1647, 127
  %v2079 = vpop.permute.xlu0 %2078
  %2080 = vrot.lane.b32.xlu0 %v1636, 127
  %v2081 = vpop.permute.xlu0 %2080
  %2082 = vrot.lane.b32.xlu0 %v1648, 127
  %v2083 = vpop.permute.xlu0 %2082
  %2084 = vrot.lane.b32.xlu0 %v1637, 127
  %v2085 = vpop.permute.xlu0 %2084
  %2086 = vrot.lane.b32.xlu0 %v1649, 127
  %v2087 = vpop.permute.xlu0 %2086
  %2088 = vrot.lane.b32.xlu0 %v1638, 127
  %v2089 = vpop.permute.xlu0 %2088
  %2090 = vrot.lane.b32.xlu0 %v1650, 127
  %v2091 = vpop.permute.xlu0 %2090
  %2092 = vrot.lane.b32.xlu0 %v1639, 127
  %v2093 = vpop.permute.xlu0 %2092
  %2094 = vrot.lane.b32.xlu0 %v1651, 127
  %v2095 = vpop.permute.xlu0 %2094
  %2096 = vrot.lane.b32.xlu0 %v1640, 127
  %v2097 = vpop.permute.xlu0 %2096
  %2098 = vrot.lane.b32.xlu0 %v1652, 127
  %v2099 = vpop.permute.xlu0 %2098
  %2100 = vrot.lane.b32.xlu0 %v1641, 127
  %v2101 = vpop.permute.xlu0 %2100
  %2102 = vrot.lane.b32.xlu0 %v1653, 127
  %v2103 = vpop.permute.xlu0 %2102
  %2104 = vrot.lane.b32.xlu0 %v1642, 127
  %v2105 = vpop.permute.xlu0 %2104
  %2106 = vrot.lane.b32.xlu0 %v1654, 127
  %v2107 = vpop.permute.xlu0 %2106
  %2108 = vrot.lane.b32.xlu0 %v1643, 127
  %v2109 = vpop.permute.xlu0 %2108
  %2110 = vrot.lane.b32.xlu0 %v1655, 127
  %v2111 = vpop.permute.xlu0 %2110
  %v2112 = vsel %vm505, %v2105, %v2109
  %v2113 = vsel %vm505, %v2107, %v2111
  %v2114 = vsel %vm505, %v2101, %v2105
  %v2115 = vsel %vm505, %v2103, %v2107
  %v2116 = vsel %vm505, %v2097, %v2101
  %v2117 = vsel %vm505, %v2099, %v2103
  %v2118 = vsel %vm505, %v2093, %v2097
  %v2119 = vsel %vm505, %v2095, %v2099
  %v2120 = vsel %vm505, %v2089, %v2093
  %v2121 = vsel %vm505, %v2091, %v2095
  %v2122 = vsel %vm505, %v2085, %v2089
  %v2123 = vsel %vm505, %v2087, %v2091
  %v2124 = vsel %vm505, %v2081, %v2085
  %v2125 = vsel %vm505, %v2083, %v2087
  %v2126 = vsel %vm505, %v2077, %v2081
  %v2127 = vsel %vm505, %v2079, %v2083
  %v2128 = vsel %vm505, %v2073, %v2077
  %v2129 = vsel %vm505, %v2075, %v2079
  %v2130 = vsel %vm505, %v2069, %v2073
  %v2131 = vsel %vm505, %v2071, %v2075
  %v2132 = vsel %vm505, %v2065, %v2069
  %v2133 = vsel %vm505, %v2067, %v2071
  %v2134 = vsel %vm505, %v2109, %v2065
  %v2135 = vsel %vm505, %v2111, %v2067
  %2136 = vst [vmem:[#allocation2 + $0x540] sm:$0xff] %v2132
  %2137 = vst [vmem:[#allocation2 + $0x548] sm:$0xff] %v2130
  %2138 = vst [vmem:[#allocation2 + $0x550] sm:$0xff] %v2128
  %2139 = vst [vmem:[#allocation2 + $0x558] sm:$0xff] %v2126
  %2140 = vst [vmem:[#allocation2 + $0x560] sm:$0xff] %v2124
  %2141 = vst [vmem:[#allocation2 + $0x568] sm:$0xff] %v2122
  %2142 = vst [vmem:[#allocation2 + $0x5a0] sm:$0xff] %v2133
  %2143 = vst [vmem:[#allocation2 + $0x5a8] sm:$0xff] %v2131
  %2144 = vst [vmem:[#allocation2 + $0x5b0] sm:$0xff] %v2129
  %2145 = vst [vmem:[#allocation2 + $0x5b8] sm:$0xff] %v2127
  %2146 = vst [vmem:[#allocation2 + $0x5c0] sm:$0xff] %v2125
  %2147 = vst [vmem:[#allocation2 + $0x5c8] sm:$0xff] %v2123
  %2148 = vst [vmem:[#allocation2 + $0x3f0] sm:$0xff] %v2120
  %2149 = vst [vmem:[#allocation2 + $0x3f8] sm:$0xff] %v2118
  %2150 = vst [vmem:[#allocation2 + $0x400] sm:$0xff] %v2116
  %2151 = vst [vmem:[#allocation2 + $0x408] sm:$0xff] %v2114
  %2152 = vst [vmem:[#allocation2 + $0x410] sm:$0xff] %v2112
  %2153 = vst [vmem:[#allocation2 + $0x418] sm:$0xff] %v2134
  %2154 = vst [vmem:[#allocation2 + $0x450] sm:$0xff] %v2121
  %2155 = vst [vmem:[#allocation2 + $0x458] sm:$0xff] %v2119
  %2156 = vst [vmem:[#allocation2 + $0x460] sm:$0xff] %v2117
  %2157 = vst [vmem:[#allocation2 + $0x468] sm:$0xff] %v2115
  %2158 = vst [vmem:[#allocation2 + $0x470] sm:$0xff] %v2113
  %2159 = vst [vmem:[#allocation2 + $0x478] sm:$0xff] %v2135
  %2160 = vrot.lane.b32.xlu0 %v1632, 111
  %v2161 = vpop.permute.xlu0 %2160
  %2162 = vrot.lane.b32.xlu0 %v1644, 111
  %v2163 = vpop.permute.xlu0 %2162
  %2164 = vrot.lane.b32.xlu0 %v1633, 111
  %v2165 = vpop.permute.xlu0 %2164
  %2166 = vrot.lane.b32.xlu0 %v1645, 111
  %v2167 = vpop.permute.xlu0 %2166
  %2168 = vrot.lane.b32.xlu0 %v1634, 111
  %v2169 = vpop.permute.xlu0 %2168
  %2170 = vrot.lane.b32.xlu0 %v1646, 111
  %v2171 = vpop.permute.xlu0 %2170
  %2172 = vrot.lane.b32.xlu0 %v1635, 111
  %v2173 = vpop.permute.xlu0 %2172
  %2174 = vrot.lane.b32.xlu0 %v1647, 111
  %v2175 = vpop.permute.xlu0 %2174
  %2176 = vrot.lane.b32.xlu0 %v1636, 111
  %v2177 = vpop.permute.xlu0 %2176
  %2178 = vrot.lane.b32.xlu0 %v1648, 111
  %v2179 = vpop.permute.xlu0 %2178
  %2180 = vrot.lane.b32.xlu0 %v1637, 111
  %v2181 = vpop.permute.xlu0 %2180
  %2182 = vrot.lane.b32.xlu0 %v1649, 111
  %v2183 = vpop.permute.xlu0 %2182
  %2184 = vrot.lane.b32.xlu0 %v1638, 111
  %v2185 = vpop.permute.xlu0 %2184
  %2186 = vrot.lane.b32.xlu0 %v1650, 111
  %v2187 = vpop.permute.xlu0 %2186
  %2188 = vrot.lane.b32.xlu0 %v1639, 111
  %v2189 = vpop.permute.xlu0 %2188
  %2190 = vrot.lane.b32.xlu0 %v1651, 111
  %v2191 = vpop.permute.xlu0 %2190
  %2192 = vrot.lane.b32.xlu0 %v1640, 111
  %v2193 = vpop.permute.xlu0 %2192
  %2194 = vrot.lane.b32.xlu0 %v1652, 111
  %v2195 = vpop.permute.xlu0 %2194
  %2196 = vrot.lane.b32.xlu0 %v1641, 111
  %v2197 = vpop.permute.xlu0 %2196
  %2198 = vrot.lane.b32.xlu0 %v1653, 111
  %v2199 = vpop.permute.xlu0 %2198
  %2200 = vrot.lane.b32.xlu0 %v1642, 111
  %v2201 = vpop.permute.xlu0 %2200
  %2202 = vrot.lane.b32.xlu0 %v1654, 111
  %v2203 = vpop.permute.xlu0 %2202
  %2204 = vrot.lane.b32.xlu0 %v1643, 111
  %v2205 = vpop.permute.xlu0 %2204
  %2206 = vrot.lane.b32.xlu0 %v1655, 111
  %v2207 = vpop.permute.xlu0 %2206
  %v2208 = vsel %vm602, %v2201, %v2205
  %v2209 = vsel %vm602, %v2203, %v2207
  %v2210 = vsel %vm602, %v2197, %v2201
  %v2211 = vsel %vm602, %v2199, %v2203
  %v2212 = vsel %vm602, %v2193, %v2197
  %v2213 = vsel %vm602, %v2195, %v2199
  %v2214 = vsel %vm602, %v2189, %v2193
  %v2215 = vsel %vm602, %v2191, %v2195
  %v2216 = vsel %vm602, %v2185, %v2189
  %v2217 = vsel %vm602, %v2187, %v2191
  %v2218 = vsel %vm602, %v2181, %v2185
  %v2219 = vsel %vm602, %v2183, %v2187
  %v2220 = vsel %vm602, %v2177, %v2181
  %v2221 = vsel %vm602, %v2179, %v2183
  %v2222 = vsel %vm602, %v2173, %v2177
  %v2223 = vsel %vm602, %v2175, %v2179
  %v2224 = vsel %vm602, %v2169, %v2173
  %v2225 = vsel %vm602, %v2171, %v2175
  %v2226 = vsel %vm602, %v2165, %v2169
  %v2227 = vsel %vm602, %v2167, %v2171
  %v2228 = vsel %vm602, %v2161, %v2165
  %v2229 = vsel %vm602, %v2163, %v2167
  %v2230 = vsel %vm602, %v2205, %v2161
  %v2231 = vsel %vm602, %v2207, %v2163
  %2232 = vst [vmem:[#allocation2 + $0x180] sm:$0xff] %v2228
  %2233 = vst [vmem:[#allocation2 + $0x188] sm:$0xff] %v2226
  %2234 = vst [vmem:[#allocation2 + $0x190] sm:$0xff] %v2224
  %2235 = vst [vmem:[#allocation2 + $0x198] sm:$0xff] %v2222
  %2236 = vst [vmem:[#allocation2 + $0x1a0] sm:$0xff] %v2220
  %2237 = vst [vmem:[#allocation2 + $0x1a8] sm:$0xff] %v2218
  %2238 = vst [vmem:[#allocation2 + $0x1e0] sm:$0xff] %v2229
  %2239 = vst [vmem:[#allocation2 + $0x1e8] sm:$0xff] %v2227
  %2240 = vst [vmem:[#allocation2 + $0x1f0] sm:$0xff] %v2225
  %2241 = vst [vmem:[#allocation2 + $0x1f8] sm:$0xff] %v2223
  %2242 = vst [vmem:[#allocation2 + $0x200] sm:$0xff] %v2221
  %2243 = vst [vmem:[#allocation2 + $0x208] sm:$0xff] %v2219
  %2244 = vst [vmem:[#allocation2 + $0x4b0] sm:$0xff] %v2216
  %2245 = vst [vmem:[#allocation2 + $0x4b8] sm:$0xff] %v2214
  %2246 = vst [vmem:[#allocation2 + $0x4c0] sm:$0xff] %v2212
  %2247 = vst [vmem:[#allocation2 + $0x4c8] sm:$0xff] %v2210
  %2248 = vst [vmem:[#allocation2 + $0x4d0] sm:$0xff] %v2208
  %2249 = vst [vmem:[#allocation2 + $0x4d8] sm:$0xff] %v2230
  %2250 = vst [vmem:[#allocation2 + $0x510] sm:$0xff] %v2217
  %2251 = vst [vmem:[#allocation2 + $0x518] sm:$0xff] %v2215
  %2252 = vst [vmem:[#allocation2 + $0x520] sm:$0xff] %v2213
  %2253 = vst [vmem:[#allocation2 + $0x528] sm:$0xff] %v2211
  %2254 = vst [vmem:[#allocation2 + $0x530] sm:$0xff] %v2209
  %2255 = vst [vmem:[#allocation2 + $0x538] sm:$0xff] %v2231
  %2256 = vrot.lane.b32.xlu0 %v1632, 110
  %v2257 = vpop.permute.xlu0 %2256
  %2258 = vrot.lane.b32.xlu0 %v1644, 110
  %v2259 = vpop.permute.xlu0 %2258
  %2260 = vrot.lane.b32.xlu0 %v1633, 110
  %v2261 = vpop.permute.xlu0 %2260
  %2262 = vrot.lane.b32.xlu0 %v1645, 110
  %v2263 = vpop.permute.xlu0 %2262
  %2264 = vrot.lane.b32.xlu0 %v1634, 110
  %v2265 = vpop.permute.xlu0 %2264
  %2266 = vrot.lane.b32.xlu0 %v1646, 110
  %v2267 = vpop.permute.xlu0 %2266
  %2268 = vrot.lane.b32.xlu0 %v1635, 110
  %v2269 = vpop.permute.xlu0 %2268
  %2270 = vrot.lane.b32.xlu0 %v1647, 110
  %v2271 = vpop.permute.xlu0 %2270
  %2272 = vrot.lane.b32.xlu0 %v1636, 110
  %v2273 = vpop.permute.xlu0 %2272
  %2274 = vrot.lane.b32.xlu0 %v1648, 110
  %v2275 = vpop.permute.xlu0 %2274
  %2276 = vrot.lane.b32.xlu0 %v1637, 110
  %v2277 = vpop.permute.xlu0 %2276
  %2278 = vrot.lane.b32.xlu0 %v1649, 110
  %v2279 = vpop.permute.xlu0 %2278
  %2280 = vrot.lane.b32.xlu0 %v1638, 110
  %v2281 = vpop.permute.xlu0 %2280
  %2282 = vrot.lane.b32.xlu0 %v1650, 110
  %v2283 = vpop.permute.xlu0 %2282
  %2284 = vrot.lane.b32.xlu0 %v1639, 110
  %v2285 = vpop.permute.xlu0 %2284
  %2286 = vrot.lane.b32.xlu0 %v1651, 110
  %v2287 = vpop.permute.xlu0 %2286
  %2288 = vrot.lane.b32.xlu0 %v1640, 110
  %v2289 = vpop.permute.xlu0 %2288
  %2290 = vrot.lane.b32.xlu0 %v1652, 110
  %v2291 = vpop.permute.xlu0 %2290
  %2292 = vrot.lane.b32.xlu0 %v1641, 110
  %v2293 = vpop.permute.xlu0 %2292
  %2294 = vrot.lane.b32.xlu0 %v1653, 110
  %v2295 = vpop.permute.xlu0 %2294
  %2296 = vrot.lane.b32.xlu0 %v1642, 110
  %v2297 = vpop.permute.xlu0 %2296
  %2298 = vrot.lane.b32.xlu0 %v1654, 110
  %v2299 = vpop.permute.xlu0 %2298
  %2300 = vrot.lane.b32.xlu0 %v1643, 110
  %v2301 = vpop.permute.xlu0 %2300
  %2302 = vrot.lane.b32.xlu0 %v1655, 110
  %v2303 = vpop.permute.xlu0 %2302
  %v2304 = vsel %vm699, %v2297, %v2301
  %v2305 = vsel %vm699, %v2299, %v2303
  %v2306 = vsel %vm699, %v2293, %v2297
  %v2307 = vsel %vm699, %v2295, %v2299
  %v2308 = vsel %vm699, %v2289, %v2293
  %v2309 = vsel %vm699, %v2291, %v2295
  %v2310 = vsel %vm699, %v2285, %v2289
  %v2311 = vsel %vm699, %v2287, %v2291
  %v2312 = vsel %vm699, %v2281, %v2285
  %v2313 = vsel %vm699, %v2283, %v2287
  %v2314 = vsel %vm699, %v2277, %v2281
  %v2315 = vsel %vm699, %v2279, %v2283
  %v2316 = vsel %vm699, %v2273, %v2277
  %v2317 = vsel %vm699, %v2275, %v2279
  %v2318 = vsel %vm699, %v2269, %v2273
  %v2319 = vsel %vm699, %v2271, %v2275
  %v2320 = vsel %vm699, %v2265, %v2269
  %v2321 = vsel %vm699, %v2267, %v2271
  %v2322 = vsel %vm699, %v2261, %v2265
  %v2323 = vsel %vm699, %v2263, %v2267
  %v2324 = vsel %vm699, %v2257, %v2261
  %v2325 = vsel %vm699, %v2259, %v2263
  %v2326 = vsel %vm699, %v2301, %v2257
  %v2327 = vsel %vm699, %v2303, %v2259
  %2328 = vst [vmem:[#allocation2 + $0x3c0] sm:$0xff] %v2324
  %2329 = vst [vmem:[#allocation2 + $0x3c8] sm:$0xff] %v2322
  %2330 = vst [vmem:[#allocation2 + $0x3d0] sm:$0xff] %v2320
  %2331 = vst [vmem:[#allocation2 + $0x3d8] sm:$0xff] %v2318
  %2332 = vst [vmem:[#allocation2 + $0x3e0] sm:$0xff] %v2316
  %2333 = vst [vmem:[#allocation2 + $0x3e8] sm:$0xff] %v2314
  %2334 = vst [vmem:[#allocation2 + $0x420] sm:$0xff] %v2325
  %2335 = vst [vmem:[#allocation2 + $0x428] sm:$0xff] %v2323
  %2336 = vst [vmem:[#allocation2 + $0x430] sm:$0xff] %v2321
  %2337 = vst [vmem:[#allocation2 + $0x438] sm:$0xff] %v2319
  %2338 = vst [vmem:[#allocation2 + $0x440] sm:$0xff] %v2317
  %2339 = vst [vmem:[#allocation2 + $0x448] sm:$0xff] %v2315
  %2340 = vst [vmem:[#allocation2 + $0x570] sm:$0xff] %v2312
  %2341 = vst [vmem:[#allocation2 + $0x578] sm:$0xff] %v2310
  %2342 = vst [vmem:[#allocation2 + $0x580] sm:$0xff] %v2308
  %2343 = vst [vmem:[#allocation2 + $0x588] sm:$0xff] %v2306
  %2344 = vst [vmem:[#allocation2 + $0x590] sm:$0xff] %v2304
  %2345 = vst [vmem:[#allocation2 + $0x598] sm:$0xff] %v2326
  %2346 = vst [vmem:[#allocation2 + $0x5d0] sm:$0xff] %v2313
  %2347 = vst [vmem:[#allocation2 + $0x5d8] sm:$0xff] %v2311
  %2348 = vst [vmem:[#allocation2 + $0x5e0] sm:$0xff] %v2309
  %2349 = vst [vmem:[#allocation2 + $0x5e8] sm:$0xff] %v2307
  %2350 = vst [vmem:[#allocation2 + $0x5f0] sm:$0xff] %v2305
  %2351 = vst [vmem:[#allocation2 + $0x5f8] sm:$0xff] %v2327
  %2352 = vrot.lane.b32.xlu0 %v1632, 109
  %v2353 = vpop.permute.xlu0 %2352
  %2354 = vrot.lane.b32.xlu0 %v1644, 109
  %v2355 = vpop.permute.xlu0 %2354
  %2356 = vrot.lane.b32.xlu0 %v1633, 109
  %v2357 = vpop.permute.xlu0 %2356
  %2358 = vrot.lane.b32.xlu0 %v1645, 109
  %v2359 = vpop.permute.xlu0 %2358
  %2360 = vrot.lane.b32.xlu0 %v1634, 109
  %v2361 = vpop.permute.xlu0 %2360
  %2362 = vrot.lane.b32.xlu0 %v1646, 109
  %v2363 = vpop.permute.xlu0 %2362
  %2364 = vrot.lane.b32.xlu0 %v1635, 109
  %v2365 = vpop.permute.xlu0 %2364
  %2366 = vrot.lane.b32.xlu0 %v1647, 109
  %v2367 = vpop.permute.xlu0 %2366
  %2368 = vrot.lane.b32.xlu0 %v1636, 109
  %v2369 = vpop.permute.xlu0 %2368
  %2370 = vrot.lane.b32.xlu0 %v1648, 109
  %v2371 = vpop.permute.xlu0 %2370
  %2372 = vrot.lane.b32.xlu0 %v1637, 109
  %v2373 = vpop.permute.xlu0 %2372
  %2374 = vrot.lane.b32.xlu0 %v1649, 109
  %v2375 = vpop.permute.xlu0 %2374
  %2376 = vrot.lane.b32.xlu0 %v1638, 109
  %v2377 = vpop.permute.xlu0 %2376
  %2378 = vrot.lane.b32.xlu0 %v1650, 109
  %v2379 = vpop.permute.xlu0 %2378
  %2380 = vrot.lane.b32.xlu0 %v1639, 109
  %v2381 = vpop.permute.xlu0 %2380
  %2382 = vrot.lane.b32.xlu0 %v1651, 109
  %v2383 = vpop.permute.xlu0 %2382
  %2384 = vrot.lane.b32.xlu0 %v1640, 109
  %v2385 = vpop.permute.xlu0 %2384
  %2386 = vrot.lane.b32.xlu0 %v1652, 109
  %v2387 = vpop.permute.xlu0 %2386
  %2388 = vrot.lane.b32.xlu0 %v1641, 109
  %v2389 = vpop.permute.xlu0 %2388
  %2390 = vrot.lane.b32.xlu0 %v1653, 109
  %v2391 = vpop.permute.xlu0 %2390
  %2392 = vrot.lane.b32.xlu0 %v1642, 109
  %v2393 = vpop.permute.xlu0 %2392
  %2394 = vrot.lane.b32.xlu0 %v1654, 109
  %v2395 = vpop.permute.xlu0 %2394
  %2396 = vrot.lane.b32.xlu0 %v1643, 109
  %v2397 = vpop.permute.xlu0 %2396
  %2398 = vrot.lane.b32.xlu0 %v1655, 109
  %v2399 = vpop.permute.xlu0 %2398
  %v2400 = vsel %vm796, %v2393, %v2397
  %v2401 = vsel %vm796, %v2395, %v2399
  %v2402 = vsel %vm796, %v2389, %v2393
  %v2403 = vsel %vm796, %v2391, %v2395
  %v2404 = vsel %vm796, %v2385, %v2389
  %v2405 = vsel %vm796, %v2387, %v2391
  %v2406 = vsel %vm796, %v2381, %v2385
  %v2407 = vsel %vm796, %v2383, %v2387
  %v2408 = vsel %vm796, %v2377, %v2381
  %v2409 = vsel %vm796, %v2379, %v2383
  %v2410 = vsel %vm796, %v2373, %v2377
  %v2411 = vsel %vm796, %v2375, %v2379
  %v2412 = vsel %vm796, %v2369, %v2373
  %v2413 = vsel %vm796, %v2371, %v2375
  %v2414 = vsel %vm796, %v2365, %v2369
  %v2415 = vsel %vm796, %v2367, %v2371
  %v2416 = vsel %vm796, %v2361, %v2365
  %v2417 = vsel %vm796, %v2363, %v2367
  %v2418 = vsel %vm796, %v2357, %v2361
  %v2419 = vsel %vm796, %v2359, %v2363
  %v2420 = vsel %vm796, %v2353, %v2357
  %v2421 = vsel %vm796, %v2355, %v2359
  %v2422 = vsel %vm796, %v2397, %v2353
  %v2423 = vsel %vm796, %v2399, %v2355
  %2424 = vst [vmem:[#allocation2 + $0x600] sm:$0xff] %v2420
  %2425 = vst [vmem:[#allocation2 + $0x608] sm:$0xff] %v2418
  %2426 = vst [vmem:[#allocation2 + $0x610] sm:$0xff] %v2416
  %2427 = vst [vmem:[#allocation2 + $0x618] sm:$0xff] %v2414
  %2428 = vst [vmem:[#allocation2 + $0x620] sm:$0xff] %v2412
  %2429 = vst [vmem:[#allocation2 + $0x628] sm:$0xff] %v2410
  %2430 = vst [vmem:[#allocation2 + $0x630] sm:$0xff] %v2408
  %2431 = vst [vmem:[#allocation2 + $0x638] sm:$0xff] %v2406
  %2432 = vst [vmem:[#allocation2 + $0x640] sm:$0xff] %v2404
  %2433 = vst [vmem:[#allocation2 + $0x648] sm:$0xff] %v2402
  %2434 = vst [vmem:[#allocation2 + $0x650] sm:$0xff] %v2400
  %2435 = vst [vmem:[#allocation2 + $0x658] sm:$0xff] %v2422
  %2436 = vst [vmem:[#allocation2 + $0x660] sm:$0xff] %v2421
  %2437 = vst [vmem:[#allocation2 + $0x668] sm:$0xff] %v2419
  %2438 = vst [vmem:[#allocation2 + $0x670] sm:$0xff] %v2417
  %2439 = vst [vmem:[#allocation2 + $0x678] sm:$0xff] %v2415
  %2440 = vst [vmem:[#allocation2 + $0x680] sm:$0xff] %v2413
  %2441 = vst [vmem:[#allocation2 + $0x688] sm:$0xff] %v2411
  %2442 = vst [vmem:[#allocation2 + $0x690] sm:$0xff] %v2409
  %2443 = vst [vmem:[#allocation2 + $0x698] sm:$0xff] %v2407
  %2444 = vst [vmem:[#allocation2 + $0x6a0] sm:$0xff] %v2405
  %2445 = vst [vmem:[#allocation2 + $0x6a8] sm:$0xff] %v2403
  %2446 = vst [vmem:[#allocation2 + $0x6b0] sm:$0xff] %v2401
  %2447 = vst [vmem:[#allocation2 + $0x6b8] sm:$0xff] %v2423
  %s2448 = scalar_lea.vmem %s2, 32
  %v2449 = vld [vmem:[%s2448] sm:$0xff]
  %v2450 = vld [vmem:[%s2448 + $0x8] sm:$0xff]
  %v2451 = vld [vmem:[%s2448 + $0x10] sm:$0xff]
  %v2452 = vld [vmem:[%s2448 + $0x18] sm:$0xff]
  %v2453 = vld [vmem:[#allocation2] sm:$0xff]
  %v2454 = vld [vmem:[#allocation2 + $0x8] sm:$0xff]
  %v2455 = vld [vmem:[#allocation2 + $0x10] sm:$0xff]
  %v2456 = vld [vmem:[#allocation2 + $0x18] sm:$0xff]
  %v2457 = vld [vmem:[#allocation2 + $0x20] sm:$0xff]
  %v2458 = vld [vmem:[#allocation2 + $0x28] sm:$0xff]
  %v2459 = vld [vmem:[#allocation2 + $0x30] sm:$0xff]
  %v2460 = vld [vmem:[#allocation2 + $0x38] sm:$0xff]
  %v2461 = vld [vmem:[#allocation2 + $0x40] sm:$0xff]
  %v2462 = vld [vmem:[#allocation2 + $0x48] sm:$0xff]
  %v2463 = vld [vmem:[#allocation2 + $0x50] sm:$0xff]
  %v2464 = vld [vmem:[#allocation2 + $0x58] sm:$0xff]
  %v2465 = vld [vmem:[#allocation2 + $0x60] sm:$0xff]
  %v2466 = vld [vmem:[#allocation2 + $0x68] sm:$0xff]
  %v2467 = vld [vmem:[#allocation2 + $0x70] sm:$0xff]
  %v2468 = vld [vmem:[#allocation2 + $0x78] sm:$0xff]
  %v2469 = vld [vmem:[#allocation2 + $0x80] sm:$0xff]
  %v2470 = vld [vmem:[#allocation2 + $0x88] sm:$0xff]
  %v2471 = vld [vmem:[#allocation2 + $0x90] sm:$0xff]
  %v2472 = vld [vmem:[#allocation2 + $0x98] sm:$0xff]
  %v2473 = vld [vmem:[#allocation2 + $0xa0] sm:$0xff]
  %v2474 = vld [vmem:[#allocation2 + $0xa8] sm:$0xff]
  %v2475 = vld [vmem:[#allocation2 + $0xb0] sm:$0xff]
  %v2476 = vld [vmem:[#allocation2 + $0xb8] sm:$0xff]
  %v2477 = vld [vmem:[#allocation2 + $0xc0] sm:$0xff]
  %v2478 = vld [vmem:[#allocation2 + $0xc8] sm:$0xff]
  %v2479 = vld [vmem:[#allocation2 + $0xd0] sm:$0xff]
  %v2480 = vld [vmem:[#allocation2 + $0xd8] sm:$0xff]
  %v2481 = vld [vmem:[#allocation2 + $0xe0] sm:$0xff]
  %v2482 = vld [vmem:[#allocation2 + $0xe8] sm:$0xff]
  %v2483 = vld [vmem:[#allocation2 + $0xf0] sm:$0xff]
  %v2484 = vld [vmem:[#allocation2 + $0xf8] sm:$0xff]
  %v2485 = vld [vmem:[#allocation2 + $0x100] sm:$0xff]
  %v2486 = vld [vmem:[#allocation2 + $0x108] sm:$0xff]
  %v2487 = vld [vmem:[#allocation2 + $0x110] sm:$0xff]
  %v2488 = vld [vmem:[#allocation2 + $0x118] sm:$0xff]
  %v2489 = vld [vmem:[#allocation2 + $0x120] sm:$0xff]
  %v2490 = vld [vmem:[#allocation2 + $0x128] sm:$0xff]
  %v2491 = vld [vmem:[#allocation2 + $0x130] sm:$0xff]
  %v2492 = vld [vmem:[#allocation2 + $0x138] sm:$0xff]
  %v2493 = vld [vmem:[#allocation2 + $0x140] sm:$0xff]
  %v2494 = vld [vmem:[#allocation2 + $0x148] sm:$0xff]
  %v2495 = vld [vmem:[#allocation2 + $0x150] sm:$0xff]
  %v2496 = vld [vmem:[#allocation2 + $0x158] sm:$0xff]
  %v2497 = vld [vmem:[#allocation2 + $0x160] sm:$0xff]
  %v2498 = vld [vmem:[#allocation2 + $0x168] sm:$0xff]
  %v2499 = vld [vmem:[#allocation2 + $0x170] sm:$0xff]
  %v2500 = vld [vmem:[#allocation2 + $0x178] sm:$0xff]
  %v2501 = vld [vmem:[#allocation2 + $0x180] sm:$0xff]
  %v2502 = vld [vmem:[#allocation2 + $0x188] sm:$0xff]
  %v2503 = vld [vmem:[#allocation2 + $0x190] sm:$0xff]
  %v2504 = vld [vmem:[#allocation2 + $0x198] sm:$0xff]
  %v2505 = vld [vmem:[#allocation2 + $0x1a0] sm:$0xff]
  %v2506 = vld [vmem:[#allocation2 + $0x1a8] sm:$0xff]
  %v2507 = vld [vmem:[#allocation2 + $0x1b0] sm:$0xff]
  %v2508 = vld [vmem:[#allocation2 + $0x1b8] sm:$0xff]
  %v2509 = vld [vmem:[#allocation2 + $0x1c0] sm:$0xff]
  %v2510 = vld [vmem:[#allocation2 + $0x1c8] sm:$0xff]
  %v2511 = vld [vmem:[#allocation2 + $0x1d0] sm:$0xff]
  %v2512 = vld [vmem:[#allocation2 + $0x1d8] sm:$0xff]
  %v2513 = vld [vmem:[#allocation2 + $0x1e0] sm:$0xff]
  %v2514 = vld [vmem:[#allocation2 + $0x1e8] sm:$0xff]
  %v2515 = vld [vmem:[#allocation2 + $0x1f0] sm:$0xff]
  %v2516 = vld [vmem:[#allocation2 + $0x1f8] sm:$0xff]
  %v2517 = vld [vmem:[#allocation2 + $0x200] sm:$0xff]
  %v2518 = vld [vmem:[#allocation2 + $0x208] sm:$0xff]
  %v2519 = vld [vmem:[#allocation2 + $0x210] sm:$0xff]
  %v2520 = vld [vmem:[#allocation2 + $0x218] sm:$0xff]
  %v2521 = vld [vmem:[#allocation2 + $0x220] sm:$0xff]
  %v2522 = vld [vmem:[#allocation2 + $0x228] sm:$0xff]
  %v2523 = vld [vmem:[#allocation2 + $0x230] sm:$0xff]
  %v2524 = vld [vmem:[#allocation2 + $0x238] sm:$0xff]
  %v2525 = vld [vmem:[#allocation2 + $0x240] sm:$0xff]
  %v2526 = vld [vmem:[#allocation2 + $0x248] sm:$0xff]
  %v2527 = vld [vmem:[#allocation2 + $0x250] sm:$0xff]
  %v2528 = vld [vmem:[#allocation2 + $0x258] sm:$0xff]
  %v2529 = vld [vmem:[#allocation2 + $0x260] sm:$0xff]
  %v2530 = vld [vmem:[#allocation2 + $0x268] sm:$0xff]
  %v2531 = vld [vmem:[#allocation2 + $0x270] sm:$0xff]
  %v2532 = vld [vmem:[#allocation2 + $0x278] sm:$0xff]
  %v2533 = vld [vmem:[#allocation2 + $0x280] sm:$0xff]
  %v2534 = vld [vmem:[#allocation2 + $0x288] sm:$0xff]
  %v2535 = vld [vmem:[#allocation2 + $0x290] sm:$0xff]
  %v2536 = vld [vmem:[#allocation2 + $0x298] sm:$0xff]
  %v2537 = vld [vmem:[#allocation2 + $0x2a0] sm:$0xff]
  %v2538 = vld [vmem:[#allocation2 + $0x2a8] sm:$0xff]
  %v2539 = vld [vmem:[#allocation2 + $0x2b0] sm:$0xff]
  %v2540 = vld [vmem:[#allocation2 + $0x2b8] sm:$0xff]
  %v2541 = vld [vmem:[#allocation2 + $0x2c0] sm:$0xff]
  %v2542 = vld [vmem:[#allocation2 + $0x2c8] sm:$0xff]
  %v2543 = vld [vmem:[#allocation2 + $0x2d0] sm:$0xff]
  %v2544 = vld [vmem:[#allocation2 + $0x2d8] sm:$0xff]
  %v2545 = vld [vmem:[#allocation2 + $0x2e0] sm:$0xff]
  %v2546 = vld [vmem:[#allocation2 + $0x2e8] sm:$0xff]
  %v2547 = vld [vmem:[#allocation2 + $0x2f0] sm:$0xff]
  %v2548 = vld [vmem:[#allocation2 + $0x2f8] sm:$0xff]
  %v2549 = vld [vmem:[#allocation2 + $0x300] sm:$0xff]
  %v2550 = vld [vmem:[#allocation2 + $0x308] sm:$0xff]
  %v2551 = vld [vmem:[#allocation2 + $0x310] sm:$0xff]
  %v2552 = vld [vmem:[#allocation2 + $0x318] sm:$0xff]
  %v2553 = vld [vmem:[#allocation2 + $0x320] sm:$0xff]
  %v2554 = vld [vmem:[#allocation2 + $0x328] sm:$0xff]
  %v2555 = vld [vmem:[#allocation2 + $0x330] sm:$0xff]
  %v2556 = vld [vmem:[#allocation2 + $0x338] sm:$0xff]
  %v2557 = vld [vmem:[#allocation2 + $0x340] sm:$0xff]
  %v2558 = vld [vmem:[#allocation2 + $0x348] sm:$0xff]
  %v2559 = vld [vmem:[#allocation2 + $0x350] sm:$0xff]
  %v2560 = vld [vmem:[#allocation2 + $0x358] sm:$0xff]
  %v2561 = vld [vmem:[#allocation2 + $0x360] sm:$0xff]
  %v2562 = vld [vmem:[#allocation2 + $0x368] sm:$0xff]
  %v2563 = vld [vmem:[#allocation2 + $0x370] sm:$0xff]
  %v2564 = vld [vmem:[#allocation2 + $0x378] sm:$0xff]
  %v2565 = vld [vmem:[#allocation2 + $0x380] sm:$0xff]
  %v2566 = vld [vmem:[#allocation2 + $0x388] sm:$0xff]
  %v2567 = vld [vmem:[#allocation2 + $0x390] sm:$0xff]
  %v2568 = vld [vmem:[#allocation2 + $0x398] sm:$0xff]
  %v2569 = vld [vmem:[#allocation2 + $0x3a0] sm:$0xff]
  %v2570 = vld [vmem:[#allocation2 + $0x3a8] sm:$0xff]
  %v2571 = vld [vmem:[#allocation2 + $0x3b0] sm:$0xff]
  %v2572 = vld [vmem:[#allocation2 + $0x3b8] sm:$0xff]
  %v2573 = vld [vmem:[#allocation2 + $0x3c0] sm:$0xff]
  %v2574 = vld [vmem:[#allocation2 + $0x3c8] sm:$0xff]
  %v2575 = vld [vmem:[#allocation2 + $0x3d0] sm:$0xff]
  %v2576 = vld [vmem:[#allocation2 + $0x3d8] sm:$0xff]
  %v2577 = vld [vmem:[#allocation2 + $0x3e0] sm:$0xff]
  %v2578 = vld [vmem:[#allocation2 + $0x3e8] sm:$0xff]
  %v2579 = vld [vmem:[#allocation2 + $0x3f0] sm:$0xff]
  %v2580 = vld [vmem:[#allocation2 + $0x3f8] sm:$0xff]
  %v2581 = vld [vmem:[#allocation2 + $0x400] sm:$0xff]
  %v2582 = vld [vmem:[#allocation2 + $0x408] sm:$0xff]
  %v2583 = vld [vmem:[#allocation2 + $0x410] sm:$0xff]
  %v2584 = vld [vmem:[#allocation2 + $0x418] sm:$0xff]
  %v2585 = vld [vmem:[#allocation2 + $0x420] sm:$0xff]
  %v2586 = vld [vmem:[#allocation2 + $0x428] sm:$0xff]
  %v2587 = vld [vmem:[#allocation2 + $0x430] sm:$0xff]
  %v2588 = vld [vmem:[#allocation2 + $0x438] sm:$0xff]
  %v2589 = vld [vmem:[#allocation2 + $0x440] sm:$0xff]
  %v2590 = vld [vmem:[#allocation2 + $0x448] sm:$0xff]
  %v2591 = vld [vmem:[#allocation2 + $0x450] sm:$0xff]
  %v2592 = vld [vmem:[#allocation2 + $0x458] sm:$0xff]
  %v2593 = vld [vmem:[#allocation2 + $0x460] sm:$0xff]
  %v2594 = vld [vmem:[#allocation2 + $0x468] sm:$0xff]
  %v2595 = vld [vmem:[#allocation2 + $0x470] sm:$0xff]
  %v2596 = vld [vmem:[#allocation2 + $0x478] sm:$0xff]
  %v2597 = vld [vmem:[#allocation2 + $0x480] sm:$0xff]
  %v2598 = vld [vmem:[#allocation2 + $0x488] sm:$0xff]
  %v2599 = vld [vmem:[#allocation2 + $0x490] sm:$0xff]
  %v2600 = vld [vmem:[#allocation2 + $0x498] sm:$0xff]
  %v2601 = vld [vmem:[#allocation2 + $0x4a0] sm:$0xff]
  %v2602 = vld [vmem:[#allocation2 + $0x4a8] sm:$0xff]
  %v2603 = vld [vmem:[#allocation2 + $0x4b0] sm:$0xff]
  %v2604 = vld [vmem:[#allocation2 + $0x4b8] sm:$0xff]
  %v2605 = vld [vmem:[#allocation2 + $0x4c0] sm:$0xff]
  %v2606 = vld [vmem:[#allocation2 + $0x4c8] sm:$0xff]
  %v2607 = vld [vmem:[#allocation2 + $0x4d0] sm:$0xff]
  %v2608 = vld [vmem:[#allocation2 + $0x4d8] sm:$0xff]
  %v2609 = vld [vmem:[#allocation2 + $0x4e0] sm:$0xff]
  %v2610 = vld [vmem:[#allocation2 + $0x4e8] sm:$0xff]
  %v2611 = vld [vmem:[#allocation2 + $0x4f0] sm:$0xff]
  %v2612 = vld [vmem:[#allocation2 + $0x4f8] sm:$0xff]
  %v2613 = vld [vmem:[#allocation2 + $0x500] sm:$0xff]
  %v2614 = vld [vmem:[#allocation2 + $0x508] sm:$0xff]
  %v2615 = vld [vmem:[#allocation2 + $0x510] sm:$0xff]
  %v2616 = vld [vmem:[#allocation2 + $0x518] sm:$0xff]
  %v2617 = vld [vmem:[#allocation2 + $0x520] sm:$0xff]
  %v2618 = vld [vmem:[#allocation2 + $0x528] sm:$0xff]
  %v2619 = vld [vmem:[#allocation2 + $0x530] sm:$0xff]
  %v2620 = vld [vmem:[#allocation2 + $0x538] sm:$0xff]
  %v2621 = vld [vmem:[#allocation2 + $0x540] sm:$0xff]
  %v2622 = vld [vmem:[#allocation2 + $0x548] sm:$0xff]
  %v2623 = vld [vmem:[#allocation2 + $0x550] sm:$0xff]
  %v2624 = vld [vmem:[#allocation2 + $0x558] sm:$0xff]
  %v2625 = vld [vmem:[#allocation2 + $0x560] sm:$0xff]
  %v2626 = vld [vmem:[#allocation2 + $0x568] sm:$0xff]
  %v2627 = vld [vmem:[#allocation2 + $0x570] sm:$0xff]
  %v2628 = vld [vmem:[#allocation2 + $0x578] sm:$0xff]
  %v2629 = vld [vmem:[#allocation2 + $0x580] sm:$0xff]
  %v2630 = vld [vmem:[#allocation2 + $0x588] sm:$0xff]
  %v2631 = vld [vmem:[#allocation2 + $0x590] sm:$0xff]
  %v2632 = vld [vmem:[#allocation2 + $0x598] sm:$0xff]
  %v2633 = vld [vmem:[#allocation2 + $0x5a0] sm:$0xff]
  %v2634 = vld [vmem:[#allocation2 + $0x5a8] sm:$0xff]
  %v2635 = vld [vmem:[#allocation2 + $0x5b0] sm:$0xff]
  %v2636 = vld [vmem:[#allocation2 + $0x5b8] sm:$0xff]
  %v2637 = vld [vmem:[#allocation2 + $0x5c0] sm:$0xff]
  %v2638 = vld [vmem:[#allocation2 + $0x5c8] sm:$0xff]
  %v2639 = vld [vmem:[#allocation2 + $0x5d0] sm:$0xff]
  %v2640 = vld [vmem:[#allocation2 + $0x5d8] sm:$0xff]
  %v2641 = vld [vmem:[#allocation2 + $0x5e0] sm:$0xff]
  %v2642 = vld [vmem:[#allocation2 + $0x5e8] sm:$0xff]
  %v2643 = vld [vmem:[#allocation2 + $0x5f0] sm:$0xff]
  %v2644 = vld [vmem:[#allocation2 + $0x5f8] sm:$0xff]
  %v2645 = vld [vmem:[#allocation2 + $0x600] sm:$0xff]
  %v2646 = vld [vmem:[#allocation2 + $0x608] sm:$0xff]
  %v2647 = vld [vmem:[#allocation2 + $0x610] sm:$0xff]
  %v2648 = vld [vmem:[#allocation2 + $0x618] sm:$0xff]
  %v2649 = vld [vmem:[#allocation2 + $0x620] sm:$0xff]
  %v2650 = vld [vmem:[#allocation2 + $0x628] sm:$0xff]
  %v2651 = vld [vmem:[#allocation2 + $0x630] sm:$0xff]
  %v2652 = vld [vmem:[#allocation2 + $0x638] sm:$0xff]
  %v2653 = vld [vmem:[#allocation2 + $0x640] sm:$0xff]
  %v2654 = vld [vmem:[#allocation2 + $0x648] sm:$0xff]
  %v2655 = vld [vmem:[#allocation2 + $0x650] sm:$0xff]
  %v2656 = vld [vmem:[#allocation2 + $0x658] sm:$0xff]
  %v2657 = vld [vmem:[#allocation2 + $0x660] sm:$0xff]
  %v2658 = vld [vmem:[#allocation2 + $0x668] sm:$0xff]
  %v2659 = vld [vmem:[#allocation2 + $0x670] sm:$0xff]
  %v2660 = vld [vmem:[#allocation2 + $0x678] sm:$0xff]
  %v2661 = vld [vmem:[#allocation2 + $0x680] sm:$0xff]
  %v2662 = vld [vmem:[#allocation2 + $0x688] sm:$0xff]
  %v2663 = vld [vmem:[#allocation2 + $0x690] sm:$0xff]
  %v2664 = vld [vmem:[#allocation2 + $0x698] sm:$0xff]
  %v2665 = vld [vmem:[#allocation2 + $0x6a0] sm:$0xff]
  %v2666 = vld [vmem:[#allocation2 + $0x6a8] sm:$0xff]
  %v2667 = vld [vmem:[#allocation2 + $0x6b0] sm:$0xff]
  %v2668 = vld [vmem:[#allocation2 + $0x6b8] sm:$0xff]
  %s2669 = scalar_lea.vmem %s3, 16
  %v2670 = vld [vmem:[%s2669] sm:$0xff]
  %v2671 = vld [vmem:[%s2669 + $0x8] sm:$0xff]
  %2673 = vset.pattern.permute.xlu0 0
  %2674 = vperm.xlu0 %2673, %v2670
  %v2675 = vpop.permute.xlu0 %2674
  %2678 = vset.pattern.permute.xlu0 0
  %2679 = vperm.xlu0 %2678, %v2671
  %v2680 = vpop.permute.xlu0 %2679
  %v2682 = vsel %vm1077, %v2450, 0
  %v2685 = vsel %vm1077, %v2452, 0
  %2687 = vmatprep.subr.mxu0 %v2634
  %2688 = vmatpush1.msra.mxu0 %v2633
  %2689 = vmatprep.subr.mxu0 %v2622
  %2690 = vmatpush1.msra.mxu0 %v2621
  %2691 = vmatprep.subr.mxu0 %v2610
  %2692 = vmatpush1.msra.mxu0 %v2609
  %2693 = vmatprep.subr.mxu0 %v2598
  %2694 = vmatpush1.msra.mxu0 %v2597
  %2695 = vmatprep.subr.mxu0 %v2586
  %2696 = vmatpush1.msra.mxu0 %v2585
  %2697 = vmatprep.subr.mxu0 %v2574
  %2698 = vmatpush1.msra.mxu0 %v2573
  %2699 = vmatprep.subr.mxu0 %v2562
  %2700 = vmatpush1.msra.mxu0 %v2561
  %2701 = vmatprep.subr.mxu0 %v2550
  %2702 = vmatpush1.msra.mxu0 %v2549
  %2703 = vmatprep.subr.mxu0 %v2538
  %2704 = vmatpush1.msra.mxu0 %v2537
  %2705 = vmatprep.subr.mxu0 %v2526
  %2706 = vmatpush1.msra.mxu0 %v2525
  %2707 = vmatprep.subr.mxu0 %v2514
  %2708 = vmatpush1.msra.mxu0 %v2513
  %2709 = vmatprep.subr.mxu0 %v2502
  %2710 = vmatpush1.msra.mxu0 %v2501
  %2711 = vmatprep.subr.mxu0 %v2490
  %2712 = vmatpush1.msra.mxu0 %v2489
  %2713 = vmatprep.subr.mxu0 %v2478
  %2714 = vmatpush1.msra.mxu0 %v2477
  %2715 = vmatprep.subr.mxu0 %v2466
  %2716 = vmatpush1.msra.mxu0 %v2465
  %2717 = vmatprep.subr.mxu0 %v2454
  %2718 = vmatpush1.msra.mxu0 %v2453
  %2719 = vmatprep.subr.mxu0 0.0
  %2720 = vmatpush2.msra.mxu0 0.0
  %2721 = vmatprep.subr.mxu0 0.0
  %2722 = vmatpush2.msra.mxu0 0.0
  %2723 = vmatprep.subr.mxu0 0.0
  %2724 = vmatpush2.msra.mxu0 0.0
  %2725 = vmatprep.subr.mxu0 0.0
  %2726 = vmatpush2.msra.mxu0 0.0
  %2727 = vmatprep.subr.mxu0 0.0
  %2728 = vmatpush2.msra.mxu0 0.0
  %2729 = vmatprep.subr.mxu0 0.0
  %2730 = vmatpush2.msra.mxu0 0.0
  %2731 = vmatprep.subr.mxu0 0.0
  %2732 = vmatpush2.msra.mxu0 0.0
  %2733 = vmatprep.subr.mxu0 0.0
  %2734 = vmatpush2.msra.mxu0 0.0
  %2735 = vmatprep.subr.mxu0 0.0
  %2736 = vmatpush2.msra.mxu0 0.0
  %2737 = vmatprep.subr.mxu0 0.0
  %2738 = vmatpush2.msra.mxu0 0.0
  %2739 = vmatprep.subr.mxu0 0.0
  %2740 = vmatpush2.msra.mxu0 0.0
  %2741 = vmatprep.subr.mxu0 0.0
  %2742 = vmatpush2.msra.mxu0 0.0
  %2743 = vmatprep.subr.mxu0 0.0
  %2744 = vmatpush2.msra.mxu0 0.0
  %2745 = vmatprep.subr.mxu0 0.0
  %2746 = vmatpush2.msra.mxu0 0.0
  %2747 = vmatprep.subr.mxu0 %v2658
  %2748 = vmatpush2.msra.mxu0 %v2657
  %2749 = vmatprep.subr.mxu0 %v2646
  %2750 = vmatpush2.msra.mxu0 %v2645
  %2751 = vmatprep.mubr.f32.mxu0 %v2682
  %2752 = vmatmul.mubr.f32.gmra.mxu0 %v2449
  %v2753 = vpop.f32.mrf.mxu0
  %v2754 = vadd.f32 %v2675, %v2753
  %v2755 = vpop.f32.mrf.mxu0
  %v2756 = vadd.f32 %v2675, %v2755
  %2757 = vmatprep.mubr.f32.mxu0 %v2685
  %2758 = vmatmul.mubr.f32.gmra.mxu0 %v2451
  %v2759 = vpop.f32.mrf.mxu0
  %v2760 = vpop.f32.mrf.mxu0
  %2761 = vdwg.mxu0
  %2762 = vmatprep.subr.mxu0 %v2636
  %2763 = vmatpush1.msra.mxu0 %v2635
  %2764 = vmatprep.subr.mxu0 %v2624
  %2765 = vmatpush1.msra.mxu0 %v2623
  %2766 = vmatprep.subr.mxu0 %v2612
  %2767 = vmatpush1.msra.mxu0 %v2611
  %2768 = vmatprep.subr.mxu0 %v2600
  %2769 = vmatpush1.msra.mxu0 %v2599
  %2770 = vmatprep.subr.mxu0 %v2588
  %2771 = vmatpush1.msra.mxu0 %v2587
  %2772 = vmatprep.subr.mxu0 %v2576
  %2773 = vmatpush1.msra.mxu0 %v2575
  %2774 = vmatprep.subr.mxu0 %v2564
  %2775 = vmatpush1.msra.mxu0 %v2563
  %2776 = vmatprep.subr.mxu0 %v2552
  %2777 = vmatpush1.msra.mxu0 %v2551
  %2778 = vmatprep.subr.mxu0 %v2540
  %2779 = vmatpush1.msra.mxu0 %v2539
  %2780 = vmatprep.subr.mxu0 %v2528
  %2781 = vmatpush1.msra.mxu0 %v2527
  %2782 = vmatprep.subr.mxu0 %v2516
  %2783 = vmatpush1.msra.mxu0 %v2515
  %2784 = vmatprep.subr.mxu0 %v2504
  %2785 = vmatpush1.msra.mxu0 %v2503
  %2786 = vmatprep.subr.mxu0 %v2492
  %2787 = vmatpush1.msra.mxu0 %v2491
  %2788 = vmatprep.subr.mxu0 %v2480
  %2789 = vmatpush1.msra.mxu0 %v2479
  %2790 = vmatprep.subr.mxu0 %v2468
  %2791 = vmatpush1.msra.mxu0 %v2467
  %2792 = vmatprep.subr.mxu0 %v2456
  %2793 = vmatpush1.msra.mxu0 %v2455
  %2794 = vmatprep.subr.mxu0 0.0
  %2795 = vmatpush2.msra.mxu0 0.0
  %2796 = vmatprep.subr.mxu0 0.0
  %2797 = vmatpush2.msra.mxu0 0.0
  %2798 = vmatprep.subr.mxu0 0.0
  %2799 = vmatpush2.msra.mxu0 0.0
  %2800 = vmatprep.subr.mxu0 0.0
  %2801 = vmatpush2.msra.mxu0 0.0
  %2802 = vmatprep.subr.mxu0 0.0
  %2803 = vmatpush2.msra.mxu0 0.0
  %2804 = vmatprep.subr.mxu0 0.0
  %2805 = vmatpush2.msra.mxu0 0.0
  %2806 = vmatprep.subr.mxu0 0.0
  %2807 = vmatpush2.msra.mxu0 0.0
  %2808 = vmatprep.subr.mxu0 0.0
  %2809 = vmatpush2.msra.mxu0 0.0
  %2810 = vmatprep.subr.mxu0 0.0
  %2811 = vmatpush2.msra.mxu0 0.0
  %2812 = vmatprep.subr.mxu0 0.0
  %2813 = vmatpush2.msra.mxu0 0.0
  %2814 = vmatprep.subr.mxu0 0.0
  %2815 = vmatpush2.msra.mxu0 0.0
  %2816 = vmatprep.subr.mxu0 0.0
  %2817 = vmatpush2.msra.mxu0 0.0
  %2818 = vmatprep.subr.mxu0 0.0
  %2819 = vmatpush2.msra.mxu0 0.0
  %2820 = vmatprep.subr.mxu0 0.0
  %2821 = vmatpush2.msra.mxu0 0.0
  %2822 = vmatprep.subr.mxu0 %v2660
  %2823 = vmatpush2.msra.mxu0 %v2659
  %2824 = vmatprep.subr.mxu0 %v2648
  %2825 = vmatpush2.msra.mxu0 %v2647
  %2826 = vmatprep.mubr.f32.mxu0 %v2682
  %2827 = vmatmul.mubr.f32.gmra.mxu0 %v2449
  %v2828 = vpop.f32.mrf.mxu0
  %v2829 = vadd.f32 %v2675, %v2828
  %v2830 = vpop.f32.mrf.mxu0
  %v2831 = vadd.f32 %v2675, %v2830
  %2832 = vmatprep.mubr.f32.mxu0 %v2685
  %2833 = vmatmul.mubr.f32.gmra.mxu0 %v2451
  %v2834 = vpop.f32.mrf.mxu0
  %v2835 = vpop.f32.mrf.mxu0
  %2836 = vdwg.mxu0
  %2837 = vmatprep.subr.mxu0 %v2638
  %2838 = vmatpush1.msra.mxu0 %v2637
  %2839 = vmatprep.subr.mxu0 %v2626
  %2840 = vmatpush1.msra.mxu0 %v2625
  %2841 = vmatprep.subr.mxu0 %v2614
  %2842 = vmatpush1.msra.mxu0 %v2613
  %2843 = vmatprep.subr.mxu0 %v2602
  %2844 = vmatpush1.msra.mxu0 %v2601
  %2845 = vmatprep.subr.mxu0 %v2590
  %2846 = vmatpush1.msra.mxu0 %v2589
  %2847 = vmatprep.subr.mxu0 %v2578
  %2848 = vmatpush1.msra.mxu0 %v2577
  %2849 = vmatprep.subr.mxu0 %v2566
  %2850 = vmatpush1.msra.mxu0 %v2565
  %2851 = vmatprep.subr.mxu0 %v2554
  %2852 = vmatpush1.msra.mxu0 %v2553
  %2853 = vmatprep.subr.mxu0 %v2542
  %2854 = vmatpush1.msra.mxu0 %v2541
  %2855 = vmatprep.subr.mxu0 %v2530
  %2856 = vmatpush1.msra.mxu0 %v2529
  %2857 = vmatprep.subr.mxu0 %v2518
  %2858 = vmatpush1.msra.mxu0 %v2517
  %2859 = vmatprep.subr.mxu0 %v2506
  %2860 = vmatpush1.msra.mxu0 %v2505
  %2861 = vmatprep.subr.mxu0 %v2494
  %2862 = vmatpush1.msra.mxu0 %v2493
  %2863 = vmatprep.subr.mxu0 %v2482
  %2864 = vmatpush1.msra.mxu0 %v2481
  %2865 = vmatprep.subr.mxu0 %v2470
  %2866 = vmatpush1.msra.mxu0 %v2469
  %2867 = vmatprep.subr.mxu0 %v2458
  %2868 = vmatpush1.msra.mxu0 %v2457
  %2869 = vmatprep.subr.mxu0 0.0
  %2870 = vmatpush2.msra.mxu0 0.0
  %2871 = vmatprep.subr.mxu0 0.0
  %2872 = vmatpush2.msra.mxu0 0.0
  %2873 = vmatprep.subr.mxu0 0.0
  %2874 = vmatpush2.msra.mxu0 0.0
  %2875 = vmatprep.subr.mxu0 0.0
  %2876 = vmatpush2.msra.mxu0 0.0
  %2877 = vmatprep.subr.mxu0 0.0
  %2878 = vmatpush2.msra.mxu0 0.0
  %2879 = vmatprep.subr.mxu0 0.0
  %2880 = vmatpush2.msra.mxu0 0.0
  %2881 = vmatprep.subr.mxu0 0.0
  %2882 = vmatpush2.msra.mxu0 0.0
  %2883 = vmatprep.subr.mxu0 0.0
  %2884 = vmatpush2.msra.mxu0 0.0
  %2885 = vmatprep.subr.mxu0 0.0
  %2886 = vmatpush2.msra.mxu0 0.0
  %2887 = vmatprep.subr.mxu0 0.0
  %2888 = vmatpush2.msra.mxu0 0.0
  %2889 = vmatprep.subr.mxu0 0.0
  %2890 = vmatpush2.msra.mxu0 0.0
  %2891 = vmatprep.subr.mxu0 0.0
  %2892 = vmatpush2.msra.mxu0 0.0
  %2893 = vmatprep.subr.mxu0 0.0
  %2894 = vmatpush2.msra.mxu0 0.0
  %2895 = vmatprep.subr.mxu0 0.0
  %2896 = vmatpush2.msra.mxu0 0.0
  %2897 = vmatprep.subr.mxu0 %v2662
  %2898 = vmatpush2.msra.mxu0 %v2661
  %2899 = vmatprep.subr.mxu0 %v2650
  %2900 = vmatpush2.msra.mxu0 %v2649
  %2901 = vmatprep.mubr.f32.mxu0 %v2682
  %2902 = vmatmul.mubr.f32.gmra.mxu0 %v2449
  %v2903 = vpop.f32.mrf.mxu0
  %v2904 = vadd.f32 %v2675, %v2903
  %v2905 = vpop.f32.mrf.mxu0
  %v2906 = vadd.f32 %v2675, %v2905
  %2907 = vmatprep.mubr.f32.mxu0 %v2685
  %2908 = vmatmul.mubr.f32.gmra.mxu0 %v2451
  %v2909 = vpop.f32.mrf.mxu0
  %v2910 = vpop.f32.mrf.mxu0
  %2911 = vdwg.mxu0
  %2912 = vmatprep.subr.mxu0 %v2640
  %2913 = vmatpush1.msra.mxu0 %v2639
  %2914 = vmatprep.subr.mxu0 %v2628
  %2915 = vmatpush1.msra.mxu0 %v2627
  %2916 = vmatprep.subr.mxu0 %v2616
  %2917 = vmatpush1.msra.mxu0 %v2615
  %2918 = vmatprep.subr.mxu0 %v2604
  %2919 = vmatpush1.msra.mxu0 %v2603
  %2920 = vmatprep.subr.mxu0 %v2592
  %2921 = vmatpush1.msra.mxu0 %v2591
  %2922 = vmatprep.subr.mxu0 %v2580
  %2923 = vmatpush1.msra.mxu0 %v2579
  %2924 = vmatprep.subr.mxu0 %v2568
  %2925 = vmatpush1.msra.mxu0 %v2567
  %2926 = vmatprep.subr.mxu0 %v2556
  %2927 = vmatpush1.msra.mxu0 %v2555
  %2928 = vmatprep.subr.mxu0 %v2544
  %2929 = vmatpush1.msra.mxu0 %v2543
  %2930 = vmatprep.subr.mxu0 %v2532
  %2931 = vmatpush1.msra.mxu0 %v2531
  %2932 = vmatprep.subr.mxu0 %v2520
  %2933 = vmatpush1.msra.mxu0 %v2519
  %2934 = vmatprep.subr.mxu0 %v2508
  %2935 = vmatpush1.msra.mxu0 %v2507
  %2936 = vmatprep.subr.mxu0 %v2496
  %2937 = vmatpush1.msra.mxu0 %v2495
  %2938 = vmatprep.subr.mxu0 %v2484
  %2939 = vmatpush1.msra.mxu0 %v2483
  %2940 = vmatprep.subr.mxu0 %v2472
  %2941 = vmatpush1.msra.mxu0 %v2471
  %2942 = vmatprep.subr.mxu0 %v2460
  %2943 = vmatpush1.msra.mxu0 %v2459
  %2944 = vmatprep.subr.mxu0 0.0
  %2945 = vmatpush2.msra.mxu0 0.0
  %2946 = vmatprep.subr.mxu0 0.0
  %2947 = vmatpush2.msra.mxu0 0.0
  %2948 = vmatprep.subr.mxu0 0.0
  %2949 = vmatpush2.msra.mxu0 0.0
  %2950 = vmatprep.subr.mxu0 0.0
  %2951 = vmatpush2.msra.mxu0 0.0
  %2952 = vmatprep.subr.mxu0 0.0
  %2953 = vmatpush2.msra.mxu0 0.0
  %2954 = vmatprep.subr.mxu0 0.0
  %2955 = vmatpush2.msra.mxu0 0.0
  %2956 = vmatprep.subr.mxu0 0.0
  %2957 = vmatpush2.msra.mxu0 0.0
  %2958 = vmatprep.subr.mxu0 0.0
  %2959 = vmatpush2.msra.mxu0 0.0
  %2960 = vmatprep.subr.mxu0 0.0
  %2961 = vmatpush2.msra.mxu0 0.0
  %2962 = vmatprep.subr.mxu0 0.0
  %2963 = vmatpush2.msra.mxu0 0.0
  %2964 = vmatprep.subr.mxu0 0.0
  %2965 = vmatpush2.msra.mxu0 0.0
  %2966 = vmatprep.subr.mxu0 0.0
  %2967 = vmatpush2.msra.mxu0 0.0
  %2968 = vmatprep.subr.mxu0 0.0
  %2969 = vmatpush2.msra.mxu0 0.0
  %2970 = vmatprep.subr.mxu0 0.0
  %2971 = vmatpush2.msra.mxu0 0.0
  %2972 = vmatprep.subr.mxu0 %v2664
  %2973 = vmatpush2.msra.mxu0 %v2663
  %2974 = vmatprep.subr.mxu0 %v2652
  %2975 = vmatpush2.msra.mxu0 %v2651
  %2976 = vmatprep.mubr.f32.mxu0 %v2682
  %2977 = vmatmul.mubr.f32.gmra.mxu0 %v2449
  %v2978 = vpop.f32.mrf.mxu0
  %v2979 = vadd.f32 %v2675, %v2978
  %v2980 = vpop.f32.mrf.mxu0
  %v2981 = vadd.f32 %v2675, %v2980
  %2982 = vmatprep.mubr.f32.mxu0 %v2685
  %2983 = vmatmul.mubr.f32.gmra.mxu0 %v2451
  %v2984 = vpop.f32.mrf.mxu0
  %v2985 = vpop.f32.mrf.mxu0
  %2986 = vdwg.mxu0
  %2987 = vmatprep.subr.mxu0 %v2642
  %2988 = vmatpush1.msra.mxu0 %v2641
  %2989 = vmatprep.subr.mxu0 %v2630
  %2990 = vmatpush1.msra.mxu0 %v2629
  %2991 = vmatprep.subr.mxu0 %v2618
  %2992 = vmatpush1.msra.mxu0 %v2617
  %2993 = vmatprep.subr.mxu0 %v2606
  %2994 = vmatpush1.msra.mxu0 %v2605
  %2995 = vmatprep.subr.mxu0 %v2594
  %2996 = vmatpush1.msra.mxu0 %v2593
  %2997 = vmatprep.subr.mxu0 %v2582
  %2998 = vmatpush1.msra.mxu0 %v2581
  %2999 = vmatprep.subr.mxu0 %v2570
  %3000 = vmatpush1.msra.mxu0 %v2569
  %3001 = vmatprep.subr.mxu0 %v2558
  %3002 = vmatpush1.msra.mxu0 %v2557
  %3003 = vmatprep.subr.mxu0 %v2546
  %3004 = vmatpush1.msra.mxu0 %v2545
  %3005 = vmatprep.subr.mxu0 %v2534
  %3006 = vmatpush1.msra.mxu0 %v2533
  %3007 = vmatprep.subr.mxu0 %v2522
  %3008 = vmatpush1.msra.mxu0 %v2521
  %3009 = vmatprep.subr.mxu0 %v2510
  %3010 = vmatpush1.msra.mxu0 %v2509
  %3011 = vmatprep.subr.mxu0 %v2498
  %3012 = vmatpush1.msra.mxu0 %v2497
  %3013 = vmatprep.subr.mxu0 %v2486
  %3014 = vmatpush1.msra.mxu0 %v2485
  %3015 = vmatprep.subr.mxu0 %v2474
  %3016 = vmatpush1.msra.mxu0 %v2473
  %3017 = vmatprep.subr.mxu0 %v2462
  %3018 = vmatpush1.msra.mxu0 %v2461
  %3019 = vmatprep.subr.mxu0 0.0
  %3020 = vmatpush2.msra.mxu0 0.0
  %3021 = vmatprep.subr.mxu0 0.0
  %3022 = vmatpush2.msra.mxu0 0.0
  %3023 = vmatprep.subr.mxu0 0.0
  %3024 = vmatpush2.msra.mxu0 0.0
  %3025 = vmatprep.subr.mxu0 0.0
  %3026 = vmatpush2.msra.mxu0 0.0
  %3027 = vmatprep.subr.mxu0 0.0
  %3028 = vmatpush2.msra.mxu0 0.0
  %3029 = vmatprep.subr.mxu0 0.0
  %3030 = vmatpush2.msra.mxu0 0.0
  %3031 = vmatprep.subr.mxu0 0.0
  %3032 = vmatpush2.msra.mxu0 0.0
  %3033 = vmatprep.subr.mxu0 0.0
  %3034 = vmatpush2.msra.mxu0 0.0
  %3035 = vmatprep.subr.mxu0 0.0
  %3036 = vmatpush2.msra.mxu0 0.0
  %3037 = vmatprep.subr.mxu0 0.0
  %3038 = vmatpush2.msra.mxu0 0.0
  %3039 = vmatprep.subr.mxu0 0.0
  %3040 = vmatpush2.msra.mxu0 0.0
  %3041 = vmatprep.subr.mxu0 0.0
  %3042 = vmatpush2.msra.mxu0 0.0
  %3043 = vmatprep.subr.mxu0 0.0
  %3044 = vmatpush2.msra.mxu0 0.0
  %3045 = vmatprep.subr.mxu0 0.0
  %3046 = vmatpush2.msra.mxu0 0.0
  %3047 = vmatprep.subr.mxu0 %v2666
  %3048 = vmatpush2.msra.mxu0 %v2665
  %3049 = vmatprep.subr.mxu0 %v2654
  %3050 = vmatpush2.msra.mxu0 %v2653
  %3051 = vmatprep.mubr.f32.mxu0 %v2682
  %3052 = vmatmul.mubr.f32.gmra.mxu0 %v2449
  %v3053 = vpop.f32.mrf.mxu0
  %v3054 = vadd.f32 %v2675, %v3053
  %v3055 = vpop.f32.mrf.mxu0
  %v3056 = vadd.f32 %v2675, %v3055
  %3057 = vmatprep.mubr.f32.mxu0 %v2685
  %3058 = vmatmul.mubr.f32.gmra.mxu0 %v2451
  %v3059 = vpop.f32.mrf.mxu0
  %v3060 = vpop.f32.mrf.mxu0
  %3061 = vdwg.mxu0
  %3062 = vmatprep.subr.mxu0 %v2644
  %3063 = vmatpush1.msra.mxu0 %v2643
  %3064 = vmatprep.subr.mxu0 %v2632
  %3065 = vmatpush1.msra.mxu0 %v2631
  %3066 = vmatprep.subr.mxu0 %v2620
  %3067 = vmatpush1.msra.mxu0 %v2619
  %3068 = vmatprep.subr.mxu0 %v2608
  %3069 = vmatpush1.msra.mxu0 %v2607
  %3070 = vmatprep.subr.mxu0 %v2596
  %3071 = vmatpush1.msra.mxu0 %v2595
  %3072 = vmatprep.subr.mxu0 %v2584
  %3073 = vmatpush1.msra.mxu0 %v2583
  %3074 = vmatprep.subr.mxu0 %v2572
  %3075 = vmatpush1.msra.mxu0 %v2571
  %3076 = vmatprep.subr.mxu0 %v2560
  %3077 = vmatpush1.msra.mxu0 %v2559
  %3078 = vmatprep.subr.mxu0 %v2548
  %3079 = vmatpush1.msra.mxu0 %v2547
  %3080 = vmatprep.subr.mxu0 %v2536
  %3081 = vmatpush1.msra.mxu0 %v2535
  %3082 = vmatprep.subr.mxu0 %v2524
  %3083 = vmatpush1.msra.mxu0 %v2523
  %3084 = vmatprep.subr.mxu0 %v2512
  %3085 = vmatpush1.msra.mxu0 %v2511
  %3086 = vmatprep.subr.mxu0 %v2500
  %3087 = vmatpush1.msra.mxu0 %v2499
  %3088 = vmatprep.subr.mxu0 %v2488
  %3089 = vmatpush1.msra.mxu0 %v2487
  %3090 = vmatprep.subr.mxu0 %v2476
  %3091 = vmatpush1.msra.mxu0 %v2475
  %3092 = vmatprep.subr.mxu0 %v2464
  %3093 = vmatpush1.msra.mxu0 %v2463
  %3094 = vmatprep.subr.mxu0 0.0
  %3095 = vmatpush2.msra.mxu0 0.0
  %3096 = vmatprep.subr.mxu0 0.0
  %3097 = vmatpush2.msra.mxu0 0.0
  %3098 = vmatprep.subr.mxu0 0.0
  %3099 = vmatpush2.msra.mxu0 0.0
  %3100 = vmatprep.subr.mxu0 0.0
  %3101 = vmatpush2.msra.mxu0 0.0
  %3102 = vmatprep.subr.mxu0 0.0
  %3103 = vmatpush2.msra.mxu0 0.0
  %3104 = vmatprep.subr.mxu0 0.0
  %3105 = vmatpush2.msra.mxu0 0.0
  %3106 = vmatprep.subr.mxu0 0.0
  %3107 = vmatpush2.msra.mxu0 0.0
  %3108 = vmatprep.subr.mxu0 0.0
  %3109 = vmatpush2.msra.mxu0 0.0
  %3110 = vmatprep.subr.mxu0 0.0
  %3111 = vmatpush2.msra.mxu0 0.0
  %3112 = vmatprep.subr.mxu0 0.0
  %3113 = vmatpush2.msra.mxu0 0.0
  %3114 = vmatprep.subr.mxu0 0.0
  %3115 = vmatpush2.msra.mxu0 0.0
  %3116 = vmatprep.subr.mxu0 0.0
  %3117 = vmatpush2.msra.mxu0 0.0
  %3118 = vmatprep.subr.mxu0 0.0
  %3119 = vmatpush2.msra.mxu0 0.0
  %3120 = vmatprep.subr.mxu0 0.0
  %3121 = vmatpush2.msra.mxu0 0.0
  %3122 = vmatprep.subr.mxu0 %v2668
  %3123 = vmatpush2.msra.mxu0 %v2667
  %3124 = vmatprep.subr.mxu0 %v2656
  %3125 = vmatpush2.msra.mxu0 %v2655
  %3126 = vmatprep.mubr.f32.mxu0 %v2682
  %3127 = vmatmul.mubr.f32.gmra.mxu0 %v2449
  %v3128 = vpop.f32.mrf.mxu0
  %v3129 = vadd.f32 %v2675, %v3128
  %v3130 = vpop.f32.mrf.mxu0
  %v3131 = vadd.f32 %v2675, %v3130
  %3132 = vmatprep.mubr.f32.mxu0 %v2685
  %3133 = vmatmul.mubr.f32.gmra.mxu0 %v2451
  %v3134 = vpop.f32.mrf.mxu0
  %v3135 = vpop.f32.mrf.mxu0
  %3136 = vdwg.mxu0
  %v3137 = vmax.f32 %v2754, 0.0
  %v3138 = vmax.f32 %v2756, 0.0
  %v3139 = vmax.f32 %v2829, 0.0
  %v3140 = vmax.f32 %v2831, 0.0
  %v3141 = vmax.f32 %v2904, 0.0
  %v3142 = vmax.f32 %v2906, 0.0
  %v3143 = vmax.f32 %v2979, 0.0
  %v3144 = vmax.f32 %v2981, 0.0
  %v3145 = vmax.f32 %v3054, 0.0
  %v3146 = vmax.f32 %v3056, 0.0
  %v3147 = vmax.f32 %v3129, 0.0
  %v3148 = vmax.f32 %v3131, 0.0
  %v3149 = vmul.f32 %v3137, %v1575
  %v3150 = vmul.f32 %v3138, %v1579
  %v3151 = vmul.f32 %v3139, %v1583
  %v3152 = vmul.f32 %v3140, %v1587
  %v3153 = vmul.f32 %v3141, %v1591
  %v3154 = vmul.f32 %v3142, %v1595
  %v3155 = vmul.f32 %v3143, %v1599
  %v3156 = vmul.f32 %v3144, %v1603
  %v3157 = vmul.f32 %v3145, %v1607
  %v3158 = vmul.f32 %v3146, %v1611
  %v3159 = vmul.f32 %v3147, %v1615
  %v3160 = vmul.f32 %v3148, %v1619
  %3161 = vrot.lane.b32.xlu0 %v3149, 19
  %v3162 = vpop.permute.xlu0 %3161
  %3163 = vrot.lane.b32.xlu0 %v3155, 19
  %v3164 = vpop.permute.xlu0 %3163
  %3165 = vrot.lane.b32.xlu0 %v3150, 19
  %v3166 = vpop.permute.xlu0 %3165
  %3167 = vrot.lane.b32.xlu0 %v3156, 19
  %v3168 = vpop.permute.xlu0 %3167
  %3169 = vrot.lane.b32.xlu0 %v3151, 19
  %v3170 = vpop.permute.xlu0 %3169
  %3171 = vrot.lane.b32.xlu0 %v3157, 19
  %v3172 = vpop.permute.xlu0 %3171
  %3173 = vrot.lane.b32.xlu0 %v3152, 19
  %v3174 = vpop.permute.xlu0 %3173
  %3175 = vrot.lane.b32.xlu0 %v3158, 19
  %v3176 = vpop.permute.xlu0 %3175
  %3177 = vrot.lane.b32.xlu0 %v3153, 19
  %v3178 = vpop.permute.xlu0 %3177
  %3179 = vrot.lane.b32.xlu0 %v3159, 19
  %v3180 = vpop.permute.xlu0 %3179
  %3181 = vrot.lane.b32.xlu0 %v3154, 19
  %v3182 = vpop.permute.xlu0 %3181
  %3183 = vrot.lane.b32.xlu0 %v3160, 19
  %v3184 = vpop.permute.xlu0 %3183
  %v3185 = vsel %vm93, %v3178, %v3182
  %v3186 = vsel %vm93, %v3180, %v3184
  %v3187 = vsel %vm93, %v3174, %v3178
  %v3188 = vsel %vm93, %v3176, %v3180
  %v3189 = vsel %vm93, %v3170, %v3174
  %v3190 = vsel %vm93, %v3172, %v3176
  %v3191 = vsel %vm93, %v3166, %v3170
  %v3192 = vsel %vm93, %v3168, %v3172
  %v3193 = vsel %vm93, %v3162, %v3166
  %v3194 = vsel %vm93, %v3164, %v3168
  %v3195 = vsel %vm93, %v3182, %v3162
  %v3196 = vsel %vm93, %v3184, %v3164
  %3197 = vst [vmem:[#allocation2] sm:$0xff] %v3195
  %3198 = vst [vmem:[#allocation2 + $0x8] sm:$0xff] %v3193
  %3199 = vst [vmem:[#allocation2 + $0x10] sm:$0xff] %v3191
  %3200 = vst [vmem:[#allocation2 + $0x18] sm:$0xff] %v3189
  %3201 = vst [vmem:[#allocation2 + $0x20] sm:$0xff] %v3187
  %3202 = vst [vmem:[#allocation2 + $0x28] sm:$0xff] %v3185
  %3203 = vst [vmem:[#allocation2 + $0x60] sm:$0xff] %v3196
  %3204 = vst [vmem:[#allocation2 + $0x68] sm:$0xff] %v3194
  %3205 = vst [vmem:[#allocation2 + $0x70] sm:$0xff] %v3192
  %3206 = vst [vmem:[#allocation2 + $0x78] sm:$0xff] %v3190
  %3207 = vst [vmem:[#allocation2 + $0x80] sm:$0xff] %v3188
  %3208 = vst [vmem:[#allocation2 + $0x88] sm:$0xff] %v3186
  %3209 = vrot.lane.b32.xlu0 %v3149, 18
  %v3210 = vpop.permute.xlu0 %3209
  %3211 = vrot.lane.b32.xlu0 %v3155, 18
  %v3212 = vpop.permute.xlu0 %3211
  %3213 = vrot.lane.b32.xlu0 %v3150, 18
  %v3214 = vpop.permute.xlu0 %3213
  %3215 = vrot.lane.b32.xlu0 %v3156, 18
  %v3216 = vpop.permute.xlu0 %3215
  %3217 = vrot.lane.b32.xlu0 %v3151, 18
  %v3218 = vpop.permute.xlu0 %3217
  %3219 = vrot.lane.b32.xlu0 %v3157, 18
  %v3220 = vpop.permute.xlu0 %3219
  %3221 = vrot.lane.b32.xlu0 %v3152, 18
  %v3222 = vpop.permute.xlu0 %3221
  %3223 = vrot.lane.b32.xlu0 %v3158, 18
  %v3224 = vpop.permute.xlu0 %3223
  %3225 = vrot.lane.b32.xlu0 %v3153, 18
  %v3226 = vpop.permute.xlu0 %3225
  %3227 = vrot.lane.b32.xlu0 %v3159, 18
  %v3228 = vpop.permute.xlu0 %3227
  %3229 = vrot.lane.b32.xlu0 %v3154, 18
  %v3230 = vpop.permute.xlu0 %3229
  %3231 = vrot.lane.b32.xlu0 %v3160, 18
  %v3232 = vpop.permute.xlu0 %3231
  %v3233 = vsel %vm190, %v3226, %v3230
  %v3234 = vsel %vm190, %v3228, %v3232
  %v3235 = vsel %vm190, %v3222, %v3226
  %v3236 = vsel %vm190, %v3224, %v3228
  %v3237 = vsel %vm190, %v3218, %v3222
  %v3238 = vsel %vm190, %v3220, %v3224
  %v3239 = vsel %vm190, %v3214, %v3218
  %v3240 = vsel %vm190, %v3216, %v3220
  %v3241 = vsel %vm190, %v3210, %v3214
  %v3242 = vsel %vm190, %v3212, %v3216
  %v3243 = vsel %vm190, %v3230, %v3210
  %v3244 = vsel %vm190, %v3232, %v3212
  %3245 = vst [vmem:[#allocation2 + $0xc0] sm:$0xff] %v3243
  %3246 = vst [vmem:[#allocation2 + $0xc8] sm:$0xff] %v3241
  %3247 = vst [vmem:[#allocation2 + $0xd0] sm:$0xff] %v3239
  %3248 = vst [vmem:[#allocation2 + $0xd8] sm:$0xff] %v3237
  %3249 = vst [vmem:[#allocation2 + $0xe0] sm:$0xff] %v3235
  %3250 = vst [vmem:[#allocation2 + $0xe8] sm:$0xff] %v3233
  %3251 = vst [vmem:[#allocation2 + $0x120] sm:$0xff] %v3244
  %3252 = vst [vmem:[#allocation2 + $0x128] sm:$0xff] %v3242
  %3253 = vst [vmem:[#allocation2 + $0x130] sm:$0xff] %v3240
  %3254 = vst [vmem:[#allocation2 + $0x138] sm:$0xff] %v3238
  %3255 = vst [vmem:[#allocation2 + $0x140] sm:$0xff] %v3236
  %3256 = vst [vmem:[#allocation2 + $0x148] sm:$0xff] %v3234
  %3257 = vrot.lane.b32.xlu0 %v3149, 17
  %v3258 = vpop.permute.xlu0 %3257
  %3259 = vrot.lane.b32.xlu0 %v3155, 17
  %v3260 = vpop.permute.xlu0 %3259
  %3261 = vrot.lane.b32.xlu0 %v3150, 17
  %v3262 = vpop.permute.xlu0 %3261
  %3263 = vrot.lane.b32.xlu0 %v3156, 17
  %v3264 = vpop.permute.xlu0 %3263
  %3265 = vrot.lane.b32.xlu0 %v3151, 17
  %v3266 = vpop.permute.xlu0 %3265
  %3267 = vrot.lane.b32.xlu0 %v3157, 17
  %v3268 = vpop.permute.xlu0 %3267
  %3269 = vrot.lane.b32.xlu0 %v3152, 17
  %v3270 = vpop.permute.xlu0 %3269
  %3271 = vrot.lane.b32.xlu0 %v3158, 17
  %v3272 = vpop.permute.xlu0 %3271
  %3273 = vrot.lane.b32.xlu0 %v3153, 17
  %v3274 = vpop.permute.xlu0 %3273
  %3275 = vrot.lane.b32.xlu0 %v3159, 17
  %v3276 = vpop.permute.xlu0 %3275
  %3277 = vrot.lane.b32.xlu0 %v3154, 17
  %v3278 = vpop.permute.xlu0 %3277
  %3279 = vrot.lane.b32.xlu0 %v3160, 17
  %v3280 = vpop.permute.xlu0 %3279
  %v3281 = vsel %vm287, %v3274, %v3278
  %v3282 = vsel %vm287, %v3276, %v3280
  %v3283 = vsel %vm287, %v3270, %v3274
  %v3284 = vsel %vm287, %v3272, %v3276
  %v3285 = vsel %vm287, %v3266, %v3270
  %v3286 = vsel %vm287, %v3268, %v3272
  %v3287 = vsel %vm287, %v3262, %v3266
  %v3288 = vsel %vm287, %v3264, %v3268
  %v3289 = vsel %vm287, %v3258, %v3262
  %v3290 = vsel %vm287, %v3260, %v3264
  %v3291 = vsel %vm287, %v3278, %v3258
  %v3292 = vsel %vm287, %v3280, %v3260
  %3293 = vst [vmem:[#allocation2 + $0x180] sm:$0xff] %v3291
  %3294 = vst [vmem:[#allocation2 + $0x188] sm:$0xff] %v3289
  %3295 = vst [vmem:[#allocation2 + $0x190] sm:$0xff] %v3287
  %3296 = vst [vmem:[#allocation2 + $0x198] sm:$0xff] %v3285
  %3297 = vst [vmem:[#allocation2 + $0x1a0] sm:$0xff] %v3283
  %3298 = vst [vmem:[#allocation2 + $0x1a8] sm:$0xff] %v3281
  %3299 = vst [vmem:[#allocation2 + $0x1e0] sm:$0xff] %v3292
  %3300 = vst [vmem:[#allocation2 + $0x1e8] sm:$0xff] %v3290
  %3301 = vst [vmem:[#allocation2 + $0x1f0] sm:$0xff] %v3288
  %3302 = vst [vmem:[#allocation2 + $0x1f8] sm:$0xff] %v3286
  %3303 = vst [vmem:[#allocation2 + $0x200] sm:$0xff] %v3284
  %3304 = vst [vmem:[#allocation2 + $0x208] sm:$0xff] %v3282
  %3305 = vrot.lane.b32.xlu0 %v3149, 1
  %v3306 = vpop.permute.xlu0 %3305
  %3307 = vrot.lane.b32.xlu0 %v3155, 1
  %v3308 = vpop.permute.xlu0 %3307
  %3309 = vrot.lane.b32.xlu0 %v3150, 1
  %v3310 = vpop.permute.xlu0 %3309
  %3311 = vrot.lane.b32.xlu0 %v3156, 1
  %v3312 = vpop.permute.xlu0 %3311
  %3313 = vrot.lane.b32.xlu0 %v3151, 1
  %v3314 = vpop.permute.xlu0 %3313
  %3315 = vrot.lane.b32.xlu0 %v3157, 1
  %v3316 = vpop.permute.xlu0 %3315
  %3317 = vrot.lane.b32.xlu0 %v3152, 1
  %v3318 = vpop.permute.xlu0 %3317
  %3319 = vrot.lane.b32.xlu0 %v3158, 1
  %v3320 = vpop.permute.xlu0 %3319
  %3321 = vrot.lane.b32.xlu0 %v3153, 1
  %v3322 = vpop.permute.xlu0 %3321
  %3323 = vrot.lane.b32.xlu0 %v3159, 1
  %v3324 = vpop.permute.xlu0 %3323
  %3325 = vrot.lane.b32.xlu0 %v3154, 1
  %v3326 = vpop.permute.xlu0 %3325
  %3327 = vrot.lane.b32.xlu0 %v3160, 1
  %v3328 = vpop.permute.xlu0 %3327
  %v3329 = vsel %vm384, %v3322, %v3326
  %v3330 = vsel %vm384, %v3324, %v3328
  %v3331 = vsel %vm384, %v3318, %v3322
  %v3332 = vsel %vm384, %v3320, %v3324
  %v3333 = vsel %vm384, %v3314, %v3318
  %v3334 = vsel %vm384, %v3316, %v3320
  %v3335 = vsel %vm384, %v3310, %v3314
  %v3336 = vsel %vm384, %v3312, %v3316
  %v3337 = vsel %vm384, %v3306, %v3310
  %v3338 = vsel %vm384, %v3308, %v3312
  %v3339 = vsel %vm384, %v3326, %v3306
  %v3340 = vsel %vm384, %v3328, %v3308
  %3341 = vst [vmem:[#allocation2 + $0x240] sm:$0xff] %v3339
  %3342 = vst [vmem:[#allocation2 + $0x248] sm:$0xff] %v3337
  %3343 = vst [vmem:[#allocation2 + $0x250] sm:$0xff] %v3335
  %3344 = vst [vmem:[#allocation2 + $0x258] sm:$0xff] %v3333
  %3345 = vst [vmem:[#allocation2 + $0x260] sm:$0xff] %v3331
  %3346 = vst [vmem:[#allocation2 + $0x268] sm:$0xff] %v3329
  %3347 = vst [vmem:[#allocation2 + $0x2a0] sm:$0xff] %v3340
  %3348 = vst [vmem:[#allocation2 + $0x2a8] sm:$0xff] %v3338
  %3349 = vst [vmem:[#allocation2 + $0x2b0] sm:$0xff] %v3336
  %3350 = vst [vmem:[#allocation2 + $0x2b8] sm:$0xff] %v3334
  %3351 = vst [vmem:[#allocation2 + $0x2c0] sm:$0xff] %v3332
  %3352 = vst [vmem:[#allocation2 + $0x2c8] sm:$0xff] %v3330
  %3353 = vst [vmem:[#allocation2 + $0x300] sm:$0xff] %v3149
  %3354 = vst [vmem:[#allocation2 + $0x308] sm:$0xff] %v3150
  %3355 = vst [vmem:[#allocation2 + $0x310] sm:$0xff] %v3151
  %3356 = vst [vmem:[#allocation2 + $0x318] sm:$0xff] %v3152
  %3357 = vst [vmem:[#allocation2 + $0x320] sm:$0xff] %v3153
  %3358 = vst [vmem:[#allocation2 + $0x328] sm:$0xff] %v3154
  %3359 = vst [vmem:[#allocation2 + $0x360] sm:$0xff] %v3155
  %3360 = vst [vmem:[#allocation2 + $0x368] sm:$0xff] %v3156
  %3361 = vst [vmem:[#allocation2 + $0x370] sm:$0xff] %v3157
  %3362 = vst [vmem:[#allocation2 + $0x378] sm:$0xff] %v3158
  %3363 = vst [vmem:[#allocation2 + $0x380] sm:$0xff] %v3159
  %3364 = vst [vmem:[#allocation2 + $0x388] sm:$0xff] %v3160
  %3365 = vrot.lane.b32.xlu0 %v3149, 127
  %v3366 = vpop.permute.xlu0 %3365
  %3367 = vrot.lane.b32.xlu0 %v3155, 127
  %v3368 = vpop.permute.xlu0 %3367
  %3369 = vrot.lane.b32.xlu0 %v3150, 127
  %v3370 = vpop.permute.xlu0 %3369
  %3371 = vrot.lane.b32.xlu0 %v3156, 127
  %v3372 = vpop.permute.xlu0 %3371
  %3373 = vrot.lane.b32.xlu0 %v3151, 127
  %v3374 = vpop.permute.xlu0 %3373
  %3375 = vrot.lane.b32.xlu0 %v3157, 127
  %v3376 = vpop.permute.xlu0 %3375
  %3377 = vrot.lane.b32.xlu0 %v3152, 127
  %v3378 = vpop.permute.xlu0 %3377
  %3379 = vrot.lane.b32.xlu0 %v3158, 127
  %v3380 = vpop.permute.xlu0 %3379
  %3381 = vrot.lane.b32.xlu0 %v3153, 127
  %v3382 = vpop.permute.xlu0 %3381
  %3383 = vrot.lane.b32.xlu0 %v3159, 127
  %v3384 = vpop.permute.xlu0 %3383
  %3385 = vrot.lane.b32.xlu0 %v3154, 127
  %v3386 = vpop.permute.xlu0 %3385
  %3387 = vrot.lane.b32.xlu0 %v3160, 127
  %v3388 = vpop.permute.xlu0 %3387
  %v3389 = vsel %vm505, %v3382, %v3386
  %v3390 = vsel %vm505, %v3384, %v3388
  %v3391 = vsel %vm505, %v3378, %v3382
  %v3392 = vsel %vm505, %v3380, %v3384
  %v3393 = vsel %vm505, %v3374, %v3378
  %v3394 = vsel %vm505, %v3376, %v3380
  %v3395 = vsel %vm505, %v3370, %v3374
  %v3396 = vsel %vm505, %v3372, %v3376
  %v3397 = vsel %vm505, %v3366, %v3370
  %v3398 = vsel %vm505, %v3368, %v3372
  %v3399 = vsel %vm505, %v3386, %v3366
  %v3400 = vsel %vm505, %v3388, %v3368
  %3401 = vst [vmem:[#allocation2 + $0x3c0] sm:$0xff] %v3397
  %3402 = vst [vmem:[#allocation2 + $0x3c8] sm:$0xff] %v3395
  %3403 = vst [vmem:[#allocation2 + $0x3d0] sm:$0xff] %v3393
  %3404 = vst [vmem:[#allocation2 + $0x3d8] sm:$0xff] %v3391
  %3405 = vst [vmem:[#allocation2 + $0x3e0] sm:$0xff] %v3389
  %3406 = vst [vmem:[#allocation2 + $0x3e8] sm:$0xff] %v3399
  %3407 = vst [vmem:[#allocation2 + $0x420] sm:$0xff] %v3398
  %3408 = vst [vmem:[#allocation2 + $0x428] sm:$0xff] %v3396
  %3409 = vst [vmem:[#allocation2 + $0x430] sm:$0xff] %v3394
  %3410 = vst [vmem:[#allocation2 + $0x438] sm:$0xff] %v3392
  %3411 = vst [vmem:[#allocation2 + $0x440] sm:$0xff] %v3390
  %3412 = vst [vmem:[#allocation2 + $0x448] sm:$0xff] %v3400
  %3413 = vrot.lane.b32.xlu0 %v3149, 111
  %v3414 = vpop.permute.xlu0 %3413
  %3415 = vrot.lane.b32.xlu0 %v3155, 111
  %v3416 = vpop.permute.xlu0 %3415
  %3417 = vrot.lane.b32.xlu0 %v3150, 111
  %v3418 = vpop.permute.xlu0 %3417
  %3419 = vrot.lane.b32.xlu0 %v3156, 111
  %v3420 = vpop.permute.xlu0 %3419
  %3421 = vrot.lane.b32.xlu0 %v3151, 111
  %v3422 = vpop.permute.xlu0 %3421
  %3423 = vrot.lane.b32.xlu0 %v3157, 111
  %v3424 = vpop.permute.xlu0 %3423
  %3425 = vrot.lane.b32.xlu0 %v3152, 111
  %v3426 = vpop.permute.xlu0 %3425
  %3427 = vrot.lane.b32.xlu0 %v3158, 111
  %v3428 = vpop.permute.xlu0 %3427
  %3429 = vrot.lane.b32.xlu0 %v3153, 111
  %v3430 = vpop.permute.xlu0 %3429
  %3431 = vrot.lane.b32.xlu0 %v3159, 111
  %v3432 = vpop.permute.xlu0 %3431
  %3433 = vrot.lane.b32.xlu0 %v3154, 111
  %v3434 = vpop.permute.xlu0 %3433
  %3435 = vrot.lane.b32.xlu0 %v3160, 111
  %v3436 = vpop.permute.xlu0 %3435
  %v3437 = vsel %vm602, %v3430, %v3434
  %v3438 = vsel %vm602, %v3432, %v3436
  %v3439 = vsel %vm602, %v3426, %v3430
  %v3440 = vsel %vm602, %v3428, %v3432
  %v3441 = vsel %vm602, %v3422, %v3426
  %v3442 = vsel %vm602, %v3424, %v3428
  %v3443 = vsel %vm602, %v3418, %v3422
  %v3444 = vsel %vm602, %v3420, %v3424
  %v3445 = vsel %vm602, %v3414, %v3418
  %v3446 = vsel %vm602, %v3416, %v3420
  %v3447 = vsel %vm602, %v3434, %v3414
  %v3448 = vsel %vm602, %v3436, %v3416
  %3449 = vst [vmem:[#allocation2 + $0x480] sm:$0xff] %v3445
  %3450 = vst [vmem:[#allocation2 + $0x488] sm:$0xff] %v3443
  %3451 = vst [vmem:[#allocation2 + $0x490] sm:$0xff] %v3441
  %3452 = vst [vmem:[#allocation2 + $0x498] sm:$0xff] %v3439
  %3453 = vst [vmem:[#allocation2 + $0x4a0] sm:$0xff] %v3437
  %3454 = vst [vmem:[#allocation2 + $0x4a8] sm:$0xff] %v3447
  %3455 = vst [vmem:[#allocation2 + $0x4e0] sm:$0xff] %v3446
  %3456 = vst [vmem:[#allocation2 + $0x4e8] sm:$0xff] %v3444
  %3457 = vst [vmem:[#allocation2 + $0x4f0] sm:$0xff] %v3442
  %3458 = vst [vmem:[#allocation2 + $0x4f8] sm:$0xff] %v3440
  %3459 = vst [vmem:[#allocation2 + $0x500] sm:$0xff] %v3438
  %3460 = vst [vmem:[#allocation2 + $0x508] sm:$0xff] %v3448
  %3461 = vrot.lane.b32.xlu0 %v3149, 110
  %v3462 = vpop.permute.xlu0 %3461
  %3463 = vrot.lane.b32.xlu0 %v3155, 110
  %v3464 = vpop.permute.xlu0 %3463
  %3465 = vrot.lane.b32.xlu0 %v3150, 110
  %v3466 = vpop.permute.xlu0 %3465
  %3467 = vrot.lane.b32.xlu0 %v3156, 110
  %v3468 = vpop.permute.xlu0 %3467
  %3469 = vrot.lane.b32.xlu0 %v3151, 110
  %v3470 = vpop.permute.xlu0 %3469
  %3471 = vrot.lane.b32.xlu0 %v3157, 110
  %v3472 = vpop.permute.xlu0 %3471
  %3473 = vrot.lane.b32.xlu0 %v3152, 110
  %v3474 = vpop.permute.xlu0 %3473
  %3475 = vrot.lane.b32.xlu0 %v3158, 110
  %v3476 = vpop.permute.xlu0 %3475
  %3477 = vrot.lane.b32.xlu0 %v3153, 110
  %v3478 = vpop.permute.xlu0 %3477
  %3479 = vrot.lane.b32.xlu0 %v3159, 110
  %v3480 = vpop.permute.xlu0 %3479
  %3481 = vrot.lane.b32.xlu0 %v3154, 110
  %v3482 = vpop.permute.xlu0 %3481
  %3483 = vrot.lane.b32.xlu0 %v3160, 110
  %v3484 = vpop.permute.xlu0 %3483
  %v3485 = vsel %vm699, %v3478, %v3482
  %v3486 = vsel %vm699, %v3480, %v3484
  %v3487 = vsel %vm699, %v3474, %v3478
  %v3488 = vsel %vm699, %v3476, %v3480
  %v3489 = vsel %vm699, %v3470, %v3474
  %v3490 = vsel %vm699, %v3472, %v3476
  %v3491 = vsel %vm699, %v3466, %v3470
  %v3492 = vsel %vm699, %v3468, %v3472
  %v3493 = vsel %vm699, %v3462, %v3466
  %v3494 = vsel %vm699, %v3464, %v3468
  %v3495 = vsel %vm699, %v3482, %v3462
  %v3496 = vsel %vm699, %v3484, %v3464
  %3497 = vst [vmem:[#allocation2 + $0x540] sm:$0xff] %v3493
  %3498 = vst [vmem:[#allocation2 + $0x548] sm:$0xff] %v3491
  %3499 = vst [vmem:[#allocation2 + $0x550] sm:$0xff] %v3489
  %3500 = vst [vmem:[#allocation2 + $0x558] sm:$0xff] %v3487
  %3501 = vst [vmem:[#allocation2 + $0x560] sm:$0xff] %v3485
  %3502 = vst [vmem:[#allocation2 + $0x568] sm:$0xff] %v3495
  %3503 = vst [vmem:[#allocation2 + $0x5a0] sm:$0xff] %v3494
  %3504 = vst [vmem:[#allocation2 + $0x5a8] sm:$0xff] %v3492
  %3505 = vst [vmem:[#allocation2 + $0x5b0] sm:$0xff] %v3490
  %3506 = vst [vmem:[#allocation2 + $0x5b8] sm:$0xff] %v3488
  %3507 = vst [vmem:[#allocation2 + $0x5c0] sm:$0xff] %v3486
  %3508 = vst [vmem:[#allocation2 + $0x5c8] sm:$0xff] %v3496
  %3509 = vrot.lane.b32.xlu0 %v3149, 109
  %v3510 = vpop.permute.xlu0 %3509
  %3511 = vrot.lane.b32.xlu0 %v3155, 109
  %v3512 = vpop.permute.xlu0 %3511
  %3513 = vrot.lane.b32.xlu0 %v3150, 109
  %v3514 = vpop.permute.xlu0 %3513
  %3515 = vrot.lane.b32.xlu0 %v3156, 109
  %v3516 = vpop.permute.xlu0 %3515
  %3517 = vrot.lane.b32.xlu0 %v3151, 109
  %v3518 = vpop.permute.xlu0 %3517
  %3519 = vrot.lane.b32.xlu0 %v3157, 109
  %v3520 = vpop.permute.xlu0 %3519
  %3521 = vrot.lane.b32.xlu0 %v3152, 109
  %v3522 = vpop.permute.xlu0 %3521
  %3523 = vrot.lane.b32.xlu0 %v3158, 109
  %v3524 = vpop.permute.xlu0 %3523
  %3525 = vrot.lane.b32.xlu0 %v3153, 109
  %v3526 = vpop.permute.xlu0 %3525
  %3527 = vrot.lane.b32.xlu0 %v3159, 109
  %v3528 = vpop.permute.xlu0 %3527
  %3529 = vrot.lane.b32.xlu0 %v3154, 109
  %v3530 = vpop.permute.xlu0 %3529
  %3531 = vrot.lane.b32.xlu0 %v3160, 109
  %v3532 = vpop.permute.xlu0 %3531
  %v3533 = vsel %vm796, %v3526, %v3530
  %v3534 = vsel %vm796, %v3528, %v3532
  %v3535 = vsel %vm796, %v3522, %v3526
  %v3536 = vsel %vm796, %v3524, %v3528
  %v3537 = vsel %vm796, %v3518, %v3522
  %v3538 = vsel %vm796, %v3520, %v3524
  %v3539 = vsel %vm796, %v3514, %v3518
  %v3540 = vsel %vm796, %v3516, %v3520
  %v3541 = vsel %vm796, %v3510, %v3514
  %v3542 = vsel %vm796, %v3512, %v3516
  %v3543 = vsel %vm796, %v3530, %v3510
  %v3544 = vsel %vm796, %v3532, %v3512
  %3545 = vst [vmem:[#allocation2 + $0x600] sm:$0xff] %v3541
  %3546 = vst [vmem:[#allocation2 + $0x608] sm:$0xff] %v3539
  %3547 = vst [vmem:[#allocation2 + $0x610] sm:$0xff] %v3537
  %3548 = vst [vmem:[#allocation2 + $0x618] sm:$0xff] %v3535
  %3549 = vst [vmem:[#allocation2 + $0x620] sm:$0xff] %v3533
  %3550 = vst [vmem:[#allocation2 + $0x628] sm:$0xff] %v3543
  %3551 = vst [vmem:[#allocation2 + $0x660] sm:$0xff] %v3542
  %3552 = vst [vmem:[#allocation2 + $0x668] sm:$0xff] %v3540
  %3553 = vst [vmem:[#allocation2 + $0x670] sm:$0xff] %v3538
  %3554 = vst [vmem:[#allocation2 + $0x678] sm:$0xff] %v3536
  %3555 = vst [vmem:[#allocation2 + $0x680] sm:$0xff] %v3534
  %3556 = vst [vmem:[#allocation2 + $0x688] sm:$0xff] %v3544
  %s3557 = scalar_lea.vmem %s2, 64
  %v3558 = vld [vmem:[%s3557] sm:$0xff]
  %v3559 = vld [vmem:[%s3557 + $0x8] sm:$0xff]
  %v3560 = vld [vmem:[%s3557 + $0x10] sm:$0xff]
  %v3561 = vld [vmem:[%s3557 + $0x18] sm:$0xff]
  %v3562 = vld [vmem:[#allocation2] sm:$0xff]
  %v3563 = vld [vmem:[#allocation2 + $0x8] sm:$0xff]
  %v3564 = vld [vmem:[#allocation2 + $0x10] sm:$0xff]
  %v3565 = vld [vmem:[#allocation2 + $0x18] sm:$0xff]
  %v3566 = vld [vmem:[#allocation2 + $0x20] sm:$0xff]
  %v3567 = vld [vmem:[#allocation2 + $0x28] sm:$0xff]
  %v3568 = vld [vmem:[#allocation2 + $0x60] sm:$0xff]
  %v3569 = vld [vmem:[#allocation2 + $0x68] sm:$0xff]
  %v3570 = vld [vmem:[#allocation2 + $0x70] sm:$0xff]
  %v3571 = vld [vmem:[#allocation2 + $0x78] sm:$0xff]
  %v3572 = vld [vmem:[#allocation2 + $0x80] sm:$0xff]
  %v3573 = vld [vmem:[#allocation2 + $0x88] sm:$0xff]
  %v3574 = vld [vmem:[#allocation2 + $0xc0] sm:$0xff]
  %v3575 = vld [vmem:[#allocation2 + $0xc8] sm:$0xff]
  %v3576 = vld [vmem:[#allocation2 + $0xd0] sm:$0xff]
  %v3577 = vld [vmem:[#allocation2 + $0xd8] sm:$0xff]
  %v3578 = vld [vmem:[#allocation2 + $0xe0] sm:$0xff]
  %v3579 = vld [vmem:[#allocation2 + $0xe8] sm:$0xff]
  %v3580 = vld [vmem:[#allocation2 + $0x120] sm:$0xff]
  %v3581 = vld [vmem:[#allocation2 + $0x128] sm:$0xff]
  %v3582 = vld [vmem:[#allocation2 + $0x130] sm:$0xff]
  %v3583 = vld [vmem:[#allocation2 + $0x138] sm:$0xff]
  %v3584 = vld [vmem:[#allocation2 + $0x140] sm:$0xff]
  %v3585 = vld [vmem:[#allocation2 + $0x148] sm:$0xff]
  %v3586 = vld [vmem:[#allocation2 + $0x180] sm:$0xff]
  %v3587 = vld [vmem:[#allocation2 + $0x188] sm:$0xff]
  %v3588 = vld [vmem:[#allocation2 + $0x190] sm:$0xff]
  %v3589 = vld [vmem:[#allocation2 + $0x198] sm:$0xff]
  %v3590 = vld [vmem:[#allocation2 + $0x1a0] sm:$0xff]
  %v3591 = vld [vmem:[#allocation2 + $0x1a8] sm:$0xff]
  %v3592 = vld [vmem:[#allocation2 + $0x1e0] sm:$0xff]
  %v3593 = vld [vmem:[#allocation2 + $0x1e8] sm:$0xff]
  %v3594 = vld [vmem:[#allocation2 + $0x1f0] sm:$0xff]
  %v3595 = vld [vmem:[#allocation2 + $0x1f8] sm:$0xff]
  %v3596 = vld [vmem:[#allocation2 + $0x200] sm:$0xff]
  %v3597 = vld [vmem:[#allocation2 + $0x208] sm:$0xff]
  %v3598 = vld [vmem:[#allocation2 + $0x240] sm:$0xff]
  %v3599 = vld [vmem:[#allocation2 + $0x248] sm:$0xff]
  %v3600 = vld [vmem:[#allocation2 + $0x250] sm:$0xff]
  %v3601 = vld [vmem:[#allocation2 + $0x258] sm:$0xff]
  %v3602 = vld [vmem:[#allocation2 + $0x260] sm:$0xff]
  %v3603 = vld [vmem:[#allocation2 + $0x268] sm:$0xff]
  %v3604 = vld [vmem:[#allocation2 + $0x2a0] sm:$0xff]
  %v3605 = vld [vmem:[#allocation2 + $0x2a8] sm:$0xff]
  %v3606 = vld [vmem:[#allocation2 + $0x2b0] sm:$0xff]
  %v3607 = vld [vmem:[#allocation2 + $0x2b8] sm:$0xff]
  %v3608 = vld [vmem:[#allocation2 + $0x2c0] sm:$0xff]
  %v3609 = vld [vmem:[#allocation2 + $0x2c8] sm:$0xff]
  %v3610 = vld [vmem:[#allocation2 + $0x300] sm:$0xff]
  %v3611 = vld [vmem:[#allocation2 + $0x308] sm:$0xff]
  %v3612 = vld [vmem:[#allocation2 + $0x310] sm:$0xff]
  %v3613 = vld [vmem:[#allocation2 + $0x318] sm:$0xff]
  %v3614 = vld [vmem:[#allocation2 + $0x320] sm:$0xff]
  %v3615 = vld [vmem:[#allocation2 + $0x328] sm:$0xff]
  %v3616 = vld [vmem:[#allocation2 + $0x360] sm:$0xff]
  %v3617 = vld [vmem:[#allocation2 + $0x368] sm:$0xff]
  %v3618 = vld [vmem:[#allocation2 + $0x370] sm:$0xff]
  %v3619 = vld [vmem:[#allocation2 + $0x378] sm:$0xff]
  %v3620 = vld [vmem:[#allocation2 + $0x380] sm:$0xff]
  %v3621 = vld [vmem:[#allocation2 + $0x388] sm:$0xff]
  %v3622 = vld [vmem:[#allocation2 + $0x3c0] sm:$0xff]
  %v3623 = vld [vmem:[#allocation2 + $0x3c8] sm:$0xff]
  %v3624 = vld [vmem:[#allocation2 + $0x3d0] sm:$0xff]
  %v3625 = vld [vmem:[#allocation2 + $0x3d8] sm:$0xff]
  %v3626 = vld [vmem:[#allocation2 + $0x3e0] sm:$0xff]
  %v3627 = vld [vmem:[#allocation2 + $0x3e8] sm:$0xff]
  %v3628 = vld [vmem:[#allocation2 + $0x420] sm:$0xff]
  %v3629 = vld [vmem:[#allocation2 + $0x428] sm:$0xff]
  %v3630 = vld [vmem:[#allocation2 + $0x430] sm:$0xff]
  %v3631 = vld [vmem:[#allocation2 + $0x438] sm:$0xff]
  %v3632 = vld [vmem:[#allocation2 + $0x440] sm:$0xff]
  %v3633 = vld [vmem:[#allocation2 + $0x448] sm:$0xff]
  %v3634 = vld [vmem:[#allocation2 + $0x480] sm:$0xff]
  %v3635 = vld [vmem:[#allocation2 + $0x488] sm:$0xff]
  %v3636 = vld [vmem:[#allocation2 + $0x490] sm:$0xff]
  %v3637 = vld [vmem:[#allocation2 + $0x498] sm:$0xff]
  %v3638 = vld [vmem:[#allocation2 + $0x4a0] sm:$0xff]
  %v3639 = vld [vmem:[#allocation2 + $0x4a8] sm:$0xff]
  %v3640 = vld [vmem:[#allocation2 + $0x4e0] sm:$0xff]
  %v3641 = vld [vmem:[#allocation2 + $0x4e8] sm:$0xff]
  %v3642 = vld [vmem:[#allocation2 + $0x4f0] sm:$0xff]
  %v3643 = vld [vmem:[#allocation2 + $0x4f8] sm:$0xff]
  %v3644 = vld [vmem:[#allocation2 + $0x500] sm:$0xff]
  %v3645 = vld [vmem:[#allocation2 + $0x508] sm:$0xff]
  %v3646 = vld [vmem:[#allocation2 + $0x540] sm:$0xff]
  %v3647 = vld [vmem:[#allocation2 + $0x548] sm:$0xff]
  %v3648 = vld [vmem:[#allocation2 + $0x550] sm:$0xff]
  %v3649 = vld [vmem:[#allocation2 + $0x558] sm:$0xff]
  %v3650 = vld [vmem:[#allocation2 + $0x560] sm:$0xff]
  %v3651 = vld [vmem:[#allocation2 + $0x568] sm:$0xff]
  %v3652 = vld [vmem:[#allocation2 + $0x5a0] sm:$0xff]
  %v3653 = vld [vmem:[#allocation2 + $0x5a8] sm:$0xff]
  %v3654 = vld [vmem:[#allocation2 + $0x5b0] sm:$0xff]
  %v3655 = vld [vmem:[#allocation2 + $0x5b8] sm:$0xff]
  %v3656 = vld [vmem:[#allocation2 + $0x5c0] sm:$0xff]
  %v3657 = vld [vmem:[#allocation2 + $0x5c8] sm:$0xff]
  %v3658 = vld [vmem:[#allocation2 + $0x600] sm:$0xff]
  %v3659 = vld [vmem:[#allocation2 + $0x608] sm:$0xff]
  %v3660 = vld [vmem:[#allocation2 + $0x610] sm:$0xff]
  %v3661 = vld [vmem:[#allocation2 + $0x618] sm:$0xff]
  %v3662 = vld [vmem:[#allocation2 + $0x620] sm:$0xff]
  %v3663 = vld [vmem:[#allocation2 + $0x628] sm:$0xff]
  %v3664 = vld [vmem:[#allocation2 + $0x660] sm:$0xff]
  %v3665 = vld [vmem:[#allocation2 + $0x668] sm:$0xff]
  %v3666 = vld [vmem:[#allocation2 + $0x670] sm:$0xff]
  %v3667 = vld [vmem:[#allocation2 + $0x678] sm:$0xff]
  %v3668 = vld [vmem:[#allocation2 + $0x680] sm:$0xff]
  %v3669 = vld [vmem:[#allocation2 + $0x688] sm:$0xff]
  %s3670 = scalar_lea.vmem %s3, 32
  %v3671 = vld [vmem:[%s3670] sm:$0xff]
  %v3672 = vld [vmem:[%s3670 + $0x8] sm:$0xff]
  %3674 = vset.pattern.permute.xlu0 0
  %3675 = vperm.xlu0 %3674, %v3671
  %v3676 = vpop.permute.xlu0 %3675
  %3679 = vset.pattern.permute.xlu0 0
  %3680 = vperm.xlu0 %3679, %v3672
  %v3681 = vpop.permute.xlu0 %3680
  %v3684 = vsel %vm1077, %v3559, 0
  %v3687 = vsel %vm1077, %v3561, 0
  %3689 = vmatprep.subr.mxu0 %v3653
  %3690 = vmatpush1.msra.mxu0 %v3652
  %3691 = vmatprep.subr.mxu0 %v3647
  %3692 = vmatpush1.msra.mxu0 %v3646
  %3693 = vmatprep.subr.mxu0 %v3641
  %3694 = vmatpush1.msra.mxu0 %v3640
  %3695 = vmatprep.subr.mxu0 %v3635
  %3696 = vmatpush1.msra.mxu0 %v3634
  %3697 = vmatprep.subr.mxu0 %v3629
  %3698 = vmatpush1.msra.mxu0 %v3628
  %3699 = vmatprep.subr.mxu0 %v3623
  %3700 = vmatpush1.msra.mxu0 %v3622
  %3701 = vmatprep.subr.mxu0 %v3617
  %3702 = vmatpush1.msra.mxu0 %v3616
  %3703 = vmatprep.subr.mxu0 %v3611
  %3704 = vmatpush1.msra.mxu0 %v3610
  %3705 = vmatprep.subr.mxu0 %v3605
  %3706 = vmatpush1.msra.mxu0 %v3604
  %3707 = vmatprep.subr.mxu0 %v3599
  %3708 = vmatpush1.msra.mxu0 %v3598
  %3709 = vmatprep.subr.mxu0 %v3593
  %3710 = vmatpush1.msra.mxu0 %v3592
  %3711 = vmatprep.subr.mxu0 %v3587
  %3712 = vmatpush1.msra.mxu0 %v3586
  %3713 = vmatprep.subr.mxu0 %v3581
  %3714 = vmatpush1.msra.mxu0 %v3580
  %3715 = vmatprep.subr.mxu0 %v3575
  %3716 = vmatpush1.msra.mxu0 %v3574
  %3717 = vmatprep.subr.mxu0 %v3569
  %3718 = vmatpush1.msra.mxu0 %v3568
  %3719 = vmatprep.subr.mxu0 %v3563
  %3720 = vmatpush1.msra.mxu0 %v3562
  %3721 = vmatprep.subr.mxu0 0.0
  %3722 = vmatpush2.msra.mxu0 0.0
  %3723 = vmatprep.subr.mxu0 0.0
  %3724 = vmatpush2.msra.mxu0 0.0
  %3725 = vmatprep.subr.mxu0 0.0
  %3726 = vmatpush2.msra.mxu0 0.0
  %3727 = vmatprep.subr.mxu0 0.0
  %3728 = vmatpush2.msra.mxu0 0.0
  %3729 = vmatprep.subr.mxu0 0.0
  %3730 = vmatpush2.msra.mxu0 0.0
  %3731 = vmatprep.subr.mxu0 0.0
  %3732 = vmatpush2.msra.mxu0 0.0
  %3733 = vmatprep.subr.mxu0 0.0
  %3734 = vmatpush2.msra.mxu0 0.0
  %3735 = vmatprep.subr.mxu0 0.0
  %3736 = vmatpush2.msra.mxu0 0.0
  %3737 = vmatprep.subr.mxu0 0.0
  %3738 = vmatpush2.msra.mxu0 0.0
  %3739 = vmatprep.subr.mxu0 0.0
  %3740 = vmatpush2.msra.mxu0 0.0
  %3741 = vmatprep.subr.mxu0 0.0
  %3742 = vmatpush2.msra.mxu0 0.0
  %3743 = vmatprep.subr.mxu0 0.0
  %3744 = vmatpush2.msra.mxu0 0.0
  %3745 = vmatprep.subr.mxu0 0.0
  %3746 = vmatpush2.msra.mxu0 0.0
  %3747 = vmatprep.subr.mxu0 0.0
  %3748 = vmatpush2.msra.mxu0 0.0
  %3749 = vmatprep.subr.mxu0 %v3665
  %3750 = vmatpush2.msra.mxu0 %v3664
  %3751 = vmatprep.subr.mxu0 %v3659
  %3752 = vmatpush2.msra.mxu0 %v3658
  %3753 = vmatprep.mubr.f32.mxu0 %v3684
  %3754 = vmatmul.mubr.f32.gmra.mxu0 %v3558
  %v3755 = vpop.f32.mrf.mxu0
  %v3756 = vadd.f32 %v3676, %v3755
  %v3757 = vpop.f32.mrf.mxu0
  %v3758 = vadd.f32 %v3676, %v3757
  %3759 = vmatprep.mubr.f32.mxu0 %v3687
  %3760 = vmatmul.mubr.f32.gmra.mxu0 %v3560
  %v3761 = vpop.f32.mrf.mxu0
  %v3762 = vadd.f32 %v3681, %v3761
  %v3763 = vpop.f32.mrf.mxu0
  %v3764 = vadd.f32 %v3681, %v3763
  %3765 = vdwg.mxu0
  %3766 = vmatprep.subr.mxu0 %v3655
  %3767 = vmatpush1.msra.mxu0 %v3654
  %3768 = vmatprep.subr.mxu0 %v3649
  %3769 = vmatpush1.msra.mxu0 %v3648
  %3770 = vmatprep.subr.mxu0 %v3643
  %3771 = vmatpush1.msra.mxu0 %v3642
  %3772 = vmatprep.subr.mxu0 %v3637
  %3773 = vmatpush1.msra.mxu0 %v3636
  %3774 = vmatprep.subr.mxu0 %v3631
  %3775 = vmatpush1.msra.mxu0 %v3630
  %3776 = vmatprep.subr.mxu0 %v3625
  %3777 = vmatpush1.msra.mxu0 %v3624
  %3778 = vmatprep.subr.mxu0 %v3619
  %3779 = vmatpush1.msra.mxu0 %v3618
  %3780 = vmatprep.subr.mxu0 %v3613
  %3781 = vmatpush1.msra.mxu0 %v3612
  %3782 = vmatprep.subr.mxu0 %v3607
  %3783 = vmatpush1.msra.mxu0 %v3606
  %3784 = vmatprep.subr.mxu0 %v3601
  %3785 = vmatpush1.msra.mxu0 %v3600
  %3786 = vmatprep.subr.mxu0 %v3595
  %3787 = vmatpush1.msra.mxu0 %v3594
  %3788 = vmatprep.subr.mxu0 %v3589
  %3789 = vmatpush1.msra.mxu0 %v3588
  %3790 = vmatprep.subr.mxu0 %v3583
  %3791 = vmatpush1.msra.mxu0 %v3582
  %3792 = vmatprep.subr.mxu0 %v3577
  %3793 = vmatpush1.msra.mxu0 %v3576
  %3794 = vmatprep.subr.mxu0 %v3571
  %3795 = vmatpush1.msra.mxu0 %v3570
  %3796 = vmatprep.subr.mxu0 %v3565
  %3797 = vmatpush1.msra.mxu0 %v3564
  %3798 = vmatprep.subr.mxu0 0.0
  %3799 = vmatpush2.msra.mxu0 0.0
  %3800 = vmatprep.subr.mxu0 0.0
  %3801 = vmatpush2.msra.mxu0 0.0
  %3802 = vmatprep.subr.mxu0 0.0
  %3803 = vmatpush2.msra.mxu0 0.0
  %3804 = vmatprep.subr.mxu0 0.0
  %3805 = vmatpush2.msra.mxu0 0.0
  %3806 = vmatprep.subr.mxu0 0.0
  %3807 = vmatpush2.msra.mxu0 0.0
  %3808 = vmatprep.subr.mxu0 0.0
  %3809 = vmatpush2.msra.mxu0 0.0
  %3810 = vmatprep.subr.mxu0 0.0
  %3811 = vmatpush2.msra.mxu0 0.0
  %3812 = vmatprep.subr.mxu0 0.0
  %3813 = vmatpush2.msra.mxu0 0.0
  %3814 = vmatprep.subr.mxu0 0.0
  %3815 = vmatpush2.msra.mxu0 0.0
  %3816 = vmatprep.subr.mxu0 0.0
  %3817 = vmatpush2.msra.mxu0 0.0
  %3818 = vmatprep.subr.mxu0 0.0
  %3819 = vmatpush2.msra.mxu0 0.0
  %3820 = vmatprep.subr.mxu0 0.0
  %3821 = vmatpush2.msra.mxu0 0.0
  %3822 = vmatprep.subr.mxu0 0.0
  %3823 = vmatpush2.msra.mxu0 0.0
  %3824 = vmatprep.subr.mxu0 0.0
  %3825 = vmatpush2.msra.mxu0 0.0
  %3826 = vmatprep.subr.mxu0 %v3667
  %3827 = vmatpush2.msra.mxu0 %v3666
  %3828 = vmatprep.subr.mxu0 %v3661
  %3829 = vmatpush2.msra.mxu0 %v3660
  %3830 = vmatprep.mubr.f32.mxu0 %v3684
  %3831 = vmatmul.mubr.f32.gmra.mxu0 %v3558
  %v3832 = vpop.f32.mrf.mxu0
  %v3833 = vadd.f32 %v3676, %v3832
  %v3834 = vpop.f32.mrf.mxu0
  %v3835 = vadd.f32 %v3676, %v3834
  %3836 = vmatprep.mubr.f32.mxu0 %v3687
  %3837 = vmatmul.mubr.f32.gmra.mxu0 %v3560
  %v3838 = vpop.f32.mrf.mxu0
  %v3839 = vadd.f32 %v3681, %v3838
  %v3840 = vpop.f32.mrf.mxu0
  %v3841 = vadd.f32 %v3681, %v3840
  %3842 = vdwg.mxu0
  %3843 = vmatprep.subr.mxu0 %v3657
  %3844 = vmatpush1.msra.mxu0 %v3656
  %3845 = vmatprep.subr.mxu0 %v3651
  %3846 = vmatpush1.msra.mxu0 %v3650
  %3847 = vmatprep.subr.mxu0 %v3645
  %3848 = vmatpush1.msra.mxu0 %v3644
  %3849 = vmatprep.subr.mxu0 %v3639
  %3850 = vmatpush1.msra.mxu0 %v3638
  %3851 = vmatprep.subr.mxu0 %v3633
  %3852 = vmatpush1.msra.mxu0 %v3632
  %3853 = vmatprep.subr.mxu0 %v3627
  %3854 = vmatpush1.msra.mxu0 %v3626
  %3855 = vmatprep.subr.mxu0 %v3621
  %3856 = vmatpush1.msra.mxu0 %v3620
  %3857 = vmatprep.subr.mxu0 %v3615
  %3858 = vmatpush1.msra.mxu0 %v3614
  %3859 = vmatprep.subr.mxu0 %v3609
  %3860 = vmatpush1.msra.mxu0 %v3608
  %3861 = vmatprep.subr.mxu0 %v3603
  %3862 = vmatpush1.msra.mxu0 %v3602
  %3863 = vmatprep.subr.mxu0 %v3597
  %3864 = vmatpush1.msra.mxu0 %v3596
  %3865 = vmatprep.subr.mxu0 %v3591
  %3866 = vmatpush1.msra.mxu0 %v3590
  %3867 = vmatprep.subr.mxu0 %v3585
  %3868 = vmatpush1.msra.mxu0 %v3584
  %3869 = vmatprep.subr.mxu0 %v3579
  %3870 = vmatpush1.msra.mxu0 %v3578
  %3871 = vmatprep.subr.mxu0 %v3573
  %3872 = vmatpush1.msra.mxu0 %v3572
  %3873 = vmatprep.subr.mxu0 %v3567
  %3874 = vmatpush1.msra.mxu0 %v3566
  %3875 = vmatprep.subr.mxu0 0.0
  %3876 = vmatpush2.msra.mxu0 0.0
  %3877 = vmatprep.subr.mxu0 0.0
  %3878 = vmatpush2.msra.mxu0 0.0
  %3879 = vmatprep.subr.mxu0 0.0
  %3880 = vmatpush2.msra.mxu0 0.0
  %3881 = vmatprep.subr.mxu0 0.0
  %3882 = vmatpush2.msra.mxu0 0.0
  %3883 = vmatprep.subr.mxu0 0.0
  %3884 = vmatpush2.msra.mxu0 0.0
  %3885 = vmatprep.subr.mxu0 0.0
  %3886 = vmatpush2.msra.mxu0 0.0
  %3887 = vmatprep.subr.mxu0 0.0
  %3888 = vmatpush2.msra.mxu0 0.0
  %3889 = vmatprep.subr.mxu0 0.0
  %3890 = vmatpush2.msra.mxu0 0.0
  %3891 = vmatprep.subr.mxu0 0.0
  %3892 = vmatpush2.msra.mxu0 0.0
  %3893 = vmatprep.subr.mxu0 0.0
  %3894 = vmatpush2.msra.mxu0 0.0
  %3895 = vmatprep.subr.mxu0 0.0
  %3896 = vmatpush2.msra.mxu0 0.0
  %3897 = vmatprep.subr.mxu0 0.0
  %3898 = vmatpush2.msra.mxu0 0.0
  %3899 = vmatprep.subr.mxu0 0.0
  %3900 = vmatpush2.msra.mxu0 0.0
  %3901 = vmatprep.subr.mxu0 0.0
  %3902 = vmatpush2.msra.mxu0 0.0
  %3903 = vmatprep.subr.mxu0 %v3669
  %3904 = vmatpush2.msra.mxu0 %v3668
  %3905 = vmatprep.subr.mxu0 %v3663
  %3906 = vmatpush2.msra.mxu0 %v3662
  %3907 = vmatprep.mubr.f32.mxu0 %v3684
  %3908 = vmatmul.mubr.f32.gmra.mxu0 %v3558
  %v3909 = vpop.f32.mrf.mxu0
  %v3910 = vadd.f32 %v3676, %v3909
  %v3911 = vpop.f32.mrf.mxu0
  %v3912 = vadd.f32 %v3676, %v3911
  %3913 = vmatprep.mubr.f32.mxu0 %v3687
  %3914 = vmatmul.mubr.f32.gmra.mxu0 %v3560
  %v3915 = vpop.f32.mrf.mxu0
  %v3916 = vadd.f32 %v3681, %v3915
  %v3917 = vpop.f32.mrf.mxu0
  %v3918 = vadd.f32 %v3681, %v3917
  %3919 = vdwg.mxu0
  %v3920 = vmax.f32 %v3756, 0.0
  %v3921 = vmax.f32 %v3758, 0.0
  %v3922 = vmax.f32 %v3833, 0.0
  %v3923 = vmax.f32 %v3835, 0.0
  %v3924 = vmax.f32 %v3910, 0.0
  %v3925 = vmax.f32 %v3912, 0.0
  %v3926 = vmax.f32 %v3762, 0.0
  %v3927 = vmax.f32 %v3764, 0.0
  %v3928 = vmax.f32 %v3839, 0.0
  %v3929 = vmax.f32 %v3841, 0.0
  %v3930 = vmax.f32 %v3916, 0.0
  %v3931 = vmax.f32 %v3918, 0.0
  %v3932 = vmul.f32 %v3920, %v1575
  %v3933 = vmul.f32 %v3921, %v1579
  %v3934 = vmul.f32 %v3922, %v1583
  %v3935 = vmul.f32 %v3923, %v1587
  %v3936 = vmul.f32 %v3924, %v1591
  %v3937 = vmul.f32 %v3925, %v1595
  %v3938 = vmul.f32 %v3926, %v1575
  %v3939 = vmul.f32 %v3927, %v1579
  %v3940 = vmul.f32 %v3928, %v1583
  %v3941 = vmul.f32 %v3929, %v1587
  %v3942 = vmul.f32 %v3930, %v1591
  %v3943 = vmul.f32 %v3931, %v1595
  %3944 = vrot.lane.b32.xlu0 %v3932, 19
  %v3945 = vpop.permute.xlu0 %3944
  %3946 = vrot.lane.b32.xlu0 %v3938, 19
  %v3947 = vpop.permute.xlu0 %3946
  %3948 = vrot.lane.b32.xlu0 %v3933, 19
  %v3949 = vpop.permute.xlu0 %3948
  %3950 = vrot.lane.b32.xlu0 %v3939, 19
  %v3951 = vpop.permute.xlu0 %3950
  %3952 = vrot.lane.b32.xlu0 %v3934, 19
  %v3953 = vpop.permute.xlu0 %3952
  %3954 = vrot.lane.b32.xlu0 %v3940, 19
  %v3955 = vpop.permute.xlu0 %3954
  %3956 = vrot.lane.b32.xlu0 %v3935, 19
  %v3957 = vpop.permute.xlu0 %3956
  %3958 = vrot.lane.b32.xlu0 %v3941, 19
  %v3959 = vpop.permute.xlu0 %3958
  %3960 = vrot.lane.b32.xlu0 %v3936, 19
  %v3961 = vpop.permute.xlu0 %3960
  %3962 = vrot.lane.b32.xlu0 %v3942, 19
  %v3963 = vpop.permute.xlu0 %3962
  %3964 = vrot.lane.b32.xlu0 %v3937, 19
  %v3965 = vpop.permute.xlu0 %3964
  %3966 = vrot.lane.b32.xlu0 %v3943, 19
  %v3967 = vpop.permute.xlu0 %3966
  %v3968 = vsel %vm93, %v3961, %v3965
  %v3969 = vsel %vm93, %v3963, %v3967
  %v3970 = vsel %vm93, %v3957, %v3961
  %v3971 = vsel %vm93, %v3959, %v3963
  %v3972 = vsel %vm93, %v3953, %v3957
  %v3973 = vsel %vm93, %v3955, %v3959
  %v3974 = vsel %vm93, %v3949, %v3953
  %v3975 = vsel %vm93, %v3951, %v3955
  %v3976 = vsel %vm93, %v3945, %v3949
  %v3977 = vsel %vm93, %v3947, %v3951
  %v3978 = vsel %vm93, %v3965, %v3945
  %v3979 = vsel %vm93, %v3967, %v3947
  %3980 = vst [vmem:[#allocation2] sm:$0xff] %v3978
  %3981 = vst [vmem:[#allocation2 + $0x8] sm:$0xff] %v3976
  %3982 = vst [vmem:[#allocation2 + $0x10] sm:$0xff] %v3974
  %3983 = vst [vmem:[#allocation2 + $0x18] sm:$0xff] %v3972
  %3984 = vst [vmem:[#allocation2 + $0x20] sm:$0xff] %v3970
  %3985 = vst [vmem:[#allocation2 + $0x28] sm:$0xff] %v3968
  %3986 = vst [vmem:[#allocation2 + $0x60] sm:$0xff] %v3979
  %3987 = vst [vmem:[#allocation2 + $0x68] sm:$0xff] %v3977
  %3988 = vst [vmem:[#allocation2 + $0x70] sm:$0xff] %v3975
  %3989 = vst [vmem:[#allocation2 + $0x78] sm:$0xff] %v3973
  %3990 = vst [vmem:[#allocation2 + $0x80] sm:$0xff] %v3971
  %3991 = vst [vmem:[#allocation2 + $0x88] sm:$0xff] %v3969
  %3992 = vrot.lane.b32.xlu0 %v3932, 18
  %v3993 = vpop.permute.xlu0 %3992
  %3994 = vrot.lane.b32.xlu0 %v3938, 18
  %v3995 = vpop.permute.xlu0 %3994
  %3996 = vrot.lane.b32.xlu0 %v3933, 18
  %v3997 = vpop.permute.xlu0 %3996
  %3998 = vrot.lane.b32.xlu0 %v3939, 18
  %v3999 = vpop.permute.xlu0 %3998
  %4000 = vrot.lane.b32.xlu0 %v3934, 18
  %v4001 = vpop.permute.xlu0 %4000
  %4002 = vrot.lane.b32.xlu0 %v3940, 18
  %v4003 = vpop.permute.xlu0 %4002
  %4004 = vrot.lane.b32.xlu0 %v3935, 18
  %v4005 = vpop.permute.xlu0 %4004
  %4006 = vrot.lane.b32.xlu0 %v3941, 18
  %v4007 = vpop.permute.xlu0 %4006
  %4008 = vrot.lane.b32.xlu0 %v3936, 18
  %v4009 = vpop.permute.xlu0 %4008
  %4010 = vrot.lane.b32.xlu0 %v3942, 18
  %v4011 = vpop.permute.xlu0 %4010
  %4012 = vrot.lane.b32.xlu0 %v3937, 18
  %v4013 = vpop.permute.xlu0 %4012
  %4014 = vrot.lane.b32.xlu0 %v3943, 18
  %v4015 = vpop.permute.xlu0 %4014
  %v4016 = vsel %vm190, %v4009, %v4013
  %v4017 = vsel %vm190, %v4011, %v4015
  %v4018 = vsel %vm190, %v4005, %v4009
  %v4019 = vsel %vm190, %v4007, %v4011
  %v4020 = vsel %vm190, %v4001, %v4005
  %v4021 = vsel %vm190, %v4003, %v4007
  %v4022 = vsel %vm190, %v3997, %v4001
  %v4023 = vsel %vm190, %v3999, %v4003
  %v4024 = vsel %vm190, %v3993, %v3997
  %v4025 = vsel %vm190, %v3995, %v3999
  %v4026 = vsel %vm190, %v4013, %v3993
  %v4027 = vsel %vm190, %v4015, %v3995
  %4028 = vst [vmem:[#allocation2 + $0xc0] sm:$0xff] %v4026
  %4029 = vst [vmem:[#allocation2 + $0xc8] sm:$0xff] %v4024
  %4030 = vst [vmem:[#allocation2 + $0xd0] sm:$0xff] %v4022
  %4031 = vst [vmem:[#allocation2 + $0xd8] sm:$0xff] %v4020
  %4032 = vst [vmem:[#allocation2 + $0xe0] sm:$0xff] %v4018
  %4033 = vst [vmem:[#allocation2 + $0xe8] sm:$0xff] %v4016
  %4034 = vst [vmem:[#allocation2 + $0x120] sm:$0xff] %v4027
  %4035 = vst [vmem:[#allocation2 + $0x128] sm:$0xff] %v4025
  %4036 = vst [vmem:[#allocation2 + $0x130] sm:$0xff] %v4023
  %4037 = vst [vmem:[#allocation2 + $0x138] sm:$0xff] %v4021
  %4038 = vst [vmem:[#allocation2 + $0x140] sm:$0xff] %v4019
  %4039 = vst [vmem:[#allocation2 + $0x148] sm:$0xff] %v4017
  %4040 = vrot.lane.b32.xlu0 %v3932, 17
  %v4041 = vpop.permute.xlu0 %4040
  %4042 = vrot.lane.b32.xlu0 %v3938, 17
  %v4043 = vpop.permute.xlu0 %4042
  %4044 = vrot.lane.b32.xlu0 %v3933, 17
  %v4045 = vpop.permute.xlu0 %4044
  %4046 = vrot.lane.b32.xlu0 %v3939, 17
  %v4047 = vpop.permute.xlu0 %4046
  %4048 = vrot.lane.b32.xlu0 %v3934, 17
  %v4049 = vpop.permute.xlu0 %4048
  %4050 = vrot.lane.b32.xlu0 %v3940, 17
  %v4051 = vpop.permute.xlu0 %4050
  %4052 = vrot.lane.b32.xlu0 %v3935, 17
  %v4053 = vpop.permute.xlu0 %4052
  %4054 = vrot.lane.b32.xlu0 %v3941, 17
  %v4055 = vpop.permute.xlu0 %4054
  %4056 = vrot.lane.b32.xlu0 %v3936, 17
  %v4057 = vpop.permute.xlu0 %4056
  %4058 = vrot.lane.b32.xlu0 %v3942, 17
  %v4059 = vpop.permute.xlu0 %4058
  %4060 = vrot.lane.b32.xlu0 %v3937, 17
  %v4061 = vpop.permute.xlu0 %4060
  %4062 = vrot.lane.b32.xlu0 %v3943, 17
  %v4063 = vpop.permute.xlu0 %4062
  %v4064 = vsel %vm287, %v4057, %v4061
  %v4065 = vsel %vm287, %v4059, %v4063
  %v4066 = vsel %vm287, %v4053, %v4057
  %v4067 = vsel %vm287, %v4055, %v4059
  %v4068 = vsel %vm287, %v4049, %v4053
  %v4069 = vsel %vm287, %v4051, %v4055
  %v4070 = vsel %vm287, %v4045, %v4049
  %v4071 = vsel %vm287, %v4047, %v4051
  %v4072 = vsel %vm287, %v4041, %v4045
  %v4073 = vsel %vm287, %v4043, %v4047
  %v4074 = vsel %vm287, %v4061, %v4041
  %v4075 = vsel %vm287, %v4063, %v4043
  %4076 = vst [vmem:[#allocation2 + $0x180] sm:$0xff] %v4074
  %4077 = vst [vmem:[#allocation2 + $0x188] sm:$0xff] %v4072
  %4078 = vst [vmem:[#allocation2 + $0x190] sm:$0xff] %v4070
  %4079 = vst [vmem:[#allocation2 + $0x198] sm:$0xff] %v4068
  %4080 = vst [vmem:[#allocation2 + $0x1a0] sm:$0xff] %v4066
  %4081 = vst [vmem:[#allocation2 + $0x1a8] sm:$0xff] %v4064
  %4082 = vst [vmem:[#allocation2 + $0x1e0] sm:$0xff] %v4075
  %4083 = vst [vmem:[#allocation2 + $0x1e8] sm:$0xff] %v4073
  %4084 = vst [vmem:[#allocation2 + $0x1f0] sm:$0xff] %v4071
  %4085 = vst [vmem:[#allocation2 + $0x1f8] sm:$0xff] %v4069
  %4086 = vst [vmem:[#allocation2 + $0x200] sm:$0xff] %v4067
  %4087 = vst [vmem:[#allocation2 + $0x208] sm:$0xff] %v4065
  %4088 = vrot.lane.b32.xlu0 %v3932, 1
  %v4089 = vpop.permute.xlu0 %4088
  %4090 = vrot.lane.b32.xlu0 %v3938, 1
  %v4091 = vpop.permute.xlu0 %4090
  %4092 = vrot.lane.b32.xlu0 %v3933, 1
  %v4093 = vpop.permute.xlu0 %4092
  %4094 = vrot.lane.b32.xlu0 %v3939, 1
  %v4095 = vpop.permute.xlu0 %4094
  %4096 = vrot.lane.b32.xlu0 %v3934, 1
  %v4097 = vpop.permute.xlu0 %4096
  %4098 = vrot.lane.b32.xlu0 %v3940, 1
  %v4099 = vpop.permute.xlu0 %4098
  %4100 = vrot.lane.b32.xlu0 %v3935, 1
  %v4101 = vpop.permute.xlu0 %4100
  %4102 = vrot.lane.b32.xlu0 %v3941, 1
  %v4103 = vpop.permute.xlu0 %4102
  %4104 = vrot.lane.b32.xlu0 %v3936, 1
  %v4105 = vpop.permute.xlu0 %4104
  %4106 = vrot.lane.b32.xlu0 %v3942, 1
  %v4107 = vpop.permute.xlu0 %4106
  %4108 = vrot.lane.b32.xlu0 %v3937, 1
  %v4109 = vpop.permute.xlu0 %4108
  %4110 = vrot.lane.b32.xlu0 %v3943, 1
  %v4111 = vpop.permute.xlu0 %4110
  %v4112 = vsel %vm384, %v4105, %v4109
  %v4113 = vsel %vm384, %v4107, %v4111
  %v4114 = vsel %vm384, %v4101, %v4105
  %v4115 = vsel %vm384, %v4103, %v4107
  %v4116 = vsel %vm384, %v4097, %v4101
  %v4117 = vsel %vm384, %v4099, %v4103
  %v4118 = vsel %vm384, %v4093, %v4097
  %v4119 = vsel %vm384, %v4095, %v4099
  %v4120 = vsel %vm384, %v4089, %v4093
  %v4121 = vsel %vm384, %v4091, %v4095
  %v4122 = vsel %vm384, %v4109, %v4089
  %v4123 = vsel %vm384, %v4111, %v4091
  %4124 = vst [vmem:[#allocation2 + $0x240] sm:$0xff] %v4122
  %4125 = vst [vmem:[#allocation2 + $0x248] sm:$0xff] %v4120
  %4126 = vst [vmem:[#allocation2 + $0x250] sm:$0xff] %v4118
  %4127 = vst [vmem:[#allocation2 + $0x258] sm:$0xff] %v4116
  %4128 = vst [vmem:[#allocation2 + $0x260] sm:$0xff] %v4114
  %4129 = vst [vmem:[#allocation2 + $0x268] sm:$0xff] %v4112
  %4130 = vst [vmem:[#allocation2 + $0x2a0] sm:$0xff] %v4123
  %4131 = vst [vmem:[#allocation2 + $0x2a8] sm:$0xff] %v4121
  %4132 = vst [vmem:[#allocation2 + $0x2b0] sm:$0xff] %v4119
  %4133 = vst [vmem:[#allocation2 + $0x2b8] sm:$0xff] %v4117
  %4134 = vst [vmem:[#allocation2 + $0x2c0] sm:$0xff] %v4115
  %4135 = vst [vmem:[#allocation2 + $0x2c8] sm:$0xff] %v4113
  %4136 = vst [vmem:[#allocation2 + $0x300] sm:$0xff] %v3932
  %4137 = vst [vmem:[#allocation2 + $0x308] sm:$0xff] %v3933
  %4138 = vst [vmem:[#allocation2 + $0x310] sm:$0xff] %v3934
  %4139 = vst [vmem:[#allocation2 + $0x318] sm:$0xff] %v3935
  %4140 = vst [vmem:[#allocation2 + $0x320] sm:$0xff] %v3936
  %4141 = vst [vmem:[#allocation2 + $0x328] sm:$0xff] %v3937
  %4142 = vst [vmem:[#allocation2 + $0x360] sm:$0xff] %v3938
  %4143 = vst [vmem:[#allocation2 + $0x368] sm:$0xff] %v3939
  %4144 = vst [vmem:[#allocation2 + $0x370] sm:$0xff] %v3940
  %4145 = vst [vmem:[#allocation2 + $0x378] sm:$0xff] %v3941
  %4146 = vst [vmem:[#allocation2 + $0x380] sm:$0xff] %v3942
  %4147 = vst [vmem:[#allocation2 + $0x388] sm:$0xff] %v3943
  %4148 = vrot.lane.b32.xlu0 %v3932, 127
  %v4149 = vpop.permute.xlu0 %4148
  %4150 = vrot.lane.b32.xlu0 %v3938, 127
  %v4151 = vpop.permute.xlu0 %4150
  %4152 = vrot.lane.b32.xlu0 %v3933, 127
  %v4153 = vpop.permute.xlu0 %4152
  %4154 = vrot.lane.b32.xlu0 %v3939, 127
  %v4155 = vpop.permute.xlu0 %4154
  %4156 = vrot.lane.b32.xlu0 %v3934, 127
  %v4157 = vpop.permute.xlu0 %4156
  %4158 = vrot.lane.b32.xlu0 %v3940, 127
  %v4159 = vpop.permute.xlu0 %4158
  %4160 = vrot.lane.b32.xlu0 %v3935, 127
  %v4161 = vpop.permute.xlu0 %4160
  %4162 = vrot.lane.b32.xlu0 %v3941, 127
  %v4163 = vpop.permute.xlu0 %4162
  %4164 = vrot.lane.b32.xlu0 %v3936, 127
  %v4165 = vpop.permute.xlu0 %4164
  %4166 = vrot.lane.b32.xlu0 %v3942, 127
  %v4167 = vpop.permute.xlu0 %4166
  %4168 = vrot.lane.b32.xlu0 %v3937, 127
  %v4169 = vpop.permute.xlu0 %4168
  %4170 = vrot.lane.b32.xlu0 %v3943, 127
  %v4171 = vpop.permute.xlu0 %4170
  %v4172 = vsel %vm505, %v4165, %v4169
  %v4173 = vsel %vm505, %v4167, %v4171
  %v4174 = vsel %vm505, %v4161, %v4165
  %v4175 = vsel %vm505, %v4163, %v4167
  %v4176 = vsel %vm505, %v4157, %v4161
  %v4177 = vsel %vm505, %v4159, %v4163
  %v4178 = vsel %vm505, %v4153, %v4157
  %v4179 = vsel %vm505, %v4155, %v4159
  %v4180 = vsel %vm505, %v4149, %v4153
  %v4181 = vsel %vm505, %v4151, %v4155
  %v4182 = vsel %vm505, %v4169, %v4149
  %v4183 = vsel %vm505, %v4171, %v4151
  %4184 = vst [vmem:[#allocation2 + $0x3c0] sm:$0xff] %v4180
  %4185 = vst [vmem:[#allocation2 + $0x3c8] sm:$0xff] %v4178
  %4186 = vst [vmem:[#allocation2 + $0x3d0] sm:$0xff] %v4176
  %4187 = vst [vmem:[#allocation2 + $0x3d8] sm:$0xff] %v4174
  %4188 = vst [vmem:[#allocation2 + $0x3e0] sm:$0xff] %v4172
  %4189 = vst [vmem:[#allocation2 + $0x3e8] sm:$0xff] %v4182
  %4190 = vst [vmem:[#allocation2 + $0x420] sm:$0xff] %v4181
  %4191 = vst [vmem:[#allocation2 + $0x428] sm:$0xff] %v4179
  %4192 = vst [vmem:[#allocation2 + $0x430] sm:$0xff] %v4177
  %4193 = vst [vmem:[#allocation2 + $0x438] sm:$0xff] %v4175
  %4194 = vst [vmem:[#allocation2 + $0x440] sm:$0xff] %v4173
  %4195 = vst [vmem:[#allocation2 + $0x448] sm:$0xff] %v4183
  %4196 = vrot.lane.b32.xlu0 %v3932, 111
  %v4197 = vpop.permute.xlu0 %4196
  %4198 = vrot.lane.b32.xlu0 %v3938, 111
  %v4199 = vpop.permute.xlu0 %4198
  %4200 = vrot.lane.b32.xlu0 %v3933, 111
  %v4201 = vpop.permute.xlu0 %4200
  %4202 = vrot.lane.b32.xlu0 %v3939, 111
  %v4203 = vpop.permute.xlu0 %4202
  %4204 = vrot.lane.b32.xlu0 %v3934, 111
  %v4205 = vpop.permute.xlu0 %4204
  %4206 = vrot.lane.b32.xlu0 %v3940, 111
  %v4207 = vpop.permute.xlu0 %4206
  %4208 = vrot.lane.b32.xlu0 %v3935, 111
  %v4209 = vpop.permute.xlu0 %4208
  %4210 = vrot.lane.b32.xlu0 %v3941, 111
  %v4211 = vpop.permute.xlu0 %4210
  %4212 = vrot.lane.b32.xlu0 %v3936, 111
  %v4213 = vpop.permute.xlu0 %4212
  %4214 = vrot.lane.b32.xlu0 %v3942, 111
  %v4215 = vpop.permute.xlu0 %4214
  %4216 = vrot.lane.b32.xlu0 %v3937, 111
  %v4217 = vpop.permute.xlu0 %4216
  %4218 = vrot.lane.b32.xlu0 %v3943, 111
  %v4219 = vpop.permute.xlu0 %4218
  %v4220 = vsel %vm602, %v4213, %v4217
  %v4221 = vsel %vm602, %v4215, %v4219
  %v4222 = vsel %vm602, %v4209, %v4213
  %v4223 = vsel %vm602, %v4211, %v4215
  %v4224 = vsel %vm602, %v4205, %v4209
  %v4225 = vsel %vm602, %v4207, %v4211
  %v4226 = vsel %vm602, %v4201, %v4205
  %v4227 = vsel %vm602, %v4203, %v4207
  %v4228 = vsel %vm602, %v4197, %v4201
  %v4229 = vsel %vm602, %v4199, %v4203
  %v4230 = vsel %vm602, %v4217, %v4197
  %v4231 = vsel %vm602, %v4219, %v4199
  %4232 = vst [vmem:[#allocation2 + $0x480] sm:$0xff] %v4228
  %4233 = vst [vmem:[#allocation2 + $0x488] sm:$0xff] %v4226
  %4234 = vst [vmem:[#allocation2 + $0x490] sm:$0xff] %v4224
  %4235 = vst [vmem:[#allocation2 + $0x498] sm:$0xff] %v4222
  %4236 = vst [vmem:[#allocation2 + $0x4a0] sm:$0xff] %v4220
  %4237 = vst [vmem:[#allocation2 + $0x4a8] sm:$0xff] %v4230
  %4238 = vst [vmem:[#allocation2 + $0x4e0] sm:$0xff] %v4229
  %4239 = vst [vmem:[#allocation2 + $0x4e8] sm:$0xff] %v4227
  %4240 = vst [vmem:[#allocation2 + $0x4f0] sm:$0xff] %v4225
  %4241 = vst [vmem:[#allocation2 + $0x4f8] sm:$0xff] %v4223
  %4242 = vst [vmem:[#allocation2 + $0x500] sm:$0xff] %v4221
  %4243 = vst [vmem:[#allocation2 + $0x508] sm:$0xff] %v4231
  %4244 = vrot.lane.b32.xlu0 %v3932, 110
  %v4245 = vpop.permute.xlu0 %4244
  %4246 = vrot.lane.b32.xlu0 %v3938, 110
  %v4247 = vpop.permute.xlu0 %4246
  %4248 = vrot.lane.b32.xlu0 %v3933, 110
  %v4249 = vpop.permute.xlu0 %4248
  %4250 = vrot.lane.b32.xlu0 %v3939, 110
  %v4251 = vpop.permute.xlu0 %4250
  %4252 = vrot.lane.b32.xlu0 %v3934, 110
  %v4253 = vpop.permute.xlu0 %4252
  %4254 = vrot.lane.b32.xlu0 %v3940, 110
  %v4255 = vpop.permute.xlu0 %4254
  %4256 = vrot.lane.b32.xlu0 %v3935, 110
  %v4257 = vpop.permute.xlu0 %4256
  %4258 = vrot.lane.b32.xlu0 %v3941, 110
  %v4259 = vpop.permute.xlu0 %4258
  %4260 = vrot.lane.b32.xlu0 %v3936, 110
  %v4261 = vpop.permute.xlu0 %4260
  %4262 = vrot.lane.b32.xlu0 %v3942, 110
  %v4263 = vpop.permute.xlu0 %4262
  %4264 = vrot.lane.b32.xlu0 %v3937, 110
  %v4265 = vpop.permute.xlu0 %4264
  %4266 = vrot.lane.b32.xlu0 %v3943, 110
  %v4267 = vpop.permute.xlu0 %4266
  %v4268 = vsel %vm699, %v4261, %v4265
  %v4269 = vsel %vm699, %v4263, %v4267
  %v4270 = vsel %vm699, %v4257, %v4261
  %v4271 = vsel %vm699, %v4259, %v4263
  %v4272 = vsel %vm699, %v4253, %v4257
  %v4273 = vsel %vm699, %v4255, %v4259
  %v4274 = vsel %vm699, %v4249, %v4253
  %v4275 = vsel %vm699, %v4251, %v4255
  %v4276 = vsel %vm699, %v4245, %v4249
  %v4277 = vsel %vm699, %v4247, %v4251
  %v4278 = vsel %vm699, %v4265, %v4245
  %v4279 = vsel %vm699, %v4267, %v4247
  %4280 = vst [vmem:[#allocation2 + $0x540] sm:$0xff] %v4276
  %4281 = vst [vmem:[#allocation2 + $0x548] sm:$0xff] %v4274
  %4282 = vst [vmem:[#allocation2 + $0x550] sm:$0xff] %v4272
  %4283 = vst [vmem:[#allocation2 + $0x558] sm:$0xff] %v4270
  %4284 = vst [vmem:[#allocation2 + $0x560] sm:$0xff] %v4268
  %4285 = vst [vmem:[#allocation2 + $0x568] sm:$0xff] %v4278
  %4286 = vst [vmem:[#allocation2 + $0x5a0] sm:$0xff] %v4277
  %4287 = vst [vmem:[#allocation2 + $0x5a8] sm:$0xff] %v4275
  %4288 = vst [vmem:[#allocation2 + $0x5b0] sm:$0xff] %v4273
  %4289 = vst [vmem:[#allocation2 + $0x5b8] sm:$0xff] %v4271
  %4290 = vst [vmem:[#allocation2 + $0x5c0] sm:$0xff] %v4269
  %4291 = vst [vmem:[#allocation2 + $0x5c8] sm:$0xff] %v4279
  %4292 = vrot.lane.b32.xlu0 %v3932, 109
  %v4293 = vpop.permute.xlu0 %4292
  %4294 = vrot.lane.b32.xlu0 %v3938, 109
  %v4295 = vpop.permute.xlu0 %4294
  %4296 = vrot.lane.b32.xlu0 %v3933, 109
  %v4297 = vpop.permute.xlu0 %4296
  %4298 = vrot.lane.b32.xlu0 %v3939, 109
  %v4299 = vpop.permute.xlu0 %4298
  %4300 = vrot.lane.b32.xlu0 %v3934, 109
  %v4301 = vpop.permute.xlu0 %4300
  %4302 = vrot.lane.b32.xlu0 %v3940, 109
  %v4303 = vpop.permute.xlu0 %4302
  %4304 = vrot.lane.b32.xlu0 %v3935, 109
  %v4305 = vpop.permute.xlu0 %4304
  %4306 = vrot.lane.b32.xlu0 %v3941, 109
  %v4307 = vpop.permute.xlu0 %4306
  %4308 = vrot.lane.b32.xlu0 %v3936, 109
  %v4309 = vpop.permute.xlu0 %4308
  %4310 = vrot.lane.b32.xlu0 %v3942, 109
  %v4311 = vpop.permute.xlu0 %4310
  %4312 = vrot.lane.b32.xlu0 %v3937, 109
  %v4313 = vpop.permute.xlu0 %4312
  %4314 = vrot.lane.b32.xlu0 %v3943, 109
  %v4315 = vpop.permute.xlu0 %4314
  %v4316 = vsel %vm796, %v4309, %v4313
  %v4317 = vsel %vm796, %v4311, %v4315
  %v4318 = vsel %vm796, %v4305, %v4309
  %v4319 = vsel %vm796, %v4307, %v4311
  %v4320 = vsel %vm796, %v4301, %v4305
  %v4321 = vsel %vm796, %v4303, %v4307
  %v4322 = vsel %vm796, %v4297, %v4301
  %v4323 = vsel %vm796, %v4299, %v4303
  %v4324 = vsel %vm796, %v4293, %v4297
  %v4325 = vsel %vm796, %v4295, %v4299
  %v4326 = vsel %vm796, %v4313, %v4293
  %v4327 = vsel %vm796, %v4315, %v4295
  %4328 = vst [vmem:[#allocation2 + $0x600] sm:$0xff] %v4324
  %4329 = vst [vmem:[#allocation2 + $0x608] sm:$0xff] %v4322
  %4330 = vst [vmem:[#allocation2 + $0x610] sm:$0xff] %v4320
  %4331 = vst [vmem:[#allocation2 + $0x618] sm:$0xff] %v4318
  %4332 = vst [vmem:[#allocation2 + $0x620] sm:$0xff] %v4316
  %4333 = vst [vmem:[#allocation2 + $0x628] sm:$0xff] %v4326
  %4334 = vst [vmem:[#allocation2 + $0x660] sm:$0xff] %v4325
  %4335 = vst [vmem:[#allocation2 + $0x668] sm:$0xff] %v4323
  %4336 = vst [vmem:[#allocation2 + $0x670] sm:$0xff] %v4321
  %4337 = vst [vmem:[#allocation2 + $0x678] sm:$0xff] %v4319
  %4338 = vst [vmem:[#allocation2 + $0x680] sm:$0xff] %v4317
  %4339 = vst [vmem:[#allocation2 + $0x688] sm:$0xff] %v4327
  %s4340 = scalar_lea.vmem %s2, 96
  %v4341 = vld [vmem:[%s4340] sm:$0xff]
  %v4342 = vld [vmem:[%s4340 + $0x8] sm:$0xff]
  %v4343 = vld [vmem:[%s4340 + $0x10] sm:$0xff]
  %v4344 = vld [vmem:[%s4340 + $0x18] sm:$0xff]
  %v4345 = vld [vmem:[#allocation2] sm:$0xff]
  %v4346 = vld [vmem:[#allocation2 + $0x8] sm:$0xff]
  %v4347 = vld [vmem:[#allocation2 + $0x10] sm:$0xff]
  %v4348 = vld [vmem:[#allocation2 + $0x18] sm:$0xff]
  %v4349 = vld [vmem:[#allocation2 + $0x20] sm:$0xff]
  %v4350 = vld [vmem:[#allocation2 + $0x28] sm:$0xff]
  %v4351 = vld [vmem:[#allocation2 + $0x60] sm:$0xff]
  %v4352 = vld [vmem:[#allocation2 + $0x68] sm:$0xff]
  %v4353 = vld [vmem:[#allocation2 + $0x70] sm:$0xff]
  %v4354 = vld [vmem:[#allocation2 + $0x78] sm:$0xff]
  %v4355 = vld [vmem:[#allocation2 + $0x80] sm:$0xff]
  %v4356 = vld [vmem:[#allocation2 + $0x88] sm:$0xff]
  %v4357 = vld [vmem:[#allocation2 + $0xc0] sm:$0xff]
  %v4358 = vld [vmem:[#allocation2 + $0xc8] sm:$0xff]
  %v4359 = vld [vmem:[#allocation2 + $0xd0] sm:$0xff]
  %v4360 = vld [vmem:[#allocation2 + $0xd8] sm:$0xff]
  %v4361 = vld [vmem:[#allocation2 + $0xe0] sm:$0xff]
  %v4362 = vld [vmem:[#allocation2 + $0xe8] sm:$0xff]
  %v4363 = vld [vmem:[#allocation2 + $0x120] sm:$0xff]
  %v4364 = vld [vmem:[#allocation2 + $0x128] sm:$0xff]
  %v4365 = vld [vmem:[#allocation2 + $0x130] sm:$0xff]
  %v4366 = vld [vmem:[#allocation2 + $0x138] sm:$0xff]
  %v4367 = vld [vmem:[#allocation2 + $0x140] sm:$0xff]
  %v4368 = vld [vmem:[#allocation2 + $0x148] sm:$0xff]
  %v4369 = vld [vmem:[#allocation2 + $0x180] sm:$0xff]
  %v4370 = vld [vmem:[#allocation2 + $0x188] sm:$0xff]
  %v4371 = vld [vmem:[#allocation2 + $0x190] sm:$0xff]
  %v4372 = vld [vmem:[#allocation2 + $0x198] sm:$0xff]
  %v4373 = vld [vmem:[#allocation2 + $0x1a0] sm:$0xff]
  %v4374 = vld [vmem:[#allocation2 + $0x1a8] sm:$0xff]
  %v4375 = vld [vmem:[#allocation2 + $0x1e0] sm:$0xff]
  %v4376 = vld [vmem:[#allocation2 + $0x1e8] sm:$0xff]
  %v4377 = vld [vmem:[#allocation2 + $0x1f0] sm:$0xff]
  %v4378 = vld [vmem:[#allocation2 + $0x1f8] sm:$0xff]
  %v4379 = vld [vmem:[#allocation2 + $0x200] sm:$0xff]
  %v4380 = vld [vmem:[#allocation2 + $0x208] sm:$0xff]
  %v4381 = vld [vmem:[#allocation2 + $0x240] sm:$0xff]
  %v4382 = vld [vmem:[#allocation2 + $0x248] sm:$0xff]
  %v4383 = vld [vmem:[#allocation2 + $0x250] sm:$0xff]
  %v4384 = vld [vmem:[#allocation2 + $0x258] sm:$0xff]
  %v4385 = vld [vmem:[#allocation2 + $0x260] sm:$0xff]
  %v4386 = vld [vmem:[#allocation2 + $0x268] sm:$0xff]
  %v4387 = vld [vmem:[#allocation2 + $0x2a0] sm:$0xff]
  %v4388 = vld [vmem:[#allocation2 + $0x2a8] sm:$0xff]
  %v4389 = vld [vmem:[#allocation2 + $0x2b0] sm:$0xff]
  %v4390 = vld [vmem:[#allocation2 + $0x2b8] sm:$0xff]
  %v4391 = vld [vmem:[#allocation2 + $0x2c0] sm:$0xff]
  %v4392 = vld [vmem:[#allocation2 + $0x2c8] sm:$0xff]
  %v4393 = vld [vmem:[#allocation2 + $0x300] sm:$0xff]
  %v4394 = vld [vmem:[#allocation2 + $0x308] sm:$0xff]
  %v4395 = vld [vmem:[#allocation2 + $0x310] sm:$0xff]
  %v4396 = vld [vmem:[#allocation2 + $0x318] sm:$0xff]
  %v4397 = vld [vmem:[#allocation2 + $0x320] sm:$0xff]
  %v4398 = vld [vmem:[#allocation2 + $0x328] sm:$0xff]
  %v4399 = vld [vmem:[#allocation2 + $0x360] sm:$0xff]
  %v4400 = vld [vmem:[#allocation2 + $0x368] sm:$0xff]
  %v4401 = vld [vmem:[#allocation2 + $0x370] sm:$0xff]
  %v4402 = vld [vmem:[#allocation2 + $0x378] sm:$0xff]
  %v4403 = vld [vmem:[#allocation2 + $0x380] sm:$0xff]
  %v4404 = vld [vmem:[#allocation2 + $0x388] sm:$0xff]
  %v4405 = vld [vmem:[#allocation2 + $0x3c0] sm:$0xff]
  %v4406 = vld [vmem:[#allocation2 + $0x3c8] sm:$0xff]
  %v4407 = vld [vmem:[#allocation2 + $0x3d0] sm:$0xff]
  %v4408 = vld [vmem:[#allocation2 + $0x3d8] sm:$0xff]
  %v4409 = vld [vmem:[#allocation2 + $0x3e0] sm:$0xff]
  %v4410 = vld [vmem:[#allocation2 + $0x3e8] sm:$0xff]
  %v4411 = vld [vmem:[#allocation2 + $0x420] sm:$0xff]
  %v4412 = vld [vmem:[#allocation2 + $0x428] sm:$0xff]
  %v4413 = vld [vmem:[#allocation2 + $0x430] sm:$0xff]
  %v4414 = vld [vmem:[#allocation2 + $0x438] sm:$0xff]
  %v4415 = vld [vmem:[#allocation2 + $0x440] sm:$0xff]
  %v4416 = vld [vmem:[#allocation2 + $0x448] sm:$0xff]
  %v4417 = vld [vmem:[#allocation2 + $0x480] sm:$0xff]
  %v4418 = vld [vmem:[#allocation2 + $0x488] sm:$0xff]
  %v4419 = vld [vmem:[#allocation2 + $0x490] sm:$0xff]
  %v4420 = vld [vmem:[#allocation2 + $0x498] sm:$0xff]
  %v4421 = vld [vmem:[#allocation2 + $0x4a0] sm:$0xff]
  %v4422 = vld [vmem:[#allocation2 + $0x4a8] sm:$0xff]
  %v4423 = vld [vmem:[#allocation2 + $0x4e0] sm:$0xff]
  %v4424 = vld [vmem:[#allocation2 + $0x4e8] sm:$0xff]
  %v4425 = vld [vmem:[#allocation2 + $0x4f0] sm:$0xff]
  %v4426 = vld [vmem:[#allocation2 + $0x4f8] sm:$0xff]
  %v4427 = vld [vmem:[#allocation2 + $0x500] sm:$0xff]
  %v4428 = vld [vmem:[#allocation2 + $0x508] sm:$0xff]
  %v4429 = vld [vmem:[#allocation2 + $0x540] sm:$0xff]
  %v4430 = vld [vmem:[#allocation2 + $0x548] sm:$0xff]
  %v4431 = vld [vmem:[#allocation2 + $0x550] sm:$0xff]
  %v4432 = vld [vmem:[#allocation2 + $0x558] sm:$0xff]
  %v4433 = vld [vmem:[#allocation2 + $0x560] sm:$0xff]
  %v4434 = vld [vmem:[#allocation2 + $0x568] sm:$0xff]
  %v4435 = vld [vmem:[#allocation2 + $0x5a0] sm:$0xff]
  %v4436 = vld [vmem:[#allocation2 + $0x5a8] sm:$0xff]
  %v4437 = vld [vmem:[#allocation2 + $0x5b0] sm:$0xff]
  %v4438 = vld [vmem:[#allocation2 + $0x5b8] sm:$0xff]
  %v4439 = vld [vmem:[#allocation2 + $0x5c0] sm:$0xff]
  %v4440 = vld [vmem:[#allocation2 + $0x5c8] sm:$0xff]
  %v4441 = vld [vmem:[#allocation2 + $0x600] sm:$0xff]
  %v4442 = vld [vmem:[#allocation2 + $0x608] sm:$0xff]
  %v4443 = vld [vmem:[#allocation2 + $0x610] sm:$0xff]
  %v4444 = vld [vmem:[#allocation2 + $0x618] sm:$0xff]
  %v4445 = vld [vmem:[#allocation2 + $0x620] sm:$0xff]
  %v4446 = vld [vmem:[#allocation2 + $0x628] sm:$0xff]
  %v4447 = vld [vmem:[#allocation2 + $0x660] sm:$0xff]
  %v4448 = vld [vmem:[#allocation2 + $0x668] sm:$0xff]
  %v4449 = vld [vmem:[#allocation2 + $0x670] sm:$0xff]
  %v4450 = vld [vmem:[#allocation2 + $0x678] sm:$0xff]
  %v4451 = vld [vmem:[#allocation2 + $0x680] sm:$0xff]
  %v4452 = vld [vmem:[#allocation2 + $0x688] sm:$0xff]
  %s4453 = scalar_lea.vmem %s3, 48
  %v4454 = vld [vmem:[%s4453] sm:$0xff]
  %v4455 = vld [vmem:[%s4453 + $0x8] sm:$0xff]
  %4457 = vset.pattern.permute.xlu0 0
  %4458 = vperm.xlu0 %4457, %v4454
  %v4459 = vpop.permute.xlu0 %4458
  %4462 = vset.pattern.permute.xlu0 0
  %4463 = vperm.xlu0 %4462, %v4455
  %v4464 = vpop.permute.xlu0 %4463
  %v4467 = vsel %vm1077, %v4342, 0
  %v4470 = vsel %vm1077, %v4344, 0
  %4472 = vmatprep.subr.mxu0 %v4436
  %4473 = vmatpush1.msra.mxu0 %v4435
  %4474 = vmatprep.subr.mxu0 %v4430
  %4475 = vmatpush1.msra.mxu0 %v4429
  %4476 = vmatprep.subr.mxu0 %v4424
  %4477 = vmatpush1.msra.mxu0 %v4423
  %4478 = vmatprep.subr.mxu0 %v4418
  %4479 = vmatpush1.msra.mxu0 %v4417
  %4480 = vmatprep.subr.mxu0 %v4412
  %4481 = vmatpush1.msra.mxu0 %v4411
  %4482 = vmatprep.subr.mxu0 %v4406
  %4483 = vmatpush1.msra.mxu0 %v4405
  %4484 = vmatprep.subr.mxu0 %v4400
  %4485 = vmatpush1.msra.mxu0 %v4399
  %4486 = vmatprep.subr.mxu0 %v4394
  %4487 = vmatpush1.msra.mxu0 %v4393
  %4488 = vmatprep.subr.mxu0 %v4388
  %4489 = vmatpush1.msra.mxu0 %v4387
  %4490 = vmatprep.subr.mxu0 %v4382
  %4491 = vmatpush1.msra.mxu0 %v4381
  %4492 = vmatprep.subr.mxu0 %v4376
  %4493 = vmatpush1.msra.mxu0 %v4375
  %4494 = vmatprep.subr.mxu0 %v4370
  %4495 = vmatpush1.msra.mxu0 %v4369
  %4496 = vmatprep.subr.mxu0 %v4364
  %4497 = vmatpush1.msra.mxu0 %v4363
  %4498 = vmatprep.subr.mxu0 %v4358
  %4499 = vmatpush1.msra.mxu0 %v4357
  %4500 = vmatprep.subr.mxu0 %v4352
  %4501 = vmatpush1.msra.mxu0 %v4351
  %4502 = vmatprep.subr.mxu0 %v4346
  %4503 = vmatpush1.msra.mxu0 %v4345
  %4504 = vmatprep.subr.mxu0 0.0
  %4505 = vmatpush2.msra.mxu0 0.0
  %4506 = vmatprep.subr.mxu0 0.0
  %4507 = vmatpush2.msra.mxu0 0.0
  %4508 = vmatprep.subr.mxu0 0.0
  %4509 = vmatpush2.msra.mxu0 0.0
  %4510 = vmatprep.subr.mxu0 0.0
  %4511 = vmatpush2.msra.mxu0 0.0
  %4512 = vmatprep.subr.mxu0 0.0
  %4513 = vmatpush2.msra.mxu0 0.0
  %4514 = vmatprep.subr.mxu0 0.0
  %4515 = vmatpush2.msra.mxu0 0.0
  %4516 = vmatprep.subr.mxu0 0.0
  %4517 = vmatpush2.msra.mxu0 0.0
  %4518 = vmatprep.subr.mxu0 0.0
  %4519 = vmatpush2.msra.mxu0 0.0
  %4520 = vmatprep.subr.mxu0 0.0
  %4521 = vmatpush2.msra.mxu0 0.0
  %4522 = vmatprep.subr.mxu0 0.0
  %4523 = vmatpush2.msra.mxu0 0.0
  %4524 = vmatprep.subr.mxu0 0.0
  %4525 = vmatpush2.msra.mxu0 0.0
  %4526 = vmatprep.subr.mxu0 0.0
  %4527 = vmatpush2.msra.mxu0 0.0
  %4528 = vmatprep.subr.mxu0 0.0
  %4529 = vmatpush2.msra.mxu0 0.0
  %4530 = vmatprep.subr.mxu0 0.0
  %4531 = vmatpush2.msra.mxu0 0.0
  %4532 = vmatprep.subr.mxu0 %v4448
  %4533 = vmatpush2.msra.mxu0 %v4447
  %4534 = vmatprep.subr.mxu0 %v4442
  %4535 = vmatpush2.msra.mxu0 %v4441
  %4536 = vmatprep.mubr.f32.mxu0 %v4467
  %4537 = vmatmul.mubr.f32.gmra.mxu0 %v4341
  %v4538 = vpop.f32.mrf.mxu0
  %v4539 = vadd.f32 %v4459, %v4538
  %v4540 = vpop.f32.mrf.mxu0
  %v4541 = vadd.f32 %v4459, %v4540
  %4542 = vmatprep.mubr.f32.mxu0 %v4470
  %4543 = vmatmul.mubr.f32.gmra.mxu0 %v4343
  %v4544 = vpop.f32.mrf.mxu0
  %v4545 = vadd.f32 %v4464, %v4544
  %v4546 = vpop.f32.mrf.mxu0
  %v4547 = vadd.f32 %v4464, %v4546
  %4548 = vdwg.mxu0
  %4549 = vmatprep.subr.mxu0 %v4438
  %4550 = vmatpush1.msra.mxu0 %v4437
  %4551 = vmatprep.subr.mxu0 %v4432
  %4552 = vmatpush1.msra.mxu0 %v4431
  %4553 = vmatprep.subr.mxu0 %v4426
  %4554 = vmatpush1.msra.mxu0 %v4425
  %4555 = vmatprep.subr.mxu0 %v4420
  %4556 = vmatpush1.msra.mxu0 %v4419
  %4557 = vmatprep.subr.mxu0 %v4414
  %4558 = vmatpush1.msra.mxu0 %v4413
  %4559 = vmatprep.subr.mxu0 %v4408
  %4560 = vmatpush1.msra.mxu0 %v4407
  %4561 = vmatprep.subr.mxu0 %v4402
  %4562 = vmatpush1.msra.mxu0 %v4401
  %4563 = vmatprep.subr.mxu0 %v4396
  %4564 = vmatpush1.msra.mxu0 %v4395
  %4565 = vmatprep.subr.mxu0 %v4390
  %4566 = vmatpush1.msra.mxu0 %v4389
  %4567 = vmatprep.subr.mxu0 %v4384
  %4568 = vmatpush1.msra.mxu0 %v4383
  %4569 = vmatprep.subr.mxu0 %v4378
  %4570 = vmatpush1.msra.mxu0 %v4377
  %4571 = vmatprep.subr.mxu0 %v4372
  %4572 = vmatpush1.msra.mxu0 %v4371
  %4573 = vmatprep.subr.mxu0 %v4366
  %4574 = vmatpush1.msra.mxu0 %v4365
  %4575 = vmatprep.subr.mxu0 %v4360
  %4576 = vmatpush1.msra.mxu0 %v4359
  %4577 = vmatprep.subr.mxu0 %v4354
  %4578 = vmatpush1.msra.mxu0 %v4353
  %4579 = vmatprep.subr.mxu0 %v4348
  %4580 = vmatpush1.msra.mxu0 %v4347
  %4581 = vmatprep.subr.mxu0 0.0
  %4582 = vmatpush2.msra.mxu0 0.0
  %4583 = vmatprep.subr.mxu0 0.0
  %4584 = vmatpush2.msra.mxu0 0.0
  %4585 = vmatprep.subr.mxu0 0.0
  %4586 = vmatpush2.msra.mxu0 0.0
  %4587 = vmatprep.subr.mxu0 0.0
  %4588 = vmatpush2.msra.mxu0 0.0
  %4589 = vmatprep.subr.mxu0 0.0
  %4590 = vmatpush2.msra.mxu0 0.0
  %4591 = vmatprep.subr.mxu0 0.0
  %4592 = vmatpush2.msra.mxu0 0.0
  %4593 = vmatprep.subr.mxu0 0.0
  %4594 = vmatpush2.msra.mxu0 0.0
  %4595 = vmatprep.subr.mxu0 0.0
  %4596 = vmatpush2.msra.mxu0 0.0
  %4597 = vmatprep.subr.mxu0 0.0
  %4598 = vmatpush2.msra.mxu0 0.0
  %4599 = vmatprep.subr.mxu0 0.0
  %4600 = vmatpush2.msra.mxu0 0.0
  %4601 = vmatprep.subr.mxu0 0.0
  %4602 = vmatpush2.msra.mxu0 0.0
  %4603 = vmatprep.subr.mxu0 0.0
  %4604 = vmatpush2.msra.mxu0 0.0
  %4605 = vmatprep.subr.mxu0 0.0
  %4606 = vmatpush2.msra.mxu0 0.0
  %4607 = vmatprep.subr.mxu0 0.0
  %4608 = vmatpush2.msra.mxu0 0.0
  %4609 = vmatprep.subr.mxu0 %v4450
  %4610 = vmatpush2.msra.mxu0 %v4449
  %4611 = vmatprep.subr.mxu0 %v4444
  %4612 = vmatpush2.msra.mxu0 %v4443
  %4613 = vmatprep.mubr.f32.mxu0 %v4467
  %4614 = vmatmul.mubr.f32.gmra.mxu0 %v4341
  %v4615 = vpop.f32.mrf.mxu0
  %v4616 = vadd.f32 %v4459, %v4615
  %v4617 = vpop.f32.mrf.mxu0
  %v4618 = vadd.f32 %v4459, %v4617
  %4619 = vmatprep.mubr.f32.mxu0 %v4470
  %4620 = vmatmul.mubr.f32.gmra.mxu0 %v4343
  %v4621 = vpop.f32.mrf.mxu0
  %v4622 = vadd.f32 %v4464, %v4621
  %v4623 = vpop.f32.mrf.mxu0
  %v4624 = vadd.f32 %v4464, %v4623
  %4625 = vdwg.mxu0
  %4626 = vmatprep.subr.mxu0 %v4440
  %4627 = vmatpush1.msra.mxu0 %v4439
  %4628 = vmatprep.subr.mxu0 %v4434
  %4629 = vmatpush1.msra.mxu0 %v4433
  %4630 = vmatprep.subr.mxu0 %v4428
  %4631 = vmatpush1.msra.mxu0 %v4427
  %4632 = vmatprep.subr.mxu0 %v4422
  %4633 = vmatpush1.msra.mxu0 %v4421
  %4634 = vmatprep.subr.mxu0 %v4416
  %4635 = vmatpush1.msra.mxu0 %v4415
  %4636 = vmatprep.subr.mxu0 %v4410
  %4637 = vmatpush1.msra.mxu0 %v4409
  %4638 = vmatprep.subr.mxu0 %v4404
  %4639 = vmatpush1.msra.mxu0 %v4403
  %4640 = vmatprep.subr.mxu0 %v4398
  %4641 = vmatpush1.msra.mxu0 %v4397
  %4642 = vmatprep.subr.mxu0 %v4392
  %4643 = vmatpush1.msra.mxu0 %v4391
  %4644 = vmatprep.subr.mxu0 %v4386
  %4645 = vmatpush1.msra.mxu0 %v4385
  %4646 = vmatprep.subr.mxu0 %v4380
  %4647 = vmatpush1.msra.mxu0 %v4379
  %4648 = vmatprep.subr.mxu0 %v4374
  %4649 = vmatpush1.msra.mxu0 %v4373
  %4650 = vmatprep.subr.mxu0 %v4368
  %4651 = vmatpush1.msra.mxu0 %v4367
  %4652 = vmatprep.subr.mxu0 %v4362
  %4653 = vmatpush1.msra.mxu0 %v4361
  %4654 = vmatprep.subr.mxu0 %v4356
  %4655 = vmatpush1.msra.mxu0 %v4355
  %4656 = vmatprep.subr.mxu0 %v4350
  %4657 = vmatpush1.msra.mxu0 %v4349
  %4658 = vmatprep.subr.mxu0 0.0
  %4659 = vmatpush2.msra.mxu0 0.0
  %4660 = vmatprep.subr.mxu0 0.0
  %4661 = vmatpush2.msra.mxu0 0.0
  %4662 = vmatprep.subr.mxu0 0.0
  %4663 = vmatpush2.msra.mxu0 0.0
  %4664 = vmatprep.subr.mxu0 0.0
  %4665 = vmatpush2.msra.mxu0 0.0
  %4666 = vmatprep.subr.mxu0 0.0
  %4667 = vmatpush2.msra.mxu0 0.0
  %4668 = vmatprep.subr.mxu0 0.0
  %4669 = vmatpush2.msra.mxu0 0.0
  %4670 = vmatprep.subr.mxu0 0.0
  %4671 = vmatpush2.msra.mxu0 0.0
  %4672 = vmatprep.subr.mxu0 0.0
  %4673 = vmatpush2.msra.mxu0 0.0
  %4674 = vmatprep.subr.mxu0 0.0
  %4675 = vmatpush2.msra.mxu0 0.0
  %4676 = vmatprep.subr.mxu0 0.0
  %4677 = vmatpush2.msra.mxu0 0.0
  %4678 = vmatprep.subr.mxu0 0.0
  %4679 = vmatpush2.msra.mxu0 0.0
  %4680 = vmatprep.subr.mxu0 0.0
  %4681 = vmatpush2.msra.mxu0 0.0
  %4682 = vmatprep.subr.mxu0 0.0
  %4683 = vmatpush2.msra.mxu0 0.0
  %4684 = vmatprep.subr.mxu0 0.0
  %4685 = vmatpush2.msra.mxu0 0.0
  %4686 = vmatprep.subr.mxu0 %v4452
  %4687 = vmatpush2.msra.mxu0 %v4451
  %4688 = vmatprep.subr.mxu0 %v4446
  %4689 = vmatpush2.msra.mxu0 %v4445
  %4690 = vmatprep.mubr.f32.mxu0 %v4467
  %4691 = vmatmul.mubr.f32.gmra.mxu0 %v4341
  %v4692 = vpop.f32.mrf.mxu0
  %v4693 = vadd.f32 %v4459, %v4692
  %v4694 = vpop.f32.mrf.mxu0
  %v4695 = vadd.f32 %v4459, %v4694
  %4696 = vmatprep.mubr.f32.mxu0 %v4470
  %4697 = vmatmul.mubr.f32.gmra.mxu0 %v4343
  %v4698 = vpop.f32.mrf.mxu0
  %v4699 = vadd.f32 %v4464, %v4698
  %v4700 = vpop.f32.mrf.mxu0
  %v4701 = vadd.f32 %v4464, %v4700
  %4702 = vdwg.mxu0
  %4703 = vst [vmem:[%s4] sm:$0xff] %v4539
  %4704 = vst [vmem:[%s4 + $0x8] sm:$0xff] %v4541
  %4705 = vst [vmem:[%s4 + $0x10] sm:$0xff] %v4616
  %4706 = vst [vmem:[%s4 + $0x18] sm:$0xff] %v4618
  %4707 = vst [vmem:[%s4 + $0x20] sm:$0xff] %v4693
  %4708 = vst [vmem:[%s4 + $0x28] sm:$0xff] %v4695
  %4709 = vst [vmem:[%s4 + $0x30] sm:$0xff] %v4545
  %4710 = vst [vmem:[%s4 + $0x38] sm:$0xff] %v4547
  %4711 = vst [vmem:[%s4 + $0x40] sm:$0xff] %v4622
  %4712 = vst [vmem:[%s4 + $0x48] sm:$0xff] %v4624
  %4713 = vst [vmem:[%s4 + $0x50] sm:$0xff] %v4699
  %4714 = vst [vmem:[%s4 + $0x58] sm:$0xff] %v4701
  // Predicated region
  $region18: #{feed_forward_pallas.1} parent=0 // pred_check
    _
  $region19: #{feed_forward_pallas.1} parent=0 // pred_check_branch
    %4716 = sbr.rel (0) target = $region21
  $region20: #{feed_forward_pallas.1} parent=0 // pred_region
    _
  $region21: #{feed_forward_pallas.1} parent=0 // pred_fallthru
    _
  // Predicated region
  $region22: #{feed_forward_pallas.1} parent=0 // pred_check
    _
  $region23: #{feed_forward_pallas.1} parent=0 // pred_check_branch
    %4718 = sbr.rel (0) target = $region25
  $region24: #{feed_forward_pallas.1} parent=0 // pred_region
    _
  $region25: #{feed_forward_pallas.1} parent=0 // pred_fallthru
    _

</llo_original>
